<compile_context>
chip_gen: v6e
topology: v6e:2x2x1
jax: 0.10.0
libtpu: 0.0.40
codegen_flags: <defaults>
</compile_context>

<pallas_src>
import functools

import numpy as np
import jax
import jax.numpy as jnp
from jax import lax
from jax.experimental import pallas as pl
from jax.experimental.pallas import tpu as pltpu

LEAKY_SLOPE = 0.01   # nn.LeakyReLU default
BN_EPS = 1e-5        # nn.BatchNorm2d default
KERNEL_SIZE = 3      # SFS_Cnn default kernel_size


# ----------------------------------------------------------------------------
# Pallas kernels
# ----------------------------------------------------------------------------
def _apply_act(y, kind):
    if kind == "leaky_relu":
        return jnp.where(y > 0, y, LEAKY_SLOPE * y)
    if kind == "relu":
        return jnp.maximum(y, 0.0)
    return y


def _conv_act_bn_kernel(w_ref, p_ref, bgb_ref, o_ref, *, act):
    # w: (Cout, K), p: (K, M)  ->  y: (Cout, M)   (lane-dense in M)
    # bgb: (Cout, 3) = [bias | gamma | beta] packed into one small DMA.
    y = jnp.dot(w_ref[...], p_ref[...], preferred_element_type=jnp.float32)
    y = y + bgb_ref[:, 0:1]
    y = _apply_act(y, act)
    # Training-mode BatchNorm2d: biased batch stats over (N, H, W) == lane axis.
    mean = jnp.mean(y, axis=1, keepdims=True)
    var = jnp.mean((y - mean) ** 2, axis=1, keepdims=True)
    o_ref[...] = ((y - mean) * lax.rsqrt(var + BN_EPS) * bgb_ref[:, 1:2]
                  + bgb_ref[:, 2:3])


def conv_act_bn(w_mat, patches_t, bgb, act):
    C, K = w_mat.shape
    M = patches_t.shape[1]
    kern = functools.partial(_conv_act_bn_kernel, act=act)
    return pl.pallas_call(
        kern,
        out_shape=jax.ShapeDtypeStruct((C, M), jnp.float32),
        grid=(1,),
        in_specs=[
            pl.BlockSpec((C, K), lambda i: (0, 0)),
            pl.BlockSpec((K, M), lambda i: (0, 0)),
            pl.BlockSpec((C, 3), lambda i: (0, 0)),
        ],
        out_specs=pl.BlockSpec((C, M), lambda i: (0, 0)),
        compiler_params=pltpu.CompilerParams(
            dimension_semantics=("arbitrary",)),
        cost_estimate=pl.CostEstimate(
            flops=2 * C * K * M + 8 * C * M,
            transcendentals=0,
            bytes_accessed=4 * (K * M + C * K + 3 * C + C * M)),
    )(w_mat, patches_t, bgb)


def _decoder_kernel(feat_ref, w1_ref, b1_ref, w2_ref, b2_ref, o_ref, acc_ref):
    k = pl.program_id(0)

    @pl.when(k == 0)
    def _():
        acc_ref[...] = jnp.zeros_like(acc_ref)

    # fc1, K-tiled over the grid.  Weights arrive as bf16 (half the HBM
    # traffic) and are up-cast in VMEM: activations & accumulation stay f32.
    acc_ref[...] += jnp.dot(feat_ref[...],
                            w1_ref[...].astype(jnp.float32),
                            preferred_element_type=jnp.float32)

    @pl.when(k == pl.num_programs(0) - 1)
    def _():
        h = acc_ref[...] + b1_ref[...]           # fc1 activation stays in VMEM
        y = jnp.dot(h, w2_ref[...].astype(jnp.float32),
                    preferred_element_type=jnp.float32) + b2_ref[...]
        o_ref[...] = y.astype(o_ref.dtype)


def decoder_call(feat, w1_t, b1_row, w2_p, b2_row, *, tile_k=1024):
    # feat: (N, F) f32, w1_t: (F, H) [pre-transposed, possibly bf16],
    # w2_p: (H, OUTP) [pre-padded to 128 lanes, possibly bf16].
    N, F = feat.shape
    H = w1_t.shape[1]
    OUTP = w2_p.shape[1]

    tk = min(tile_k, F)
    while F % tk:
        tk //= 2
    grid = (F // tk,)

    w_bytes = w1_t.dtype.itemsize
    return pl.pallas_call(
        _decoder_kernel,
        out_shape=jax.ShapeDtypeStruct((N, OUTP), jnp.float32),
        grid=grid,
        in_specs=[
            pl.BlockSpec((N, tk), lambda k: (0, k)),
            pl.BlockSpec((tk, H), lambda k: (k, 0)),
            pl.BlockSpec((1, H), lambda k: (0, 0)),
            pl.BlockSpec((H, OUTP), lambda k: (0, 0)),
            pl.BlockSpec((1, OUTP), lambda k: (0, 0)),
        ],
        out_specs=pl.BlockSpec((N, OUTP), lambda k: (0, 0)),
        scratch_shapes=[pltpu.VMEM((N, H), jnp.float32)],
        compiler_params=pltpu.CompilerParams(
            dimension_semantics=("arbitrary",)),
        cost_estimate=pl.CostEstimate(
            flops=2 * N * F * H + 2 * N * H * OUTP,
            transcendentals=0,
            bytes_accessed=(F * H + H * OUTP) * w_bytes
            + 4 * (N * F + N * OUTP + H + OUTP)),
    )(feat, w1_t, b1_row, w2_p, b2_row)


# ----------------------------------------------------------------------------
# Glue (im2col, pooling, adaptive pool) — all tiny at these shapes
# ----------------------------------------------------------------------------
def im2col_t(x_cnhw, kh, kw):
    # Transposed im2col: (K, M) with K = kh*kw*Cin on sublanes and
    # M = N*Ho*Wo on the lane axis (lane-dense GEMM operand).
    C, N, H, W = x_cnhw.shape
    Ho, Wo = H - kh + 1, W - kw + 1
    rows = []
    for di in range(kh):
        for dj in range(kw):
            rows.append(
                x_cnhw[:, :, di:di + Ho, dj:dj + Wo].reshape(C, N * Ho * Wo))
    p = jnp.stack(rows, axis=0).reshape(kh * kw * C, N * Ho * Wo)
    return p, (N, Ho, Wo)


def conv_layer(x_cnhw, w_mat, bgb, act, kh=KERNEL_SIZE, kw=KERNEL_SIZE):
    # w_mat: (Cout, K) pre-reshaped GEMM weight with K ordered (kh, kw, cin).
    cout = w_mat.shape[0]
    patches_t, (N, Ho, Wo) = im2col_t(x_cnhw, kh, kw)
    y = conv_act_bn(w_mat, patches_t, bgb, act)
    return y.reshape(cout, N, Ho, Wo)


def maxpool2x2(x_cnhw):
    C, N, H, W = x_cnhw.shape
    Ho, Wo = H // 2, W // 2
    x = x_cnhw[:, :, :Ho * 2, :Wo * 2].reshape(C, N, Ho, 2, Wo, 2)
    return x.max(axis=(3, 5))


def _adaptive_matrix(in_size, out_size):
    # PyTorch AdaptiveAvgPool: bin i covers [floor(i*in/out), ceil((i+1)*in/out))
    P = np.zeros((out_size, in_size), np.float32)
    for i in range(out_size):
        s = (i * in_size) // out_size
        a = (i + 1) * in_size
        e = -((-a) // out_size)
        P[i, s:e] = 1.0 / (e - s)
    return jnp.asarray(P)


# ----------------------------------------------------------------------------
# One-time parameter preparation (OUTSIDE the jitted forward)
# ----------------------------------------------------------------------------
def prepare_params(params, *, decoder_weight_dtype=jnp.bfloat16, out_pad=128):
    """Hoists all layout/dtype work out of the per-call forward:
       conv GEMM reshapes, packed (C,3) bias/gamma/beta, fc1 transpose,
       fc2 lane padding, and the (weight-only) bf16 cast of decoder weights."""
    prep = {}
    for name in ("1", "2", "3"):
        w = params[f"w{name}"]                       # (Cout, Cin, KH, KW)
        cout, cin, kh, kw = w.shape
        prep[f"cw{name}"] = jnp.transpose(w, (0, 2, 3, 1)).reshape(
            cout, kh * kw * cin)                     # (Cout, K), K=(kh,kw,cin)
        prep[f"cbgb{name}"] = jnp.stack(
            [params[f"b{name}"], params[f"g{name}"], params[f"bb{name}"]],
            axis=1).astype(jnp.float32)              # (Cout, 3)

    H, F = params["fc1_w"].shape
    n_out = params["fc2_w"].shape[0]
    prep["fc1_wt"] = params["fc1_w"].T.astype(decoder_weight_dtype)   # (F, H)
    prep["fc1_b"] = params["fc1_b"].reshape(1, H).astype(jnp.float32)
    w2p = jnp.zeros((H, out_pad), jnp.float32).at[:, :n_out].set(
        params["fc2_w"].T)
    prep["fc2_wp"] = w2p.astype(decoder_weight_dtype)                 # (H, 128)
    prep["fc2_bp"] = jnp.zeros((1, out_pad), jnp.float32).at[0, :n_out].set(
        params["fc2_b"])
    return prep


# ----------------------------------------------------------------------------
# Full forward pass
# ----------------------------------------------------------------------------
def sfs_cnn_forward(x_nchw, prep, *, n_out=60):
    # Internal activation layout is (C, N, H, W): channels on sublanes,
    # flattened batch/spatial on the lane axis inside the conv kernels.
    x = jnp.transpose(x_nchw, (1, 0, 2, 3))

    # Module order: Conv -> LeakyReLU -> BatchNorm -> MaxPool (x2), then
    #               Conv -> ReLU -> BatchNorm -> MaxPool.
    x = conv_layer(x, prep["cw1"], prep["cbgb1"], "leaky_relu")
    x = maxpool2x2(x)
    x = conv_layer(x, prep["cw2"], prep["cbgb2"], "leaky_relu")
    x = maxpool2x2(x)
    x = conv_layer(x, prep["cw3"], prep["cbgb3"], "relu")
    x = maxpool2x2(x)

    # AdaptiveAvgPool2d((64, 2)) then nn.Flatten(1) in NCHW (c, h, w) order.
    P_h = _adaptive_matrix(x.shape[2], 64)
    P_w = _adaptive_matrix(x.shape[3], 2)
    feat = jnp.einsum("ah,cnhw,wb->ncab", P_h, x, P_w)   # (N, C, 64, 2)
    feat = feat.reshape(feat.shape[0], -1)

    out = decoder_call(feat, prep["fc1_wt"], prep["fc1_b"],
                       prep["fc2_wp"], prep["fc2_bp"])
    return out[:, :n_out]


# ----------------------------------------------------------------------------
# Deterministic parameter init (PyTorch-like uniform bounds)
# ----------------------------------------------------------------------------
def init_params(key, in_channel=1, flat_features=2048):
    ks = list(jax.random.split(key, 16))

    def u(k, shape, fan_in):
        bound = 1.0 / np.sqrt(fan_in)
        return jax.random.uniform(k, shape, jnp.float32, -bound, bound)

    c1, c2, c3 = 4, 8, 16
    hidden = flat_features // 2  # see TODO(synk) at top of file
    params = {
        "w1": u(ks[0], (c1, in_channel, 3, 3), in_channel * 9),
        "b1": u(ks[1], (c1,), in_channel * 9),
        "g1": jnp.ones((c1,), jnp.float32), "bb1": jnp.zeros((c1,), jnp.float32),
        "w2": u(ks[2], (c2, c1, 3, 3), c1 * 9),
        "b2": u(ks[3], (c2,), c1 * 9),
        "g2": jnp.ones((c2,), jnp.float32), "bb2": jnp.zeros((c2,), jnp.float32),
        "w3": u(ks[4], (c3, c2, 3, 3), c2 * 9),
        "b3": u(ks[5], (c3,), c2 * 9),
        "g3": jnp.ones((c3,), jnp.float32), "bb3": jnp.zeros((c3,), jnp.float32),
        "fc1_w": u(ks[6], (hidden, flat_features), flat_features),
        "fc1_b": u(ks[7], (hidden,), flat_features),
        "fc2_w": u(ks[8], (60, hidden), hidden),
        "fc2_b": u(ks[9], (60,), hidden),
    }
    return params


if __name__ == "__main__":
    # Small input consistent with the module: NCHW, in_channel=1.
    key = jax.random.PRNGKey(0)
    x = jax.random.normal(key, (2, 1, 32, 32), jnp.float32)

    # 32 -> conv 30 -> pool 15 -> conv 13 -> pool 6 -> conv 4 -> pool 2
    # -> adaptive (64, 2) -> flatten 16*64*2 = 2048
    params = init_params(jax.random.PRNGKey(1), in_channel=1, flat_features=2048)

    # One-time weight layout / dtype prep — done OUTSIDE the jitted forward so
    # no per-call transpose/pad/cast traffic remains inside the jit.
    prep = prepare_params(params, decoder_weight_dtype=jnp.bfloat16)

    fwd = jax.jit(functools.partial(sfs_cnn_forward, n_out=60))
    out = jax.block_until_ready(fwd(x, prep))
    assert out.shape == (2, 60), out.shape
    assert bool(jnp.all(jnp.isfinite(out)))
    print("KERNEL_OK")
</pallas_src>

<mosaic_0001>
module attributes {stable_mosaic.version = 11 : i64} {
  func.func @_conv_act_bn_kernel(%arg0: i32, %arg1: memref<4x9xf32, #tpu.memory_space<vmem>>, %arg2: memref<9x1800xf32, #tpu.memory_space<vmem>>, %arg3: memref<4x3xf32, #tpu.memory_space<vmem>>, %arg4: memref<4x1800xf32, #tpu.memory_space<vmem>>) attributes {dimension_semantics = [#tpu.dimension_semantics<arbitrary>], iteration_bounds = array<i64: 1>, scalar_prefetch = 0 : i64, scratch_operands = 0 : i64, tpu.core_type = #tpu.core_type<tc>, window_params = [{pipeline_mode = #tpu.pipeline_mode<synchronous>, transform_indices = @transform_0, window_bounds = array<i64: 4, 9>}, {pipeline_mode = #tpu.pipeline_mode<synchronous>, transform_indices = @transform_1, window_bounds = array<i64: 9, 1800>}, {pipeline_mode = #tpu.pipeline_mode<synchronous>, transform_indices = @transform_2, window_bounds = array<i64: 4, 3>}, {pipeline_mode = #tpu.pipeline_mode<synchronous>, transform_indices = @transform_3, window_bounds = array<i64: 4, 1800>}]} {
    %c0 = arith.constant 0 : index
    %c0_0 = arith.constant 0 : index
    %0 = vector.load %arg1[%c0, %c0_0] : memref<4x9xf32, #tpu.memory_space<vmem>>, vector<4x9xf32>
    %c0_1 = arith.constant 0 : index
    %c0_2 = arith.constant 0 : index
    %1 = vector.load %arg2[%c0_1, %c0_2] : memref<9x1800xf32, #tpu.memory_space<vmem>>, vector<9x1800xf32>
    %cst = arith.constant dense<0.000000e+00> : vector<4x1800xf32>
    %2 = tpu.matmul %0, %1, %cst {dimension_numbers = #tpu.dot_dimension_numbers<[1], [0], [0], [1], [0, 0, 1, 1], [], []>} : vector<4x9xf32>, vector<9x1800xf32>, vector<4x1800xf32> -> vector<4x1800xf32>
    %c0_3 = arith.constant 0 : index
    %c0_4 = arith.constant 0 : index
    %3 = vector.load %arg3[%c0_3, %c0_4] : memref<4x3xf32, #tpu.memory_space<vmem>>, vector<4x1xf32>
    %4 = vector.broadcast %3 : vector<4x1xf32> to vector<4x1800xf32>
    %5 = arith.addf %2, %4 : vector<4x1800xf32>
    %cst_5 = arith.constant 0.000000e+00 : f32
    %6 = vector.broadcast %cst_5 : f32 to vector<4x1800xf32>
    %7 = arith.cmpf ogt, %5, %6 : vector<4x1800xf32>
    %cst_6 = arith.constant 0.00999999977 : f32
    %8 = vector.broadcast %cst_6 : f32 to vector<4x1800xf32>
    %9 = arith.mulf %8, %5 : vector<4x1800xf32>
    %10 = arith.select %7, %5, %9 : vector<4x1800xi1>, vector<4x1800xf32>
    %cst_7 = arith.constant dense<0.000000e+00> : vector<4xf32>
    %11 = vector.multi_reduction <add>, %10, %cst_7 [1] : vector<4x1800xf32> to vector<4xf32>
    %12 = vector.shape_cast %11 : vector<4xf32> to vector<4x1xf32>
    %cst_8 = arith.constant 1.800000e+03 : f32
    %13 = vector.broadcast %cst_8 : f32 to vector<4x1xf32>
    %14 = arith.divf %12, %13 : vector<4x1xf32>
    %15 = vector.broadcast %14 : vector<4x1xf32> to vector<4x1800xf32>
    %16 = arith.subf %10, %15 : vector<4x1800xf32>
    %17 = arith.mulf %16, %16 : vector<4x1800xf32>
    %cst_9 = arith.constant dense<0.000000e+00> : vector<4xf32>
    %18 = vector.multi_reduction <add>, %17, %cst_9 [1] : vector<4x1800xf32> to vector<4xf32>
    %19 = vector.shape_cast %18 : vector<4xf32> to vector<4x1xf32>
    %cst_10 = arith.constant 1.800000e+03 : f32
    %20 = vector.broadcast %cst_10 : f32 to vector<4x1xf32>
    %21 = arith.divf %19, %20 : vector<4x1xf32>
    %22 = vector.broadcast %14 : vector<4x1xf32> to vector<4x1800xf32>
    %23 = arith.subf %10, %22 : vector<4x1800xf32>
    %cst_11 = arith.constant 9.99999974E-6 : f32
    %24 = vector.broadcast %cst_11 : f32 to vector<4x1xf32>
    %25 = arith.addf %21, %24 : vector<4x1xf32>
    %26 = math.rsqrt %25 : vector<4x1xf32>
    %27 = vector.broadcast %26 : vector<4x1xf32> to vector<4x1800xf32>
    %28 = arith.mulf %23, %27 : vector<4x1800xf32>
    %c0_12 = arith.constant 0 : index
    %c1 = arith.constant 1 : index
    %29 = vector.load %arg3[%c0_12, %c1] : memref<4x3xf32, #tpu.memory_space<vmem>>, vector<4x1xf32>
    %30 = vector.broadcast %29 : vector<4x1xf32> to vector<4x1800xf32>
    %31 = arith.mulf %28, %30 : vector<4x1800xf32>
    %c0_13 = arith.constant 0 : index
    %c2 = arith.constant 2 : index
    %32 = vector.load %arg3[%c0_13, %c2] : memref<4x3xf32, #tpu.memory_space<vmem>>, vector<4x1xf32>
    %33 = vector.broadcast %32 : vector<4x1xf32> to vector<4x1800xf32>
    %34 = arith.addf %31, %33 : vector<4x1800xf32>
    %c0_14 = arith.constant 0 : index
    %c0_15 = arith.constant 0 : index
    %35 = vector.load %arg4[%c0_14, %c0_15] : memref<4x1800xf32, #tpu.memory_space<vmem>>, vector<4x1800xf32>
    tpu.vector_store %arg4[%c0_14, %c0_15], %34 {strides = array<i32>} : memref<4x1800xf32, #tpu.memory_space<vmem>>, vector<4x1800xf32>,
    return
  }
  func.func @transform_0(%arg0: i32) -> (i32, i32) {
    %c0_i32 = arith.constant 0 : i32
    %c0_i32_0 = arith.constant 0 : i32
    %c0_i32_1 = arith.constant 0 : i32
    return %c0_i32, %c0_i32_0 : i32, i32
  }
  func.func @transform_1(%arg0: i32) -> (i32, i32) {
    %c0_i32 = arith.constant 0 : i32
    %c0_i32_0 = arith.constant 0 : i32
    %c0_i32_1 = arith.constant 0 : i32
    return %c0_i32, %c0_i32_0 : i32, i32
  }
  func.func @transform_2(%arg0: i32) -> (i32, i32) {
    %c0_i32 = arith.constant 0 : i32
    %c0_i32_0 = arith.constant 0 : i32
    %c0_i32_1 = arith.constant 0 : i32
    return %c0_i32, %c0_i32_0 : i32, i32
  }
  func.func @transform_3(%arg0: i32) -> (i32, i32) {
    %c0_i32 = arith.constant 0 : i32
    %c0_i32_0 = arith.constant 0 : i32
    %c0_i32_1 = arith.constant 0 : i32
    return %c0_i32, %c0_i32_0 : i32, i32
  }
}

module attributes {stable_mosaic.version = 11 : i64} {
  func.func @_conv_act_bn_kernel(%arg0: i32, %arg1: memref<8x36xf32, #tpu.memory_space<vmem>>, %arg2: memref<36x338xf32, #tpu.memory_space<vmem>>, %arg3: memref<8x3xf32, #tpu.memory_space<vmem>>, %arg4: memref<8x338xf32, #tpu.memory_space<vmem>>) attributes {dimension_semantics = [#tpu.dimension_semantics<arbitrary>], iteration_bounds = array<i64: 1>, scalar_prefetch = 0 : i64, scratch_operands = 0 : i64, tpu.core_type = #tpu.core_type<tc>, window_params = [{pipeline_mode = #tpu.pipeline_mode<synchronous>, transform_indices = @transform_0, window_bounds = array<i64: 8, 36>}, {pipeline_mode = #tpu.pipeline_mode<synchronous>, transform_indices = @transform_1, window_bounds = array<i64: 36, 338>}, {pipeline_mode = #tpu.pipeline_mode<synchronous>, transform_indices = @transform_2, window_bounds = array<i64: 8, 3>}, {pipeline_mode = #tpu.pipeline_mode<synchronous>, transform_indices = @transform_3, window_bounds = array<i64: 8, 338>}]} {
    %c0 = arith.constant 0 : index
    %c0_0 = arith.constant 0 : index
    %0 = vector.load %arg1[%c0, %c0_0] : memref<8x36xf32, #tpu.memory_space<vmem>>, vector<8x36xf32>
    %c0_1 = arith.constant 0 : index
    %c0_2 = arith.constant 0 : index
    %1 = vector.load %arg2[%c0_1, %c0_2] : memref<36x338xf32, #tpu.memory_space<vmem>>, vector<36x338xf32>
    %cst = arith.constant dense<0.000000e+00> : vector<8x338xf32>
    %2 = tpu.matmul %0, %1, %cst {dimension_numbers = #tpu.dot_dimension_numbers<[1], [0], [0], [1], [0, 0, 1, 1], [], []>} : vector<8x36xf32>, vector<36x338xf32>, vector<8x338xf32> -> vector<8x338xf32>
    %c0_3 = arith.constant 0 : index
    %c0_4 = arith.constant 0 : index
    %3 = vector.load %arg3[%c0_3, %c0_4] : memref<8x3xf32, #tpu.memory_space<vmem>>, vector<8x1xf32>
    %4 = vector.broadcast %3 : vector<8x1xf32> to vector<8x338xf32>
    %5 = arith.addf %2, %4 : vector<8x338xf32>
    %cst_5 = arith.constant 0.000000e+00 : f32
    %6 = vector.broadcast %cst_5 : f32 to vector<8x338xf32>
    %7 = arith.cmpf ogt, %5, %6 : vector<8x338xf32>
    %cst_6 = arith.constant 0.00999999977 : f32
    %8 = vector.broadcast %cst_6 : f32 to vector<8x338xf32>
    %9 = arith.mulf %8, %5 : vector<8x338xf32>
    %10 = arith.select %7, %5, %9 : vector<8x338xi1>, vector<8x338xf32>
    %cst_7 = arith.constant dense<0.000000e+00> : vector<8xf32>
    %11 = vector.multi_reduction <add>, %10, %cst_7 [1] : vector<8x338xf32> to vector<8xf32>
    %12 = vector.shape_cast %11 : vector<8xf32> to vector<8x1xf32>
    %cst_8 = arith.constant 3.380000e+02 : f32
    %13 = vector.broadcast %cst_8 : f32 to vector<8x1xf32>
    %14 = arith.divf %12, %13 : vector<8x1xf32>
    %15 = vector.broadcast %14 : vector<8x1xf32> to vector<8x338xf32>
    %16 = arith.subf %10, %15 : vector<8x338xf32>
    %17 = arith.mulf %16, %16 : vector<8x338xf32>
    %cst_9 = arith.constant dense<0.000000e+00> : vector<8xf32>
    %18 = vector.multi_reduction <add>, %17, %cst_9 [1] : vector<8x338xf32> to vector<8xf32>
    %19 = vector.shape_cast %18 : vector<8xf32> to vector<8x1xf32>
    %cst_10 = arith.constant 3.380000e+02 : f32
    %20 = vector.broadcast %cst_10 : f32 to vector<8x1xf32>
    %21 = arith.divf %19, %20 : vector<8x1xf32>
    %22 = vector.broadcast %14 : vector<8x1xf32> to vector<8x338xf32>
    %23 = arith.subf %10, %22 : vector<8x338xf32>
    %cst_11 = arith.constant 9.99999974E-6 : f32
    %24 = vector.broadcast %cst_11 : f32 to vector<8x1xf32>
    %25 = arith.addf %21, %24 : vector<8x1xf32>
    %26 = math.rsqrt %25 : vector<8x1xf32>
    %27 = vector.broadcast %26 : vector<8x1xf32> to vector<8x338xf32>
    %28 = arith.mulf %23, %27 : vector<8x338xf32>
    %c0_12 = arith.constant 0 : index
    %c1 = arith.constant 1 : index
    %29 = vector.load %arg3[%c0_12, %c1] : memref<8x3xf32, #tpu.memory_space<vmem>>, vector<8x1xf32>
    %30 = vector.broadcast %29 : vector<8x1xf32> to vector<8x338xf32>
    %31 = arith.mulf %28, %30 : vector<8x338xf32>
    %c0_13 = arith.constant 0 : index
    %c2 = arith.constant 2 : index
    %32 = vector.load %arg3[%c0_13, %c2] : memref<8x3xf32, #tpu.memory_space<vmem>>, vector<8x1xf32>
    %33 = vector.broadcast %32 : vector<8x1xf32> to vector<8x338xf32>
    %34 = arith.addf %31, %33 : vector<8x338xf32>
    %c0_14 = arith.constant 0 : index
    %c0_15 = arith.constant 0 : index
    %35 = vector.load %arg4[%c0_14, %c0_15] : memref<8x338xf32, #tpu.memory_space<vmem>>, vector<8x338xf32>
    tpu.vector_store %arg4[%c0_14, %c0_15], %34 {strides = array<i32>} : memref<8x338xf32, #tpu.memory_space<vmem>>, vector<8x338xf32>,
    return
  }
  func.func @transform_0(%arg0: i32) -> (i32, i32) {
    %c0_i32 = arith.constant 0 : i32
    %c0_i32_0 = arith.constant 0 : i32
    %c0_i32_1 = arith.constant 0 : i32
    return %c0_i32, %c0_i32_0 : i32, i32
  }
  func.func @transform_1(%arg0: i32) -> (i32, i32) {
    %c0_i32 = arith.constant 0 : i32
    %c0_i32_0 = arith.constant 0 : i32
    %c0_i32_1 = arith.constant 0 : i32
    return %c0_i32, %c0_i32_0 : i32, i32
  }
  func.func @transform_2(%arg0: i32) -> (i32, i32) {
    %c0_i32 = arith.constant 0 : i32
    %c0_i32_0 = arith.constant 0 : i32
    %c0_i32_1 = arith.constant 0 : i32
    return %c0_i32, %c0_i32_0 : i32, i32
  }
  func.func @transform_3(%arg0: i32) -> (i32, i32) {
    %c0_i32 = arith.constant 0 : i32
    %c0_i32_0 = arith.constant 0 : i32
    %c0_i32_1 = arith.constant 0 : i32
    return %c0_i32, %c0_i32_0 : i32, i32
  }
}

module attributes {stable_mosaic.version = 11 : i64} {
  func.func @_conv_act_bn_kernel(%arg0: i32, %arg1: memref<16x72xf32, #tpu.memory_space<vmem>>, %arg2: memref<72x32xf32, #tpu.memory_space<vmem>>, %arg3: memref<16x3xf32, #tpu.memory_space<vmem>>, %arg4: memref<16x32xf32, #tpu.memory_space<vmem>>) attributes {dimension_semantics = [#tpu.dimension_semantics<arbitrary>], iteration_bounds = array<i64: 1>, scalar_prefetch = 0 : i64, scratch_operands = 0 : i64, tpu.core_type = #tpu.core_type<tc>, window_params = [{pipeline_mode = #tpu.pipeline_mode<synchronous>, transform_indices = @transform_0, window_bounds = array<i64: 16, 72>}, {pipeline_mode = #tpu.pipeline_mode<synchronous>, transform_indices = @transform_1, window_bounds = array<i64: 72, 32>}, {pipeline_mode = #tpu.pipeline_mode<synchronous>, transform_indices = @transform_2, window_bounds = array<i64: 16, 3>}, {pipeline_mode = #tpu.pipeline_mode<synchronous>, transform_indices = @transform_3, window_bounds = array<i64: 16, 32>}]} {
    %c0 = arith.constant 0 : index
    %c0_0 = arith.constant 0 : index
    %0 = vector.load %arg1[%c0, %c0_0] : memref<16x72xf32, #tpu.memory_space<vmem>>, vector<16x72xf32>
    %c0_1 = arith.constant 0 : index
    %c0_2 = arith.constant 0 : index
    %1 = vector.load %arg2[%c0_1, %c0_2] : memref<72x32xf32, #tpu.memory_space<vmem>>, vector<72x32xf32>
    %cst = arith.constant dense<0.000000e+00> : vector<16x32xf32>
    %2 = tpu.matmul %0, %1, %cst {dimension_numbers = #tpu.dot_dimension_numbers<[1], [0], [0], [1], [0, 0, 1, 1], [], []>} : vector<16x72xf32>, vector<72x32xf32>, vector<16x32xf32> -> vector<16x32xf32>
    %c0_3 = arith.constant 0 : index
    %c0_4 = arith.constant 0 : index
    %3 = vector.load %arg3[%c0_3, %c0_4] : memref<16x3xf32, #tpu.memory_space<vmem>>, vector<16x1xf32>
    %4 = vector.broadcast %3 : vector<16x1xf32> to vector<16x32xf32>
    %5 = arith.addf %2, %4 : vector<16x32xf32>
    %cst_5 = arith.constant 0.000000e+00 : f32
    %6 = vector.broadcast %cst_5 : f32 to vector<16x32xf32>
    %7 = arith.maximumf %5, %6 : vector<16x32xf32>
    %cst_6 = arith.constant dense<0.000000e+00> : vector<16xf32>
    %8 = vector.multi_reduction <add>, %7, %cst_6 [1] : vector<16x32xf32> to vector<16xf32>
    %9 = vector.shape_cast %8 : vector<16xf32> to vector<16x1xf32>
    %cst_7 = arith.constant 3.200000e+01 : f32
    %10 = vector.broadcast %cst_7 : f32 to vector<16x1xf32>
    %11 = arith.divf %9, %10 : vector<16x1xf32>
    %12 = vector.broadcast %11 : vector<16x1xf32> to vector<16x32xf32>
    %13 = arith.subf %7, %12 : vector<16x32xf32>
    %14 = arith.mulf %13, %13 : vector<16x32xf32>
    %cst_8 = arith.constant dense<0.000000e+00> : vector<16xf32>
    %15 = vector.multi_reduction <add>, %14, %cst_8 [1] : vector<16x32xf32> to vector<16xf32>
    %16 = vector.shape_cast %15 : vector<16xf32> to vector<16x1xf32>
    %cst_9 = arith.constant 3.200000e+01 : f32
    %17 = vector.broadcast %cst_9 : f32 to vector<16x1xf32>
    %18 = arith.divf %16, %17 : vector<16x1xf32>
    %19 = vector.broadcast %11 : vector<16x1xf32> to vector<16x32xf32>
    %20 = arith.subf %7, %19 : vector<16x32xf32>
    %cst_10 = arith.constant 9.99999974E-6 : f32
    %21 = vector.broadcast %cst_10 : f32 to vector<16x1xf32>
    %22 = arith.addf %18, %21 : vector<16x1xf32>
    %23 = math.rsqrt %22 : vector<16x1xf32>
    %24 = vector.broadcast %23 : vector<16x1xf32> to vector<16x32xf32>
    %25 = arith.mulf %20, %24 : vector<16x32xf32>
    %c0_11 = arith.constant 0 : index
    %c1 = arith.constant 1 : index
    %26 = vector.load %arg3[%c0_11, %c1] : memref<16x3xf32, #tpu.memory_space<vmem>>, vector<16x1xf32>
    %27 = vector.broadcast %26 : vector<16x1xf32> to vector<16x32xf32>
    %28 = arith.mulf %25, %27 : vector<16x32xf32>
    %c0_12 = arith.constant 0 : index
    %c2 = arith.constant 2 : index
    %29 = vector.load %arg3[%c0_12, %c2] : memref<16x3xf32, #tpu.memory_space<vmem>>, vector<16x1xf32>
    %30 = vector.broadcast %29 : vector<16x1xf32> to vector<16x32xf32>
    %31 = arith.addf %28, %30 : vector<16x32xf32>
    %c0_13 = arith.constant 0 : index
    %c0_14 = arith.constant 0 : index
    %32 = vector.load %arg4[%c0_13, %c0_14] : memref<16x32xf32, #tpu.memory_space<vmem>>, vector<16x32xf32>
    tpu.vector_store %arg4[%c0_13, %c0_14], %31 {strides = array<i32>} : memref<16x32xf32, #tpu.memory_space<vmem>>, vector<16x32xf32>,
    return
  }
  func.func @transform_0(%arg0: i32) -> (i32, i32) {
    %c0_i32 = arith.constant 0 : i32
    %c0_i32_0 = arith.constant 0 : i32
    %c0_i32_1 = arith.constant 0 : i32
    return %c0_i32, %c0_i32_0 : i32, i32
  }
  func.func @transform_1(%arg0: i32) -> (i32, i32) {
    %c0_i32 = arith.constant 0 : i32
    %c0_i32_0 = arith.constant 0 : i32
    %c0_i32_1 = arith.constant 0 : i32
    return %c0_i32, %c0_i32_0 : i32, i32
  }
  func.func @transform_2(%arg0: i32) -> (i32, i32) {
    %c0_i32 = arith.constant 0 : i32
    %c0_i32_0 = arith.constant 0 : i32
    %c0_i32_1 = arith.constant 0 : i32
    return %c0_i32, %c0_i32_0 : i32, i32
  }
  func.func @transform_3(%arg0: i32) -> (i32, i32) {
    %c0_i32 = arith.constant 0 : i32
    %c0_i32_0 = arith.constant 0 : i32
    %c0_i32_1 = arith.constant 0 : i32
    return %c0_i32, %c0_i32_0 : i32, i32
  }
}

module attributes {stable_mosaic.version = 11 : i64} {
  func.func @_decoder_kernel(%arg0: i32, %arg1: memref<2x1024xf32, #tpu.memory_space<vmem>>, %arg2: memref<1024x1024xbf16, #tpu.memory_space<vmem>>, %arg3: memref<1x1024xf32, #tpu.memory_space<vmem>>, %arg4: memref<1024x128xbf16, #tpu.memory_space<vmem>>, %arg5: memref<1x128xf32, #tpu.memory_space<vmem>>, %arg6: memref<2x128xf32, #tpu.memory_space<vmem>>, %arg7: memref<2x1024xf32, #tpu.memory_space<vmem>>) attributes {dimension_semantics = [#tpu.dimension_semantics<arbitrary>], iteration_bounds = array<i64: 2>, scalar_prefetch = 0 : i64, scratch_operands = 1 : i64, tpu.core_type = #tpu.core_type<tc>, window_params = [{transform_indices = @transform_0, window_bounds = array<i64: 2, 1024>}, {transform_indices = @transform_1, window_bounds = array<i64: 1024, 1024>}, {pipeline_mode = #tpu.pipeline_mode<synchronous>, transform_indices = @transform_2, window_bounds = array<i64: 1, 1024>}, {pipeline_mode = #tpu.pipeline_mode<synchronous>, transform_indices = @transform_3, window_bounds = array<i64: 1024, 128>}, {pipeline_mode = #tpu.pipeline_mode<synchronous>, transform_indices = @transform_4, window_bounds = array<i64: 1, 128>}, {pipeline_mode = #tpu.pipeline_mode<synchronous>, transform_indices = @transform_5, window_bounds = array<i64: 2, 128>}]} {
    %c0_i32 = arith.constant 0 : i32
    %0 = arith.cmpi eq, %arg0, %c0_i32 : i32
    %1 = arith.extui %0 : i1 to i32
    %c0_i32_0 = arith.constant 0 : i32
    %2 = arith.cmpi ne, %1, %c0_i32_0 : i32
    scf.if %2 {
      %cst_9 = arith.constant 0.000000e+00 : f32
      %13 = vector.broadcast %cst_9 : f32 to vector<2x1024xf32>
      %c0_10 = arith.constant 0 : index
      %c0_11 = arith.constant 0 : index
      %14 = vector.load %arg7[%c0_10, %c0_11] : memref<2x1024xf32, #tpu.memory_space<vmem>>, vector<2x1024xf32>
      tpu.vector_store %arg7[%c0_10, %c0_11], %13 {strides = array<i32>} : memref<2x1024xf32, #tpu.memory_space<vmem>>, vector<2x1024xf32>,
    } else {
    }
    %c0 = arith.constant 0 : index
    %c0_1 = arith.constant 0 : index
    %3 = vector.load %arg7[%c0, %c0_1] : memref<2x1024xf32, #tpu.memory_space<vmem>>, vector<2x1024xf32>
    %c0_2 = arith.constant 0 : index
    %c0_3 = arith.constant 0 : index
    %4 = vector.load %arg1[%c0_2, %c0_3] : memref<2x1024xf32, #tpu.memory_space<vmem>>, vector<2x1024xf32>
    %c0_4 = arith.constant 0 : index
    %c0_5 = arith.constant 0 : index
    %5 = vector.load %arg2[%c0_4, %c0_5] : memref<1024x1024xbf16, #tpu.memory_space<vmem>>, vector<1024x1024xbf16>
    %6 = arith.extf %5 : vector<1024x1024xbf16> to vector<1024x1024xf32>
    %cst = arith.constant dense<0.000000e+00> : vector<2x1024xf32>
    %7 = tpu.matmul %4, %6, %cst {dimension_numbers = #tpu.dot_dimension_numbers<[1], [0], [0], [1], [0, 0, 1, 1], [], []>} : vector<2x1024xf32>, vector<1024x1024xf32>, vector<2x1024xf32> -> vector<2x1024xf32>
    %8 = arith.addf %3, %7 : vector<2x1024xf32>
    %c0_6 = arith.constant 0 : index
    %c0_7 = arith.constant 0 : index
    %9 = vector.load %arg7[%c0_6, %c0_7] : memref<2x1024xf32, #tpu.memory_space<vmem>>, vector<2x1024xf32>
    tpu.vector_store %arg7[%c0_6, %c0_7], %8 {strides = array<i32>} : memref<2x1024xf32, #tpu.memory_space<vmem>>, vector<2x1024xf32>,
    %c1_i32 = arith.constant 1 : i32
    %10 = arith.cmpi eq, %arg0, %c1_i32 : i32
    %11 = arith.extui %10 : i1 to i32
    %c0_i32_8 = arith.constant 0 : i32
    %12 = arith.cmpi ne, %11, %c0_i32_8 : i32
    scf.if %12 {
      %c0_9 = arith.constant 0 : index
      %c0_10 = arith.constant 0 : index
      %13 = vector.load %arg7[%c0_9, %c0_10] : memref<2x1024xf32, #tpu.memory_space<vmem>>, vector<2x1024xf32>
      %c0_11 = arith.constant 0 : index
      %c0_12 = arith.constant 0 : index
      %14 = vector.load %arg3[%c0_11, %c0_12] : memref<1x1024xf32, #tpu.memory_space<vmem>>, vector<1x1024xf32>
      %15 = vector.broadcast %14 : vector<1x1024xf32> to vector<2x1024xf32>
      %16 = arith.addf %13, %15 : vector<2x1024xf32>
      %c0_13 = arith.constant 0 : index
      %c0_14 = arith.constant 0 : index
      %17 = vector.load %arg4[%c0_13, %c0_14] : memref<1024x128xbf16, #tpu.memory_space<vmem>>, vector<1024x128xbf16>
      %18 = arith.extf %17 : vector<1024x128xbf16> to vector<1024x128xf32>
      %cst_15 = arith.constant dense<0.000000e+00> : vector<2x128xf32>
      %19 = tpu.matmul %16, %18, %cst_15 {dimension_numbers = #tpu.dot_dimension_numbers<[1], [0], [0], [1], [0, 0, 1, 1], [], []>} : vector<2x1024xf32>, vector<1024x128xf32>, vector<2x128xf32> -> vector<2x128xf32>
      %c0_16 = arith.constant 0 : index
      %c0_17 = arith.constant 0 : index
      %20 = vector.load %arg5[%c0_16, %c0_17] : memref<1x128xf32, #tpu.memory_space<vmem>>, vector<1x128xf32>
      %21 = vector.broadcast %20 : vector<1x128xf32> to vector<2x128xf32>
      %22 = arith.addf %19, %21 : vector<2x128xf32>
      %c0_18 = arith.constant 0 : index
      %c0_19 = arith.constant 0 : index
      %23 = vector.load %arg6[%c0_18, %c0_19] : memref<2x128xf32, #tpu.memory_space<vmem>>, vector<2x128xf32>
      tpu.vector_store %arg6[%c0_18, %c0_19], %22 {strides = array<i32>} : memref<2x128xf32, #tpu.memory_space<vmem>>, vector<2x128xf32>,
    } else {
    }
    return
  }
  func.func @transform_0(%arg0: i32) -> (i32, i32) {
    %c0_i32 = arith.constant 0 : i32
    %c0_i32_0 = arith.constant 0 : i32
    return %c0_i32, %arg0 : i32, i32
  }
  func.func @transform_1(%arg0: i32) -> (i32, i32) {
    %c0_i32 = arith.constant 0 : i32
    %c0_i32_0 = arith.constant 0 : i32
    return %arg0, %c0_i32 : i32, i32
  }
  func.func @transform_2(%arg0: i32) -> (i32, i32) {
    %c0_i32 = arith.constant 0 : i32
    %c0_i32_0 = arith.constant 0 : i32
    %c0_i32_1 = arith.constant 0 : i32
    return %c0_i32, %c0_i32_0 : i32, i32
  }
  func.func @transform_3(%arg0: i32) -> (i32, i32) {
    %c0_i32 = arith.constant 0 : i32
    %c0_i32_0 = arith.constant 0 : i32
    %c0_i32_1 = arith.constant 0 : i32
    return %c0_i32, %c0_i32_0 : i32, i32
  }
  func.func @transform_4(%arg0: i32) -> (i32, i32) {
    %c0_i32 = arith.constant 0 : i32
    %c0_i32_0 = arith.constant 0 : i32
    %c0_i32_1 = arith.constant 0 : i32
    return %c0_i32, %c0_i32_0 : i32, i32
  }
  func.func @transform_5(%arg0: i32) -> (i32, i32) {
    %c0_i32 = arith.constant 0 : i32
    %c0_i32_0 = arith.constant 0 : i32
    %c0_i32_1 = arith.constant 0 : i32
    return %c0_i32, %c0_i32_0 : i32, i32
  }
}

</mosaic_0001>

<llo_original>
// kernel: sfs_cnn_forward.4
$region0: #{sfs_cnn_forward.4}
  #allocation0 [shape = 'u32[]', space=smem, size = 0x4, offset = 0x4, fixed_abs, tag = 'smem constant byte address 0x4 - core index']
  #allocation1 [shape = 'u32[144,128]{1,0:T(1,128)}', space=vmem, size = 0x12000, scoped, tag = 'internal scratch']
  %s0 = inlined_call_operand.hbm [shape: f32[4,9], index: 0, kind: input, shape index: {}]
  %s1 = inlined_call_operand.vmem [shape: f32[9,1800], index: 1, kind: input, shape index: {}]
  %s2 = inlined_call_operand.hbm [shape: f32[4,3], index: 2, kind: input, shape index: {}]
  %s3 = inlined_call_operand.vmem [shape: f32[4,1800], index: 3, kind: output, shape index: {}]
  %s4 = sld [smem:[#allocation0]]
  $region30: #{sfs_cnn_forward.4} parent=0
    _
  %s6 = ssub.s32 1, %s4
  %s7 = scalar_select 0, %s6, %s4
  $region1: #{sfs_cnn_forward.4} parent=0
    #allocation2 [shape = 'u8[2048]{0}', space=vmem, size = 0x800, scoped, tag = 'input window, operand 0, single buffered']
    #allocation3 [shape = 's32[1]{0}', space=sflag, size = 0x4, scoped, tag = 'scoped memory for sfs_cnn_forward.4']
    #allocation4 [shape = 'u8[2048]{0}', space=vmem, size = 0x800, scoped, tag = 'input window, operand 2, single buffered']
    #allocation5 [shape = 's32[1]{0}', space=sflag, size = 0x4, scoped, tag = 'scoped memory for sfs_cnn_forward.4']
    %8 = vsyncpa [#allocation3], 0
    %9 = vsyncpa [#allocation5], 0
    // Predicated region
    $region2: #{sfs_cnn_forward.4} parent=1 // pred_check
      _
    $region3: #{sfs_cnn_forward.4} parent=1 // pred_check_branch
      %11 = sbr.rel (0) target = $region5
    $region4: #{sfs_cnn_forward.4} parent=1 // pred_region
      %s13 = ssub.s32 64, 64
      %14 = vsyncadd [#allocation3], %s13
      %s16 = sshll.u32 [#allocation2], 4
      %s17 = int_to_ptr.vmem [resolvable:$true] %s16
      %19 = dma.hbm_to_vmem [thread:$0]  %s0, 64, %s17, [#allocation3]
    $region5: #{sfs_cnn_forward.4} parent=1 // pred_fallthru
      _
    // Predicated region
    $region6: #{sfs_cnn_forward.4} parent=1 // pred_check
      _
    $region7: #{sfs_cnn_forward.4} parent=1 // pred_check_branch
      %21 = sbr.rel (0) target = $region9
    $region8: #{sfs_cnn_forward.4} parent=1 // pred_region
      _
    $region9: #{sfs_cnn_forward.4} parent=1 // pred_fallthru
      _
    // Predicated region
    $region10: #{sfs_cnn_forward.4} parent=1 // pred_check
      _
    $region11: #{sfs_cnn_forward.4} parent=1 // pred_check_branch
      %23 = sbr.rel (0) target = $region13
    $region12: #{sfs_cnn_forward.4} parent=1 // pred_region
      %s25 = ssub.s32 64, 64
      %26 = vsyncadd [#allocation5], %s25
      %s28 = sshll.u32 [#allocation4], 4
      %s29 = int_to_ptr.vmem [resolvable:$true] %s28
      %31 = dma.hbm_to_vmem [thread:$0]  %s2, 64, %s29, [#allocation5]
    $region13: #{sfs_cnn_forward.4} parent=1 // pred_fallthru
      _
    // Predicated region
    $region14: #{sfs_cnn_forward.4} parent=1 // pred_check
      _
    $region15: #{sfs_cnn_forward.4} parent=1 // pred_check_branch
      %33 = sbr.rel (0) target = $region17
    $region16: #{sfs_cnn_forward.4} parent=1 // pred_region
      %34 = dma.done [#allocation3], 64
    $region17: #{sfs_cnn_forward.4} parent=1 // pred_fallthru
      _
    // Predicated region
    $region18: #{sfs_cnn_forward.4} parent=1 // pred_check
      _
    $region19: #{sfs_cnn_forward.4} parent=1 // pred_check_branch
      %36 = sbr.rel (0) target = $region21
    $region20: #{sfs_cnn_forward.4} parent=1 // pred_region
      %37 = dma.done [#allocation5], 64
    $region21: #{sfs_cnn_forward.4} parent=1 // pred_fallthru
      _
    %v38 = vld [vmem:[#allocation2] sm:$0xf]
    %v39 = vld [vmem:[%s1] sm:$0xff]
    %v40 = vld [vmem:[%s1 + $0x8] sm:$0xff]
    %v41 = vld [vmem:[%s1 + $0x10] sm:$0xff]
    %v42 = vld [vmem:[%s1 + $0x18] sm:$0xff]
    %v43 = vld [vmem:[%s1 + $0x20] sm:$0xff]
    %v44 = vld [vmem:[%s1 + $0x28] sm:$0xff]
    %v45 = vld [vmem:[%s1 + $0x30] sm:$0xff]
    %v46 = vld [vmem:[%s1 + $0x38] sm:$0xff]
    %v47 = vld [vmem:[%s1 + $0x40] sm:$0xff]
    %v48 = vld [vmem:[%s1 + $0x48] sm:$0xff]
    %v49 = vld [vmem:[%s1 + $0x50] sm:$0xff]
    %v50 = vld [vmem:[%s1 + $0x58] sm:$0xff]
    %v51 = vld [vmem:[%s1 + $0x60] sm:$0xff]
    %v52 = vld [vmem:[%s1 + $0x68] sm:$0xff]
    %v53 = vld [vmem:[%s1 + $0x70] sm:$0xff]
    %v54 = vld [vmem:[%s1 + $0x78] sm:$0x1]
    %v55 = vld [vmem:[%s1 + $0x80] sm:$0x1]
    %v56 = vld [vmem:[%s1 + $0x88] sm:$0x1]
    %v57 = vld [vmem:[%s1 + $0x90] sm:$0x1]
    %v58 = vld [vmem:[%s1 + $0x98] sm:$0x1]
    %v59 = vld [vmem:[%s1 + $0xa0] sm:$0x1]
    %v60 = vld [vmem:[%s1 + $0xa8] sm:$0x1]
    %v61 = vld [vmem:[%s1 + $0xb0] sm:$0x1]
    %v62 = vld [vmem:[%s1 + $0xb8] sm:$0x1]
    %v63 = vld [vmem:[%s1 + $0xc0] sm:$0x1]
    %v64 = vld [vmem:[%s1 + $0xc8] sm:$0x1]
    %v65 = vld [vmem:[%s1 + $0xd0] sm:$0x1]
    %v66 = vld [vmem:[%s1 + $0xd8] sm:$0x1]
    %v67 = vld [vmem:[%s1 + $0xe0] sm:$0x1]
    %v68 = vld [vmem:[%s1 + $0xe8] sm:$0x1]
    %v69 = vld [vmem:[#allocation4] sm:$0xf]
    %71 = vset.pattern.permute.xlu0 0
    %72 = vperm.xlu0 %71, %v69
    %v73 = vpop.permute.xlu0 %72
    %vm75 = vcmask 72704
    %v77 = vsel %vm75, %v38, 0
    %vm79 = vcmask 1040384
    %v81 = vsel %vm79, %v54, 0
    %v84 = vsel %vm79, %v55, 0
    %v87 = vsel %vm79, %v56, 0
    %v90 = vsel %vm79, %v57, 0
    %v93 = vsel %vm79, %v58, 0
    %v96 = vsel %vm79, %v59, 0
    %v99 = vsel %vm79, %v60, 0
    %v102 = vsel %vm79, %v61, 0
    %v105 = vsel %vm79, %v62, 0
    %v108 = vsel %vm79, %v63, 0
    %v111 = vsel %vm79, %v64, 0
    %v114 = vsel %vm79, %v65, 0
    %v117 = vsel %vm79, %v66, 0
    %v120 = vsel %vm79, %v67, 0
    %v123 = vsel %vm79, %v68, 0
    %125 = vmatprep.subr.mxu0 0.0
    %126 = vmatpush1.msra.mxu0 0.0
    %127 = vmatprep.subr.mxu0 0.0
    %128 = vmatpush1.msra.mxu0 0.0
    %129 = vmatprep.subr.mxu0 0.0
    %130 = vmatpush1.msra.mxu0 0.0
    %131 = vmatprep.subr.mxu0 0.0
    %132 = vmatpush1.msra.mxu0 0.0
    %133 = vmatprep.subr.mxu0 0.0
    %134 = vmatpush1.msra.mxu0 0.0
    %135 = vmatprep.subr.mxu0 0.0
    %136 = vmatpush1.msra.mxu0 0.0
    %137 = vmatprep.subr.mxu0 0.0
    %138 = vmatpush1.msra.mxu0 0.0
    %139 = vmatprep.subr.mxu0 0.0
    %140 = vmatpush1.msra.mxu0 0.0
    %141 = vmatprep.subr.mxu0 0.0
    %142 = vmatpush1.msra.mxu0 0.0
    %143 = vmatprep.subr.mxu0 0.0
    %144 = vmatpush1.msra.mxu0 0.0
    %145 = vmatprep.subr.mxu0 0.0
    %146 = vmatpush1.msra.mxu0 0.0
    %147 = vmatprep.subr.mxu0 0.0
    %148 = vmatpush1.msra.mxu0 0.0
    %149 = vmatprep.subr.mxu0 0.0
    %150 = vmatpush1.msra.mxu0 0.0
    %151 = vmatprep.subr.mxu0 0.0
    %152 = vmatpush1.msra.mxu0 0.0
    %153 = vmatprep.subr.mxu0 %v84
    %154 = vmatpush1.msra.mxu0 %v81
    %155 = vmatprep.subr.mxu0 %v40
    %156 = vmatpush1.msra.mxu0 %v39
    %157 = vmatprep.subr.mxu0 0.0
    %158 = vmatpush2.msra.mxu0 0.0
    %159 = vmatprep.subr.mxu0 0.0
    %160 = vmatpush2.msra.mxu0 0.0
    %161 = vmatprep.subr.mxu0 0.0
    %162 = vmatpush2.msra.mxu0 0.0
    %163 = vmatprep.subr.mxu0 0.0
    %164 = vmatpush2.msra.mxu0 0.0
    %165 = vmatprep.subr.mxu0 0.0
    %166 = vmatpush2.msra.mxu0 0.0
    %167 = vmatprep.subr.mxu0 0.0
    %168 = vmatpush2.msra.mxu0 0.0
    %169 = vmatprep.subr.mxu0 0.0
    %170 = vmatpush2.msra.mxu0 0.0
    %171 = vmatprep.subr.mxu0 0.0
    %172 = vmatpush2.msra.mxu0 0.0
    %173 = vmatprep.subr.mxu0 0.0
    %174 = vmatpush2.msra.mxu0 0.0
    %175 = vmatprep.subr.mxu0 0.0
    %176 = vmatpush2.msra.mxu0 0.0
    %177 = vmatprep.subr.mxu0 0.0
    %178 = vmatpush2.msra.mxu0 0.0
    %179 = vmatprep.subr.mxu0 0.0
    %180 = vmatpush2.msra.mxu0 0.0
    %181 = vmatprep.subr.mxu0 0.0
    %182 = vmatpush2.msra.mxu0 0.0
    %183 = vmatprep.subr.mxu0 0.0
    %184 = vmatpush2.msra.mxu0 0.0
    %185 = vmatprep.subr.mxu0 0.0
    %186 = vmatpush2.msra.mxu0 0.0
    %187 = vmatprep.subr.mxu0 0.0
    %188 = vmatpush2.msra.mxu0 0.0
    %189 = vmatprep.mubr.f32.mxu0 0.0
    %190 = vmatmul.mubr.f32.gmra.mxu0 %v77
    %v191 = vpop.f32.mrf.mxu0
    %v192 = vadd.f32 %v73, %v191
    %v193 = vpop.f32.mrf.mxu0
    %v194 = vadd.f32 %v73, %v193
    %195 = vdwg.mxu0
    %196 = vmatprep.subr.mxu0 0.0
    %197 = vmatpush1.msra.mxu0 0.0
    %198 = vmatprep.subr.mxu0 0.0
    %199 = vmatpush1.msra.mxu0 0.0
    %200 = vmatprep.subr.mxu0 0.0
    %201 = vmatpush1.msra.mxu0 0.0
    %202 = vmatprep.subr.mxu0 0.0
    %203 = vmatpush1.msra.mxu0 0.0
    %204 = vmatprep.subr.mxu0 0.0
    %205 = vmatpush1.msra.mxu0 0.0
    %206 = vmatprep.subr.mxu0 0.0
    %207 = vmatpush1.msra.mxu0 0.0
    %208 = vmatprep.subr.mxu0 0.0
    %209 = vmatpush1.msra.mxu0 0.0
    %210 = vmatprep.subr.mxu0 0.0
    %211 = vmatpush1.msra.mxu0 0.0
    %212 = vmatprep.subr.mxu0 0.0
    %213 = vmatpush1.msra.mxu0 0.0
    %214 = vmatprep.subr.mxu0 0.0
    %215 = vmatpush1.msra.mxu0 0.0
    %216 = vmatprep.subr.mxu0 0.0
    %217 = vmatpush1.msra.mxu0 0.0
    %218 = vmatprep.subr.mxu0 0.0
    %219 = vmatpush1.msra.mxu0 0.0
    %220 = vmatprep.subr.mxu0 0.0
    %221 = vmatpush1.msra.mxu0 0.0
    %222 = vmatprep.subr.mxu0 0.0
    %223 = vmatpush1.msra.mxu0 0.0
    %224 = vmatprep.subr.mxu0 %v90
    %225 = vmatpush1.msra.mxu0 %v87
    %226 = vmatprep.subr.mxu0 %v42
    %227 = vmatpush1.msra.mxu0 %v41
    %228 = vmatprep.subr.mxu0 0.0
    %229 = vmatpush2.msra.mxu0 0.0
    %230 = vmatprep.subr.mxu0 0.0
    %231 = vmatpush2.msra.mxu0 0.0
    %232 = vmatprep.subr.mxu0 0.0
    %233 = vmatpush2.msra.mxu0 0.0
    %234 = vmatprep.subr.mxu0 0.0
    %235 = vmatpush2.msra.mxu0 0.0
    %236 = vmatprep.subr.mxu0 0.0
    %237 = vmatpush2.msra.mxu0 0.0
    %238 = vmatprep.subr.mxu0 0.0
    %239 = vmatpush2.msra.mxu0 0.0
    %240 = vmatprep.subr.mxu0 0.0
    %241 = vmatpush2.msra.mxu0 0.0
    %242 = vmatprep.subr.mxu0 0.0
    %243 = vmatpush2.msra.mxu0 0.0
    %244 = vmatprep.subr.mxu0 0.0
    %245 = vmatpush2.msra.mxu0 0.0
    %246 = vmatprep.subr.mxu0 0.0
    %247 = vmatpush2.msra.mxu0 0.0
    %248 = vmatprep.subr.mxu0 0.0
    %249 = vmatpush2.msra.mxu0 0.0
    %250 = vmatprep.subr.mxu0 0.0
    %251 = vmatpush2.msra.mxu0 0.0
    %252 = vmatprep.subr.mxu0 0.0
    %253 = vmatpush2.msra.mxu0 0.0
    %254 = vmatprep.subr.mxu0 0.0
    %255 = vmatpush2.msra.mxu0 0.0
    %256 = vmatprep.subr.mxu0 0.0
    %257 = vmatpush2.msra.mxu0 0.0
    %258 = vmatprep.subr.mxu0 0.0
    %259 = vmatpush2.msra.mxu0 0.0
    %260 = vmatprep.mubr.f32.mxu0 0.0
    %261 = vmatmul.mubr.f32.gmra.mxu0 %v77
    %v262 = vpop.f32.mrf.mxu0
    %v263 = vadd.f32 %v73, %v262
    %v264 = vpop.f32.mrf.mxu0
    %v265 = vadd.f32 %v73, %v264
    %266 = vdwg.mxu0
    %267 = vmatprep.subr.mxu0 0.0
    %268 = vmatpush1.msra.mxu0 0.0
    %269 = vmatprep.subr.mxu0 0.0
    %270 = vmatpush1.msra.mxu0 0.0
    %271 = vmatprep.subr.mxu0 0.0
    %272 = vmatpush1.msra.mxu0 0.0
    %273 = vmatprep.subr.mxu0 0.0
    %274 = vmatpush1.msra.mxu0 0.0
    %275 = vmatprep.subr.mxu0 0.0
    %276 = vmatpush1.msra.mxu0 0.0
    %277 = vmatprep.subr.mxu0 0.0
    %278 = vmatpush1.msra.mxu0 0.0
    %279 = vmatprep.subr.mxu0 0.0
    %280 = vmatpush1.msra.mxu0 0.0
    %281 = vmatprep.subr.mxu0 0.0
    %282 = vmatpush1.msra.mxu0 0.0
    %283 = vmatprep.subr.mxu0 0.0
    %284 = vmatpush1.msra.mxu0 0.0
    %285 = vmatprep.subr.mxu0 0.0
    %286 = vmatpush1.msra.mxu0 0.0
    %287 = vmatprep.subr.mxu0 0.0
    %288 = vmatpush1.msra.mxu0 0.0
    %289 = vmatprep.subr.mxu0 0.0
    %290 = vmatpush1.msra.mxu0 0.0
    %291 = vmatprep.subr.mxu0 0.0
    %292 = vmatpush1.msra.mxu0 0.0
    %293 = vmatprep.subr.mxu0 0.0
    %294 = vmatpush1.msra.mxu0 0.0
    %295 = vmatprep.subr.mxu0 %v96
    %296 = vmatpush1.msra.mxu0 %v93
    %297 = vmatprep.subr.mxu0 %v44
    %298 = vmatpush1.msra.mxu0 %v43
    %299 = vmatprep.subr.mxu0 0.0
    %300 = vmatpush2.msra.mxu0 0.0
    %301 = vmatprep.subr.mxu0 0.0
    %302 = vmatpush2.msra.mxu0 0.0
    %303 = vmatprep.subr.mxu0 0.0
    %304 = vmatpush2.msra.mxu0 0.0
    %305 = vmatprep.subr.mxu0 0.0
    %306 = vmatpush2.msra.mxu0 0.0
    %307 = vmatprep.subr.mxu0 0.0
    %308 = vmatpush2.msra.mxu0 0.0
    %309 = vmatprep.subr.mxu0 0.0
    %310 = vmatpush2.msra.mxu0 0.0
    %311 = vmatprep.subr.mxu0 0.0
    %312 = vmatpush2.msra.mxu0 0.0
    %313 = vmatprep.subr.mxu0 0.0
    %314 = vmatpush2.msra.mxu0 0.0
    %315 = vmatprep.subr.mxu0 0.0
    %316 = vmatpush2.msra.mxu0 0.0
    %317 = vmatprep.subr.mxu0 0.0
    %318 = vmatpush2.msra.mxu0 0.0
    %319 = vmatprep.subr.mxu0 0.0
    %320 = vmatpush2.msra.mxu0 0.0
    %321 = vmatprep.subr.mxu0 0.0
    %322 = vmatpush2.msra.mxu0 0.0
    %323 = vmatprep.subr.mxu0 0.0
    %324 = vmatpush2.msra.mxu0 0.0
    %325 = vmatprep.subr.mxu0 0.0
    %326 = vmatpush2.msra.mxu0 0.0
    %327 = vmatprep.subr.mxu0 0.0
    %328 = vmatpush2.msra.mxu0 0.0
    %329 = vmatprep.subr.mxu0 0.0
    %330 = vmatpush2.msra.mxu0 0.0
    %331 = vmatprep.mubr.f32.mxu0 0.0
    %332 = vmatmul.mubr.f32.gmra.mxu0 %v77
    %v333 = vpop.f32.mrf.mxu0
    %v334 = vadd.f32 %v73, %v333
    %v335 = vpop.f32.mrf.mxu0
    %v336 = vadd.f32 %v73, %v335
    %337 = vdwg.mxu0
    %338 = vmatprep.subr.mxu0 0.0
    %339 = vmatpush1.msra.mxu0 0.0
    %340 = vmatprep.subr.mxu0 0.0
    %341 = vmatpush1.msra.mxu0 0.0
    %342 = vmatprep.subr.mxu0 0.0
    %343 = vmatpush1.msra.mxu0 0.0
    %344 = vmatprep.subr.mxu0 0.0
    %345 = vmatpush1.msra.mxu0 0.0
    %346 = vmatprep.subr.mxu0 0.0
    %347 = vmatpush1.msra.mxu0 0.0
    %348 = vmatprep.subr.mxu0 0.0
    %349 = vmatpush1.msra.mxu0 0.0
    %350 = vmatprep.subr.mxu0 0.0
    %351 = vmatpush1.msra.mxu0 0.0
    %352 = vmatprep.subr.mxu0 0.0
    %353 = vmatpush1.msra.mxu0 0.0
    %354 = vmatprep.subr.mxu0 0.0
    %355 = vmatpush1.msra.mxu0 0.0
    %356 = vmatprep.subr.mxu0 0.0
    %357 = vmatpush1.msra.mxu0 0.0
    %358 = vmatprep.subr.mxu0 0.0
    %359 = vmatpush1.msra.mxu0 0.0
    %360 = vmatprep.subr.mxu0 0.0
    %361 = vmatpush1.msra.mxu0 0.0
    %362 = vmatprep.subr.mxu0 0.0
    %363 = vmatpush1.msra.mxu0 0.0
    %364 = vmatprep.subr.mxu0 0.0
    %365 = vmatpush1.msra.mxu0 0.0
    %366 = vmatprep.subr.mxu0 %v102
    %367 = vmatpush1.msra.mxu0 %v99
    %368 = vmatprep.subr.mxu0 %v46
    %369 = vmatpush1.msra.mxu0 %v45
    %370 = vmatprep.subr.mxu0 0.0
    %371 = vmatpush2.msra.mxu0 0.0
    %372 = vmatprep.subr.mxu0 0.0
    %373 = vmatpush2.msra.mxu0 0.0
    %374 = vmatprep.subr.mxu0 0.0
    %375 = vmatpush2.msra.mxu0 0.0
    %376 = vmatprep.subr.mxu0 0.0
    %377 = vmatpush2.msra.mxu0 0.0
    %378 = vmatprep.subr.mxu0 0.0
    %379 = vmatpush2.msra.mxu0 0.0
    %380 = vmatprep.subr.mxu0 0.0
    %381 = vmatpush2.msra.mxu0 0.0
    %382 = vmatprep.subr.mxu0 0.0
    %383 = vmatpush2.msra.mxu0 0.0
    %384 = vmatprep.subr.mxu0 0.0
    %385 = vmatpush2.msra.mxu0 0.0
    %386 = vmatprep.subr.mxu0 0.0
    %387 = vmatpush2.msra.mxu0 0.0
    %388 = vmatprep.subr.mxu0 0.0
    %389 = vmatpush2.msra.mxu0 0.0
    %390 = vmatprep.subr.mxu0 0.0
    %391 = vmatpush2.msra.mxu0 0.0
    %392 = vmatprep.subr.mxu0 0.0
    %393 = vmatpush2.msra.mxu0 0.0
    %394 = vmatprep.subr.mxu0 0.0
    %395 = vmatpush2.msra.mxu0 0.0
    %396 = vmatprep.subr.mxu0 0.0
    %397 = vmatpush2.msra.mxu0 0.0
    %398 = vmatprep.subr.mxu0 0.0
    %399 = vmatpush2.msra.mxu0 0.0
    %400 = vmatprep.subr.mxu0 0.0
    %401 = vmatpush2.msra.mxu0 0.0
    %402 = vmatprep.mubr.f32.mxu0 0.0
    %403 = vmatmul.mubr.f32.gmra.mxu0 %v77
    %v404 = vpop.f32.mrf.mxu0
    %v405 = vadd.f32 %v73, %v404
    %v406 = vpop.f32.mrf.mxu0
    %v407 = vadd.f32 %v73, %v406
    %408 = vdwg.mxu0
    %409 = vmatprep.subr.mxu0 0.0
    %410 = vmatpush1.msra.mxu0 0.0
    %411 = vmatprep.subr.mxu0 0.0
    %412 = vmatpush1.msra.mxu0 0.0
    %413 = vmatprep.subr.mxu0 0.0
    %414 = vmatpush1.msra.mxu0 0.0
    %415 = vmatprep.subr.mxu0 0.0
    %416 = vmatpush1.msra.mxu0 0.0
    %417 = vmatprep.subr.mxu0 0.0
    %418 = vmatpush1.msra.mxu0 0.0
    %419 = vmatprep.subr.mxu0 0.0
    %420 = vmatpush1.msra.mxu0 0.0
    %421 = vmatprep.subr.mxu0 0.0
    %422 = vmatpush1.msra.mxu0 0.0
    %423 = vmatprep.subr.mxu0 0.0
    %424 = vmatpush1.msra.mxu0 0.0
    %425 = vmatprep.subr.mxu0 0.0
    %426 = vmatpush1.msra.mxu0 0.0
    %427 = vmatprep.subr.mxu0 0.0
    %428 = vmatpush1.msra.mxu0 0.0
    %429 = vmatprep.subr.mxu0 0.0
    %430 = vmatpush1.msra.mxu0 0.0
    %431 = vmatprep.subr.mxu0 0.0
    %432 = vmatpush1.msra.mxu0 0.0
    %433 = vmatprep.subr.mxu0 0.0
    %434 = vmatpush1.msra.mxu0 0.0
    %435 = vmatprep.subr.mxu0 0.0
    %436 = vmatpush1.msra.mxu0 0.0
    %437 = vmatprep.subr.mxu0 %v108
    %438 = vmatpush1.msra.mxu0 %v105
    %439 = vmatprep.subr.mxu0 %v48
    %440 = vmatpush1.msra.mxu0 %v47
    %441 = vmatprep.subr.mxu0 0.0
    %442 = vmatpush2.msra.mxu0 0.0
    %443 = vmatprep.subr.mxu0 0.0
    %444 = vmatpush2.msra.mxu0 0.0
    %445 = vmatprep.subr.mxu0 0.0
    %446 = vmatpush2.msra.mxu0 0.0
    %447 = vmatprep.subr.mxu0 0.0
    %448 = vmatpush2.msra.mxu0 0.0
    %449 = vmatprep.subr.mxu0 0.0
    %450 = vmatpush2.msra.mxu0 0.0
    %451 = vmatprep.subr.mxu0 0.0
    %452 = vmatpush2.msra.mxu0 0.0
    %453 = vmatprep.subr.mxu0 0.0
    %454 = vmatpush2.msra.mxu0 0.0
    %455 = vmatprep.subr.mxu0 0.0
    %456 = vmatpush2.msra.mxu0 0.0
    %457 = vmatprep.subr.mxu0 0.0
    %458 = vmatpush2.msra.mxu0 0.0
    %459 = vmatprep.subr.mxu0 0.0
    %460 = vmatpush2.msra.mxu0 0.0
    %461 = vmatprep.subr.mxu0 0.0
    %462 = vmatpush2.msra.mxu0 0.0
    %463 = vmatprep.subr.mxu0 0.0
    %464 = vmatpush2.msra.mxu0 0.0
    %465 = vmatprep.subr.mxu0 0.0
    %466 = vmatpush2.msra.mxu0 0.0
    %467 = vmatprep.subr.mxu0 0.0
    %468 = vmatpush2.msra.mxu0 0.0
    %469 = vmatprep.subr.mxu0 0.0
    %470 = vmatpush2.msra.mxu0 0.0
    %471 = vmatprep.subr.mxu0 0.0
    %472 = vmatpush2.msra.mxu0 0.0
    %473 = vmatprep.mubr.f32.mxu0 0.0
    %474 = vmatmul.mubr.f32.gmra.mxu0 %v77
    %v475 = vpop.f32.mrf.mxu0
    %v476 = vadd.f32 %v73, %v475
    %v477 = vpop.f32.mrf.mxu0
    %v478 = vadd.f32 %v73, %v477
    %479 = vdwg.mxu0
    %480 = vmatprep.subr.mxu0 0.0
    %481 = vmatpush1.msra.mxu0 0.0
    %482 = vmatprep.subr.mxu0 0.0
    %483 = vmatpush1.msra.mxu0 0.0
    %484 = vmatprep.subr.mxu0 0.0
    %485 = vmatpush1.msra.mxu0 0.0
    %486 = vmatprep.subr.mxu0 0.0
    %487 = vmatpush1.msra.mxu0 0.0
    %488 = vmatprep.subr.mxu0 0.0
    %489 = vmatpush1.msra.mxu0 0.0
    %490 = vmatprep.subr.mxu0 0.0
    %491 = vmatpush1.msra.mxu0 0.0
    %492 = vmatprep.subr.mxu0 0.0
    %493 = vmatpush1.msra.mxu0 0.0
    %494 = vmatprep.subr.mxu0 0.0
    %495 = vmatpush1.msra.mxu0 0.0
    %496 = vmatprep.subr.mxu0 0.0
    %497 = vmatpush1.msra.mxu0 0.0
    %498 = vmatprep.subr.mxu0 0.0
    %499 = vmatpush1.msra.mxu0 0.0
    %500 = vmatprep.subr.mxu0 0.0
    %501 = vmatpush1.msra.mxu0 0.0
    %502 = vmatprep.subr.mxu0 0.0
    %503 = vmatpush1.msra.mxu0 0.0
    %504 = vmatprep.subr.mxu0 0.0
    %505 = vmatpush1.msra.mxu0 0.0
    %506 = vmatprep.subr.mxu0 0.0
    %507 = vmatpush1.msra.mxu0 0.0
    %508 = vmatprep.subr.mxu0 %v114
    %509 = vmatpush1.msra.mxu0 %v111
    %510 = vmatprep.subr.mxu0 %v50
    %511 = vmatpush1.msra.mxu0 %v49
    %512 = vmatprep.subr.mxu0 0.0
    %513 = vmatpush2.msra.mxu0 0.0
    %514 = vmatprep.subr.mxu0 0.0
    %515 = vmatpush2.msra.mxu0 0.0
    %516 = vmatprep.subr.mxu0 0.0
    %517 = vmatpush2.msra.mxu0 0.0
    %518 = vmatprep.subr.mxu0 0.0
    %519 = vmatpush2.msra.mxu0 0.0
    %520 = vmatprep.subr.mxu0 0.0
    %521 = vmatpush2.msra.mxu0 0.0
    %522 = vmatprep.subr.mxu0 0.0
    %523 = vmatpush2.msra.mxu0 0.0
    %524 = vmatprep.subr.mxu0 0.0
    %525 = vmatpush2.msra.mxu0 0.0
    %526 = vmatprep.subr.mxu0 0.0
    %527 = vmatpush2.msra.mxu0 0.0
    %528 = vmatprep.subr.mxu0 0.0
    %529 = vmatpush2.msra.mxu0 0.0
    %530 = vmatprep.subr.mxu0 0.0
    %531 = vmatpush2.msra.mxu0 0.0
    %532 = vmatprep.subr.mxu0 0.0
    %533 = vmatpush2.msra.mxu0 0.0
    %534 = vmatprep.subr.mxu0 0.0
    %535 = vmatpush2.msra.mxu0 0.0
    %536 = vmatprep.subr.mxu0 0.0
    %537 = vmatpush2.msra.mxu0 0.0
    %538 = vmatprep.subr.mxu0 0.0
    %539 = vmatpush2.msra.mxu0 0.0
    %540 = vmatprep.subr.mxu0 0.0
    %541 = vmatpush2.msra.mxu0 0.0
    %542 = vmatprep.subr.mxu0 0.0
    %543 = vmatpush2.msra.mxu0 0.0
    %544 = vmatprep.mubr.f32.mxu0 0.0
    %545 = vmatmul.mubr.f32.gmra.mxu0 %v77
    %v546 = vpop.f32.mrf.mxu0
    %v547 = vadd.f32 %v73, %v546
    %v548 = vpop.f32.mrf.mxu0
    %v549 = vadd.f32 %v73, %v548
    %550 = vdwg.mxu0
    %551 = vmatprep.subr.mxu0 0.0
    %552 = vmatpush1.msra.mxu0 0.0
    %553 = vmatprep.subr.mxu0 0.0
    %554 = vmatpush1.msra.mxu0 0.0
    %555 = vmatprep.subr.mxu0 0.0
    %556 = vmatpush1.msra.mxu0 0.0
    %557 = vmatprep.subr.mxu0 0.0
    %558 = vmatpush1.msra.mxu0 0.0
    %559 = vmatprep.subr.mxu0 0.0
    %560 = vmatpush1.msra.mxu0 0.0
    %561 = vmatprep.subr.mxu0 0.0
    %562 = vmatpush1.msra.mxu0 0.0
    %563 = vmatprep.subr.mxu0 0.0
    %564 = vmatpush1.msra.mxu0 0.0
    %565 = vmatprep.subr.mxu0 0.0
    %566 = vmatpush1.msra.mxu0 0.0
    %567 = vmatprep.subr.mxu0 0.0
    %568 = vmatpush1.msra.mxu0 0.0
    %569 = vmatprep.subr.mxu0 0.0
    %570 = vmatpush1.msra.mxu0 0.0
    %571 = vmatprep.subr.mxu0 0.0
    %572 = vmatpush1.msra.mxu0 0.0
    %573 = vmatprep.subr.mxu0 0.0
    %574 = vmatpush1.msra.mxu0 0.0
    %575 = vmatprep.subr.mxu0 0.0
    %576 = vmatpush1.msra.mxu0 0.0
    %577 = vmatprep.subr.mxu0 0.0
    %578 = vmatpush1.msra.mxu0 0.0
    %579 = vmatprep.subr.mxu0 %v120
    %580 = vmatpush1.msra.mxu0 %v117
    %581 = vmatprep.subr.mxu0 %v52
    %582 = vmatpush1.msra.mxu0 %v51
    %583 = vmatprep.subr.mxu0 0.0
    %584 = vmatpush2.msra.mxu0 0.0
    %585 = vmatprep.subr.mxu0 0.0
    %586 = vmatpush2.msra.mxu0 0.0
    %587 = vmatprep.subr.mxu0 0.0
    %588 = vmatpush2.msra.mxu0 0.0
    %589 = vmatprep.subr.mxu0 0.0
    %590 = vmatpush2.msra.mxu0 0.0
    %591 = vmatprep.subr.mxu0 0.0
    %592 = vmatpush2.msra.mxu0 0.0
    %593 = vmatprep.subr.mxu0 0.0
    %594 = vmatpush2.msra.mxu0 0.0
    %595 = vmatprep.subr.mxu0 0.0
    %596 = vmatpush2.msra.mxu0 0.0
    %597 = vmatprep.subr.mxu0 0.0
    %598 = vmatpush2.msra.mxu0 0.0
    %599 = vmatprep.subr.mxu0 0.0
    %600 = vmatpush2.msra.mxu0 0.0
    %601 = vmatprep.subr.mxu0 0.0
    %602 = vmatpush2.msra.mxu0 0.0
    %603 = vmatprep.subr.mxu0 0.0
    %604 = vmatpush2.msra.mxu0 0.0
    %605 = vmatprep.subr.mxu0 0.0
    %606 = vmatpush2.msra.mxu0 0.0
    %607 = vmatprep.subr.mxu0 0.0
    %608 = vmatpush2.msra.mxu0 0.0
    %609 = vmatprep.subr.mxu0 0.0
    %610 = vmatpush2.msra.mxu0 0.0
    %611 = vmatprep.subr.mxu0 0.0
    %612 = vmatpush2.msra.mxu0 0.0
    %613 = vmatprep.subr.mxu0 0.0
    %614 = vmatpush2.msra.mxu0 0.0
    %615 = vmatprep.mubr.f32.mxu0 0.0
    %616 = vmatmul.mubr.f32.gmra.mxu0 %v77
    %v617 = vpop.f32.mrf.mxu0
    %v618 = vadd.f32 %v73, %v617
    %v619 = vpop.f32.mrf.mxu0
    %v620 = vadd.f32 %v73, %v619
    %621 = vdwg.mxu0
    %622 = vmatprep.subr.mxu0 0.0
    %623 = vmatpush1.msra.mxu0 0.0
    %624 = vmatprep.subr.mxu0 0.0
    %625 = vmatpush1.msra.mxu0 0.0
    %626 = vmatprep.subr.mxu0 0.0
    %627 = vmatpush1.msra.mxu0 0.0
    %628 = vmatprep.subr.mxu0 0.0
    %629 = vmatpush1.msra.mxu0 0.0
    %630 = vmatprep.subr.mxu0 0.0
    %631 = vmatpush1.msra.mxu0 0.0
    %632 = vmatprep.subr.mxu0 0.0
    %633 = vmatpush1.msra.mxu0 0.0
    %634 = vmatprep.subr.mxu0 0.0
    %635 = vmatpush1.msra.mxu0 0.0
    %636 = vmatprep.subr.mxu0 0.0
    %637 = vmatpush1.msra.mxu0 0.0
    %638 = vmatprep.subr.mxu0 0.0
    %639 = vmatpush1.msra.mxu0 0.0
    %640 = vmatprep.subr.mxu0 0.0
    %641 = vmatpush1.msra.mxu0 0.0
    %642 = vmatprep.subr.mxu0 0.0
    %643 = vmatpush1.msra.mxu0 0.0
    %644 = vmatprep.subr.mxu0 0.0
    %645 = vmatpush1.msra.mxu0 0.0
    %646 = vmatprep.subr.mxu0 0.0
    %647 = vmatpush1.msra.mxu0 0.0
    %648 = vmatprep.subr.mxu0 0.0
    %649 = vmatpush1.msra.mxu0 0.0
    %650 = vmatprep.subr.mxu0 0.0
    %651 = vmatpush1.msra.mxu0 %v123
    %652 = vmatprep.subr.mxu0 0.0
    %653 = vmatpush1.msra.mxu0 %v53
    %654 = vmatprep.subr.mxu0 0.0
    %655 = vmatpush2.msra.mxu0 0.0
    %656 = vmatprep.subr.mxu0 0.0
    %657 = vmatpush2.msra.mxu0 0.0
    %658 = vmatprep.subr.mxu0 0.0
    %659 = vmatpush2.msra.mxu0 0.0
    %660 = vmatprep.subr.mxu0 0.0
    %661 = vmatpush2.msra.mxu0 0.0
    %662 = vmatprep.subr.mxu0 0.0
    %663 = vmatpush2.msra.mxu0 0.0
    %664 = vmatprep.subr.mxu0 0.0
    %665 = vmatpush2.msra.mxu0 0.0
    %666 = vmatprep.subr.mxu0 0.0
    %667 = vmatpush2.msra.mxu0 0.0
    %668 = vmatprep.subr.mxu0 0.0
    %669 = vmatpush2.msra.mxu0 0.0
    %670 = vmatprep.subr.mxu0 0.0
    %671 = vmatpush2.msra.mxu0 0.0
    %672 = vmatprep.subr.mxu0 0.0
    %673 = vmatpush2.msra.mxu0 0.0
    %674 = vmatprep.subr.mxu0 0.0
    %675 = vmatpush2.msra.mxu0 0.0
    %676 = vmatprep.subr.mxu0 0.0
    %677 = vmatpush2.msra.mxu0 0.0
    %678 = vmatprep.subr.mxu0 0.0
    %679 = vmatpush2.msra.mxu0 0.0
    %680 = vmatprep.subr.mxu0 0.0
    %681 = vmatpush2.msra.mxu0 0.0
    %682 = vmatprep.subr.mxu0 0.0
    %683 = vmatpush2.msra.mxu0 0.0
    %684 = vmatprep.subr.mxu0 0.0
    %685 = vmatpush2.msra.mxu0 0.0
    %686 = vmatprep.mubr.f32.mxu0 0.0
    %687 = vmatmul.mubr.f32.gmra.mxu0 %v77
    %v688 = vpop.f32.mrf.mxu0
    %v689 = vadd.f32 %v73, %v688
    %v690 = vpop.f32.mrf.mxu0
    %691 = vdwg.mxu0
    %vm692 = vcmp.gt.f32.partialorder %v192, 0.0
    %vm693 = vcmp.gt.f32.partialorder %v194, 0.0
    %vm694 = vcmp.gt.f32.partialorder %v263, 0.0
    %vm695 = vcmp.gt.f32.partialorder %v265, 0.0
    %vm696 = vcmp.gt.f32.partialorder %v334, 0.0
    %vm697 = vcmp.gt.f32.partialorder %v336, 0.0
    %vm698 = vcmp.gt.f32.partialorder %v405, 0.0
    %vm699 = vcmp.gt.f32.partialorder %v407, 0.0
    %vm700 = vcmp.gt.f32.partialorder %v476, 0.0
    %vm701 = vcmp.gt.f32.partialorder %v478, 0.0
    %vm702 = vcmp.gt.f32.partialorder %v547, 0.0
    %vm703 = vcmp.gt.f32.partialorder %v549, 0.0
    %vm704 = vcmp.gt.f32.partialorder %v618, 0.0
    %vm705 = vcmp.gt.f32.partialorder %v620, 0.0
    %vm706 = vcmp.gt.f32.partialorder %v689, 0.0
    %v707 = vmul.f32 %v192, 0.01
    %v708 = vmul.f32 %v194, 0.01
    %v709 = vmul.f32 %v263, 0.01
    %v710 = vmul.f32 %v265, 0.01
    %v711 = vmul.f32 %v334, 0.01
    %v712 = vmul.f32 %v336, 0.01
    %v713 = vmul.f32 %v405, 0.01
    %v714 = vmul.f32 %v407, 0.01
    %v715 = vmul.f32 %v476, 0.01
    %v716 = vmul.f32 %v478, 0.01
    %v717 = vmul.f32 %v547, 0.01
    %v718 = vmul.f32 %v549, 0.01
    %v719 = vmul.f32 %v618, 0.01
    %v720 = vmul.f32 %v620, 0.01
    %v721 = vmul.f32 %v689, 0.01
    %v722 = vsel %vm692, %v192, %v707
    %v723 = vsel %vm693, %v194, %v708
    %v724 = vsel %vm694, %v263, %v709
    %v725 = vsel %vm695, %v265, %v710
    %v726 = vsel %vm696, %v334, %v711
    %v727 = vsel %vm697, %v336, %v712
    %v728 = vsel %vm698, %v405, %v713
    %v729 = vsel %vm699, %v407, %v714
    %v730 = vsel %vm700, %v476, %v715
    %v731 = vsel %vm701, %v478, %v716
    %v732 = vsel %vm702, %v547, %v717
    %v733 = vsel %vm703, %v549, %v718
    %v734 = vsel %vm704, %v618, %v719
    %v735 = vsel %vm705, %v620, %v720
    %v736 = vsel %vm706, %v689, %v721
    %vm737 = vcmask 1043456
    %v738 = vsel %vm737, %v722, 0.0
    %v739 = vsel %vm737, %v723, 0.0
    %v740 = vadd.f32 %v738, %v739
    %v741 = vsel %vm737, %v724, 0.0
    %v742 = vadd.f32 %v740, %v741
    %v743 = vsel %vm737, %v725, 0.0
    %v744 = vadd.f32 %v742, %v743
    %v745 = vsel %vm737, %v726, 0.0
    %v746 = vadd.f32 %v744, %v745
    %v747 = vsel %vm737, %v727, 0.0
    %v748 = vadd.f32 %v746, %v747
    %v749 = vsel %vm737, %v728, 0.0
    %v750 = vadd.f32 %v748, %v749
    %v751 = vsel %vm737, %v729, 0.0
    %v752 = vadd.f32 %v750, %v751
    %v753 = vsel %vm737, %v730, 0.0
    %v754 = vadd.f32 %v752, %v753
    %v755 = vsel %vm737, %v731, 0.0
    %v756 = vadd.f32 %v754, %v755
    %v757 = vsel %vm737, %v732, 0.0
    %v758 = vadd.f32 %v756, %v757
    %v759 = vsel %vm737, %v733, 0.0
    %v760 = vadd.f32 %v758, %v759
    %v761 = vsel %vm737, %v734, 0.0
    %v762 = vadd.f32 %v760, %v761
    %v763 = vsel %vm737, %v735, 0.0
    %v764 = vadd.f32 %v762, %v763
    %vm765 = vcmask 60416
    %v766 = vsel %vm765, %v736, 0.0
    %v767 = vadd.f32 %v764, %v766
    %768 = vadd.xlane.f32.xlu0 %v767
    %v769 = vpop.xlane.xlu0 %768
    %v770 = vrcp.pop 1800.0
    %v771 = vmul.f32 %v769, %v770
    %v772 = vsub.f32 %v722, %v771
    %v773 = vsub.f32 %v723, %v771
    %v774 = vsub.f32 %v724, %v771
    %v775 = vsub.f32 %v725, %v771
    %v776 = vsub.f32 %v726, %v771
    %v777 = vsub.f32 %v727, %v771
    %v778 = vsub.f32 %v728, %v771
    %v779 = vsub.f32 %v729, %v771
    %v780 = vsub.f32 %v730, %v771
    %v781 = vsub.f32 %v731, %v771
    %v782 = vsub.f32 %v732, %v771
    %v783 = vsub.f32 %v733, %v771
    %v784 = vsub.f32 %v734, %v771
    %v785 = vsub.f32 %v735, %v771
    %v786 = vsub.f32 %v736, %v771
    %v787 = vmul.f32 %v772, %v772
    %v788 = vmul.f32 %v773, %v773
    %v789 = vmul.f32 %v774, %v774
    %v790 = vmul.f32 %v775, %v775
    %v791 = vmul.f32 %v776, %v776
    %v792 = vmul.f32 %v777, %v777
    %v793 = vmul.f32 %v778, %v778
    %v794 = vmul.f32 %v779, %v779
    %v795 = vmul.f32 %v780, %v780
    %v796 = vmul.f32 %v781, %v781
    %v797 = vmul.f32 %v782, %v782
    %v798 = vmul.f32 %v783, %v783
    %v799 = vmul.f32 %v784, %v784
    %v800 = vmul.f32 %v785, %v785
    %v801 = vmul.f32 %v786, %v786
    %v802 = vsel %vm737, %v787, 0.0
    %v803 = vsel %vm737, %v788, 0.0
    %v804 = vadd.f32 %v802, %v803
    %v805 = vsel %vm737, %v789, 0.0
    %v806 = vadd.f32 %v804, %v805
    %v807 = vsel %vm737, %v790, 0.0
    %v808 = vadd.f32 %v806, %v807
    %v809 = vsel %vm737, %v791, 0.0
    %v810 = vadd.f32 %v808, %v809
    %v811 = vsel %vm737, %v792, 0.0
    %v812 = vadd.f32 %v810, %v811
    %v813 = vsel %vm737, %v793, 0.0
    %v814 = vadd.f32 %v812, %v813
    %v815 = vsel %vm737, %v794, 0.0
    %v816 = vadd.f32 %v814, %v815
    %v817 = vsel %vm737, %v795, 0.0
    %v818 = vadd.f32 %v816, %v817
    %v819 = vsel %vm737, %v796, 0.0
    %v820 = vadd.f32 %v818, %v819
    %v821 = vsel %vm737, %v797, 0.0
    %v822 = vadd.f32 %v820, %v821
    %v823 = vsel %vm737, %v798, 0.0
    %v824 = vadd.f32 %v822, %v823
    %v825 = vsel %vm737, %v799, 0.0
    %v826 = vadd.f32 %v824, %v825
    %v827 = vsel %vm737, %v800, 0.0
    %v828 = vadd.f32 %v826, %v827
    %v829 = vsel %vm765, %v801, 0.0
    %v830 = vadd.f32 %v828, %v829
    %831 = vadd.xlane.f32.xlu0 %v830
    %v832 = vpop.xlane.xlu0 %831
    %v833 = vmul.f32 %v832, %v770
    %v834 = vadd.f32 %v833, 1e-05
    %v835 = vrsqrt.pop %v834
    %v836 = vmul.f32 %v772, %v835
    %v837 = vmul.f32 %v773, %v835
    %v838 = vmul.f32 %v774, %v835
    %v839 = vmul.f32 %v775, %v835
    %v840 = vmul.f32 %v776, %v835
    %v841 = vmul.f32 %v777, %v835
    %v842 = vmul.f32 %v778, %v835
    %v843 = vmul.f32 %v779, %v835
    %v844 = vmul.f32 %v780, %v835
    %v845 = vmul.f32 %v781, %v835
    %v846 = vmul.f32 %v782, %v835
    %v847 = vmul.f32 %v783, %v835
    %v848 = vmul.f32 %v784, %v835
    %v849 = vmul.f32 %v785, %v835
    %v850 = vmul.f32 %v786, %v835
    %851 = vset.pattern.permute.xlu0 1
    %852 = vperm.xlu0 %851, %v69
    %v853 = vpop.permute.xlu0 %852
    %v855 = vmul.f32 %v836, %v853
    %v856 = vmul.f32 %v837, %v853
    %v857 = vmul.f32 %v838, %v853
    %v858 = vmul.f32 %v839, %v853
    %v859 = vmul.f32 %v840, %v853
    %v860 = vmul.f32 %v841, %v853
    %v861 = vmul.f32 %v842, %v853
    %v862 = vmul.f32 %v843, %v853
    %v863 = vmul.f32 %v844, %v853
    %v864 = vmul.f32 %v845, %v853
    %v865 = vmul.f32 %v846, %v853
    %v866 = vmul.f32 %v847, %v853
    %v867 = vmul.f32 %v848, %v853
    %v868 = vmul.f32 %v849, %v853
    %v869 = vmul.f32 %v850, %v853
    %870 = vset.pattern.permute.xlu0 2
    %871 = vperm.xlu0 %870, %v69
    %v872 = vpop.permute.xlu0 %871
    %v874 = vadd.f32 %v855, %v872
    %v875 = vadd.f32 %v856, %v872
    %v876 = vadd.f32 %v857, %v872
    %v877 = vadd.f32 %v858, %v872
    %v878 = vadd.f32 %v859, %v872
    %v879 = vadd.f32 %v860, %v872
    %v880 = vadd.f32 %v861, %v872
    %v881 = vadd.f32 %v862, %v872
    %v882 = vadd.f32 %v863, %v872
    %v883 = vadd.f32 %v864, %v872
    %v884 = vadd.f32 %v865, %v872
    %v885 = vadd.f32 %v866, %v872
    %v886 = vadd.f32 %v867, %v872
    %v887 = vadd.f32 %v868, %v872
    %v888 = vadd.f32 %v869, %v872
    %v903 = vcombine.low %v874, %v875
    %v904 = vcombine.low %v876, %v877
    %v905 = vcombine.low %v878, %v879
    %v906 = vcombine.low %v880, %v881
    %v907 = vcombine.low %v882, %v883
    %v908 = vcombine.low %v884, %v885
    %v909 = vcombine.low %v886, %v887
    %917 = vst [vmem:[%s3] sm:$0xff] %v903
    %918 = vst [vmem:[%s3 + $0x8] sm:$0xff] %v904
    %919 = vst [vmem:[%s3 + $0x10] sm:$0xff] %v905
    %920 = vst [vmem:[%s3 + $0x18] sm:$0xff] %v906
    %921 = vst [vmem:[%s3 + $0x20] sm:$0xff] %v907
    %922 = vst [vmem:[%s3 + $0x28] sm:$0xff] %v908
    %923 = vst [vmem:[%s3 + $0x30] sm:$0xff] %v909
    %924 = vst.msk [vmem:[%s3 + $0x38] sm:$0xf] %vm765, %v888
    // Predicated region
    $region22: #{sfs_cnn_forward.4} parent=1 // pred_check
      _
    $region23: #{sfs_cnn_forward.4} parent=1 // pred_check_branch
      %926 = sbr.rel (0) target = $region25
    $region24: #{sfs_cnn_forward.4} parent=1 // pred_region
      _
    $region25: #{sfs_cnn_forward.4} parent=1 // pred_fallthru
      _
    // Predicated region
    $region26: #{sfs_cnn_forward.4} parent=1 // pred_check
      _
    $region27: #{sfs_cnn_forward.4} parent=1 // pred_check_branch
      %928 = sbr.rel (0) target = $region29
    $region28: #{sfs_cnn_forward.4} parent=1 // pred_region
      _
    $region29: #{sfs_cnn_forward.4} parent=1 // pred_fallthru
      _
    %929 = vsyncpa [#allocation3], 1
    %930 = vsyncpa [#allocation5], 1

// kernel: sfs_cnn_forward.5
$region0: #{sfs_cnn_forward.5}
  #allocation0 [shape = 'u32[]', space=smem, size = 0x4, offset = 0x4, fixed_abs, tag = 'smem constant byte address 0x4 - core index']
  #allocation1 [shape = 'u32[144,128]{1,0:T(1,128)}', space=vmem, size = 0x12000, scoped, tag = 'internal scratch']
  %s0 = inlined_call_operand.vmem [shape: f32[8,36], index: 0, kind: input, shape index: {}]
  %s1 = inlined_call_operand.vmem [shape: f32[36,338], index: 1, kind: input, shape index: {}]
  %s2 = inlined_call_operand.vmem [shape: f32[8,3], index: 2, kind: input, shape index: {}]
  %s3 = inlined_call_operand.vmem [shape: f32[8,338], index: 3, kind: output, shape index: {}]
  %s4 = sld [smem:[#allocation0]]
  $region22: #{sfs_cnn_forward.5} parent=0
    _
  %s6 = ssub.s32 1, %s4
  %s7 = scalar_select 0, %s6, %s4
  // Predicated region
  $region2: #{sfs_cnn_forward.5} parent=0 // pred_check
    _
  $region3: #{sfs_cnn_forward.5} parent=0 // pred_check_branch
    %9 = sbr.rel (0) target = $region5
  $region4: #{sfs_cnn_forward.5} parent=0 // pred_region
    _
  $region5: #{sfs_cnn_forward.5} parent=0 // pred_fallthru
    _
  // Predicated region
  $region6: #{sfs_cnn_forward.5} parent=0 // pred_check
    _
  $region7: #{sfs_cnn_forward.5} parent=0 // pred_check_branch
    %11 = sbr.rel (0) target = $region9
  $region8: #{sfs_cnn_forward.5} parent=0 // pred_region
    _
  $region9: #{sfs_cnn_forward.5} parent=0 // pred_fallthru
    _
  // Predicated region
  $region10: #{sfs_cnn_forward.5} parent=0 // pred_check
    _
  $region11: #{sfs_cnn_forward.5} parent=0 // pred_check_branch
    %13 = sbr.rel (0) target = $region13
  $region12: #{sfs_cnn_forward.5} parent=0 // pred_region
    _
  $region13: #{sfs_cnn_forward.5} parent=0 // pred_fallthru
    _
  %v14 = vld [vmem:[%s0] sm:$0xff]
  %v15 = vld [vmem:[%s1] sm:$0xff]
  %v16 = vld [vmem:[%s1 + $0x8] sm:$0xff]
  %v17 = vld [vmem:[%s1 + $0x10] sm:$0xff]
  %v18 = vld [vmem:[%s1 + $0x18] sm:$0xff]
  %v19 = vld [vmem:[%s1 + $0x20] sm:$0xff]
  %v20 = vld [vmem:[%s1 + $0x28] sm:$0xff]
  %v21 = vld [vmem:[%s1 + $0x30] sm:$0xff]
  %v22 = vld [vmem:[%s1 + $0x38] sm:$0xff]
  %v23 = vld [vmem:[%s1 + $0x40] sm:$0xff]
  %v24 = vld [vmem:[%s1 + $0x48] sm:$0xff]
  %v25 = vld [vmem:[%s1 + $0x50] sm:$0xff]
  %v26 = vld [vmem:[%s1 + $0x58] sm:$0xff]
  %v27 = vld [vmem:[%s1 + $0x60] sm:$0xf]
  %v28 = vld [vmem:[%s1 + $0x68] sm:$0xf]
  %v29 = vld [vmem:[%s1 + $0x70] sm:$0xf]
  %v30 = vld [vmem:[%s2] sm:$0xff]
  %32 = vset.pattern.permute.xlu0 0
  %33 = vperm.xlu0 %32, %v30
  %v34 = vpop.permute.xlu0 %33
  %vm36 = vcmask 293888
  %v38 = vsel %vm36, %v14, 0
  %vm40 = vcmask 1043456
  %v42 = vsel %vm40, %v27, 0
  %v45 = vsel %vm40, %v28, 0
  %v48 = vsel %vm40, %v29, 0
  %50 = vmatprep.subr.mxu0 0.0
  %51 = vmatpush1.msra.mxu0 0.0
  %52 = vmatprep.subr.mxu0 0.0
  %53 = vmatpush1.msra.mxu0 0.0
  %54 = vmatprep.subr.mxu0 0.0
  %55 = vmatpush1.msra.mxu0 0.0
  %56 = vmatprep.subr.mxu0 0.0
  %57 = vmatpush1.msra.mxu0 0.0
  %58 = vmatprep.subr.mxu0 0.0
  %59 = vmatpush1.msra.mxu0 0.0
  %60 = vmatprep.subr.mxu0 0.0
  %61 = vmatpush1.msra.mxu0 0.0
  %62 = vmatprep.subr.mxu0 0.0
  %63 = vmatpush1.msra.mxu0 0.0
  %64 = vmatprep.subr.mxu0 0.0
  %65 = vmatpush1.msra.mxu0 0.0
  %66 = vmatprep.subr.mxu0 0.0
  %67 = vmatpush1.msra.mxu0 0.0
  %68 = vmatprep.subr.mxu0 0.0
  %69 = vmatpush1.msra.mxu0 0.0
  %70 = vmatprep.subr.mxu0 0.0
  %71 = vmatpush1.msra.mxu0 0.0
  %72 = vmatprep.subr.mxu0 %v45
  %73 = vmatpush1.msra.mxu0 %v42
  %74 = vmatprep.subr.mxu0 %v25
  %75 = vmatpush1.msra.mxu0 %v24
  %76 = vmatprep.subr.mxu0 %v22
  %77 = vmatpush1.msra.mxu0 %v21
  %78 = vmatprep.subr.mxu0 %v19
  %79 = vmatpush1.msra.mxu0 %v18
  %80 = vmatprep.subr.mxu0 %v16
  %81 = vmatpush1.msra.mxu0 %v15
  %82 = vmatprep.subr.mxu0 0.0
  %83 = vmatpush2.msra.mxu0 0.0
  %84 = vmatprep.subr.mxu0 0.0
  %85 = vmatpush2.msra.mxu0 0.0
  %86 = vmatprep.subr.mxu0 0.0
  %87 = vmatpush2.msra.mxu0 0.0
  %88 = vmatprep.subr.mxu0 0.0
  %89 = vmatpush2.msra.mxu0 0.0
  %90 = vmatprep.subr.mxu0 0.0
  %91 = vmatpush2.msra.mxu0 0.0
  %92 = vmatprep.subr.mxu0 0.0
  %93 = vmatpush2.msra.mxu0 0.0
  %94 = vmatprep.subr.mxu0 0.0
  %95 = vmatpush2.msra.mxu0 0.0
  %96 = vmatprep.subr.mxu0 0.0
  %97 = vmatpush2.msra.mxu0 0.0
  %98 = vmatprep.subr.mxu0 0.0
  %99 = vmatpush2.msra.mxu0 0.0
  %100 = vmatprep.subr.mxu0 0.0
  %101 = vmatpush2.msra.mxu0 0.0
  %102 = vmatprep.subr.mxu0 0.0
  %103 = vmatpush2.msra.mxu0 0.0
  %104 = vmatprep.subr.mxu0 0.0
  %105 = vmatpush2.msra.mxu0 0.0
  %106 = vmatprep.subr.mxu0 0.0
  %107 = vmatpush2.msra.mxu0 0.0
  %108 = vmatprep.subr.mxu0 0.0
  %109 = vmatpush2.msra.mxu0 0.0
  %110 = vmatprep.subr.mxu0 0.0
  %111 = vmatpush2.msra.mxu0 0.0
  %112 = vmatprep.subr.mxu0 0.0
  %113 = vmatpush2.msra.mxu0 0.0
  %114 = vmatprep.mubr.f32.mxu0 0.0
  %115 = vmatmul.mubr.f32.gmra.mxu0 %v38
  %v116 = vpop.f32.mrf.mxu0
  %v117 = vadd.f32 %v34, %v116
  %v118 = vpop.f32.mrf.mxu0
  %v119 = vadd.f32 %v34, %v118
  %120 = vdwg.mxu0
  %121 = vmatprep.subr.mxu0 0.0
  %122 = vmatpush1.msra.mxu0 0.0
  %123 = vmatprep.subr.mxu0 0.0
  %124 = vmatpush1.msra.mxu0 0.0
  %125 = vmatprep.subr.mxu0 0.0
  %126 = vmatpush1.msra.mxu0 0.0
  %127 = vmatprep.subr.mxu0 0.0
  %128 = vmatpush1.msra.mxu0 0.0
  %129 = vmatprep.subr.mxu0 0.0
  %130 = vmatpush1.msra.mxu0 0.0
  %131 = vmatprep.subr.mxu0 0.0
  %132 = vmatpush1.msra.mxu0 0.0
  %133 = vmatprep.subr.mxu0 0.0
  %134 = vmatpush1.msra.mxu0 0.0
  %135 = vmatprep.subr.mxu0 0.0
  %136 = vmatpush1.msra.mxu0 0.0
  %137 = vmatprep.subr.mxu0 0.0
  %138 = vmatpush1.msra.mxu0 0.0
  %139 = vmatprep.subr.mxu0 0.0
  %140 = vmatpush1.msra.mxu0 0.0
  %141 = vmatprep.subr.mxu0 0.0
  %142 = vmatpush1.msra.mxu0 0.0
  %143 = vmatprep.subr.mxu0 0.0
  %144 = vmatpush1.msra.mxu0 %v48
  %145 = vmatprep.subr.mxu0 0.0
  %146 = vmatpush1.msra.mxu0 %v26
  %147 = vmatprep.subr.mxu0 0.0
  %148 = vmatpush1.msra.mxu0 %v23
  %149 = vmatprep.subr.mxu0 0.0
  %150 = vmatpush1.msra.mxu0 %v20
  %151 = vmatprep.subr.mxu0 0.0
  %152 = vmatpush1.msra.mxu0 %v17
  %153 = vmatprep.subr.mxu0 0.0
  %154 = vmatpush2.msra.mxu0 0.0
  %155 = vmatprep.subr.mxu0 0.0
  %156 = vmatpush2.msra.mxu0 0.0
  %157 = vmatprep.subr.mxu0 0.0
  %158 = vmatpush2.msra.mxu0 0.0
  %159 = vmatprep.subr.mxu0 0.0
  %160 = vmatpush2.msra.mxu0 0.0
  %161 = vmatprep.subr.mxu0 0.0
  %162 = vmatpush2.msra.mxu0 0.0
  %163 = vmatprep.subr.mxu0 0.0
  %164 = vmatpush2.msra.mxu0 0.0
  %165 = vmatprep.subr.mxu0 0.0
  %166 = vmatpush2.msra.mxu0 0.0
  %167 = vmatprep.subr.mxu0 0.0
  %168 = vmatpush2.msra.mxu0 0.0
  %169 = vmatprep.subr.mxu0 0.0
  %170 = vmatpush2.msra.mxu0 0.0
  %171 = vmatprep.subr.mxu0 0.0
  %172 = vmatpush2.msra.mxu0 0.0
  %173 = vmatprep.subr.mxu0 0.0
  %174 = vmatpush2.msra.mxu0 0.0
  %175 = vmatprep.subr.mxu0 0.0
  %176 = vmatpush2.msra.mxu0 0.0
  %177 = vmatprep.subr.mxu0 0.0
  %178 = vmatpush2.msra.mxu0 0.0
  %179 = vmatprep.subr.mxu0 0.0
  %180 = vmatpush2.msra.mxu0 0.0
  %181 = vmatprep.subr.mxu0 0.0
  %182 = vmatpush2.msra.mxu0 0.0
  %183 = vmatprep.subr.mxu0 0.0
  %184 = vmatpush2.msra.mxu0 0.0
  %185 = vmatprep.mubr.f32.mxu0 0.0
  %186 = vmatmul.mubr.f32.gmra.mxu0 %v38
  %v187 = vpop.f32.mrf.mxu0
  %v188 = vadd.f32 %v34, %v187
  %v189 = vpop.f32.mrf.mxu0
  %190 = vdwg.mxu0
  %vm191 = vcmp.gt.f32.partialorder %v117, 0.0
  %vm192 = vcmp.gt.f32.partialorder %v119, 0.0
  %vm193 = vcmp.gt.f32.partialorder %v188, 0.0
  %v194 = vmul.f32 %v117, 0.01
  %v195 = vmul.f32 %v119, 0.01
  %v196 = vmul.f32 %v188, 0.01
  %v197 = vsel %vm191, %v117, %v194
  %v198 = vsel %vm192, %v119, %v195
  %v199 = vsel %vm193, %v188, %v196
  %v200 = vadd.f32 %v197, %v198
  %vm201 = vcmask 670720
  %v202 = vsel %vm201, %v199, 0.0
  %v203 = vadd.f32 %v200, %v202
  %204 = vadd.xlane.f32.xlu0 %v203
  %v205 = vpop.xlane.xlu0 %204
  %v206 = vrcp.pop 338.0
  %v207 = vmul.f32 %v205, %v206
  %v208 = vsub.f32 %v197, %v207
  %v209 = vsub.f32 %v198, %v207
  %v210 = vsub.f32 %v199, %v207
  %v211 = vmul.f32 %v208, %v208
  %v212 = vmul.f32 %v209, %v209
  %v213 = vmul.f32 %v210, %v210
  %v214 = vadd.f32 %v211, %v212
  %v215 = vsel %vm201, %v213, 0.0
  %v216 = vadd.f32 %v214, %v215
  %217 = vadd.xlane.f32.xlu0 %v216
  %v218 = vpop.xlane.xlu0 %217
  %v219 = vmul.f32 %v218, %v206
  %v220 = vadd.f32 %v219, 1e-05
  %v221 = vrsqrt.pop %v220
  %v222 = vmul.f32 %v208, %v221
  %v223 = vmul.f32 %v209, %v221
  %v224 = vmul.f32 %v210, %v221
  %225 = vset.pattern.permute.xlu0 1
  %226 = vperm.xlu0 %225, %v30
  %v227 = vpop.permute.xlu0 %226
  %v229 = vmul.f32 %v222, %v227
  %v230 = vmul.f32 %v223, %v227
  %v231 = vmul.f32 %v224, %v227
  %232 = vset.pattern.permute.xlu0 2
  %233 = vperm.xlu0 %232, %v30
  %v234 = vpop.permute.xlu0 %233
  %v236 = vadd.f32 %v229, %v234
  %v237 = vadd.f32 %v230, %v234
  %v238 = vadd.f32 %v231, %v234
  %239 = vst [vmem:[%s3] sm:$0xff] %v236
  %240 = vst [vmem:[%s3 + $0x8] sm:$0xff] %v237
  %241 = vst.msk [vmem:[%s3 + $0x10] sm:$0xff] %vm201, %v238
  // Predicated region
  $region14: #{sfs_cnn_forward.5} parent=0 // pred_check
    _
  $region15: #{sfs_cnn_forward.5} parent=0 // pred_check_branch
    %243 = sbr.rel (0) target = $region17
  $region16: #{sfs_cnn_forward.5} parent=0 // pred_region
    _
  $region17: #{sfs_cnn_forward.5} parent=0 // pred_fallthru
    _
  // Predicated region
  $region18: #{sfs_cnn_forward.5} parent=0 // pred_check
    _
  $region19: #{sfs_cnn_forward.5} parent=0 // pred_check_branch
    %245 = sbr.rel (0) target = $region21
  $region20: #{sfs_cnn_forward.5} parent=0 // pred_region
    _
  $region21: #{sfs_cnn_forward.5} parent=0 // pred_fallthru
    _

// kernel: sfs_cnn_forward.6
$region0: #{sfs_cnn_forward.6}
  #allocation0 [shape = 'u32[]', space=smem, size = 0x4, offset = 0x4, fixed_abs, tag = 'smem constant byte address 0x4 - core index']
  #allocation1 [shape = 'u32[144,128]{1,0:T(1,128)}', space=vmem, size = 0x12000, scoped, tag = 'internal scratch']
  %s0 = inlined_call_operand.vmem [shape: f32[16,72], index: 0, kind: input, shape index: {}]
  %s1 = inlined_call_operand.vmem [shape: f32[72,32], index: 1, kind: input, shape index: {}]
  %s2 = inlined_call_operand.vmem [shape: f32[16,3], index: 2, kind: input, shape index: {}]
  %s3 = inlined_call_operand.vmem [shape: f32[16,32], index: 3, kind: output, shape index: {}]
  %s4 = sld [smem:[#allocation0]]
  $region22: #{sfs_cnn_forward.6} parent=0
    _
  %s6 = ssub.s32 1, %s4
  %s7 = scalar_select 0, %s6, %s4
  // Predicated region
  $region2: #{sfs_cnn_forward.6} parent=0 // pred_check
    _
  $region3: #{sfs_cnn_forward.6} parent=0 // pred_check_branch
    %9 = sbr.rel (0) target = $region5
  $region4: #{sfs_cnn_forward.6} parent=0 // pred_region
    _
  $region5: #{sfs_cnn_forward.6} parent=0 // pred_fallthru
    _
  // Predicated region
  $region6: #{sfs_cnn_forward.6} parent=0 // pred_check
    _
  $region7: #{sfs_cnn_forward.6} parent=0 // pred_check_branch
    %11 = sbr.rel (0) target = $region9
  $region8: #{sfs_cnn_forward.6} parent=0 // pred_region
    _
  $region9: #{sfs_cnn_forward.6} parent=0 // pred_fallthru
    _
  // Predicated region
  $region10: #{sfs_cnn_forward.6} parent=0 // pred_check
    _
  $region11: #{sfs_cnn_forward.6} parent=0 // pred_check_branch
    %13 = sbr.rel (0) target = $region13
  $region12: #{sfs_cnn_forward.6} parent=0 // pred_region
    _
  $region13: #{sfs_cnn_forward.6} parent=0 // pred_fallthru
    _
  %v14 = vld [vmem:[%s0] sm:$0xff]
  %v15 = vld [vmem:[%s0 + $0x8] sm:$0xff]
  %v16 = vld [vmem:[%s1] sm:$0xff]
  %v17 = vld [vmem:[%s1 + $0x8] sm:$0xff]
  %v18 = vld [vmem:[%s1 + $0x10] sm:$0xff]
  %v19 = vld [vmem:[%s1 + $0x18] sm:$0xff]
  %v20 = vld [vmem:[%s1 + $0x20] sm:$0xff]
  %v21 = vld [vmem:[%s1 + $0x28] sm:$0xff]
  %v22 = vld [vmem:[%s1 + $0x30] sm:$0xff]
  %v23 = vld [vmem:[%s1 + $0x38] sm:$0xff]
  %v24 = vld [vmem:[%s1 + $0x40] sm:$0xff]
  %v25 = vld [vmem:[%s2] sm:$0xff]
  %v26 = vld [vmem:[%s2 + $0x8] sm:$0xff]
  %28 = vset.pattern.permute.xlu0 0
  %29 = vperm.xlu0 %28, %v25
  %v30 = vpop.permute.xlu0 %29
  %33 = vset.pattern.permute.xlu0 0
  %34 = vperm.xlu0 %33, %v26
  %v35 = vpop.permute.xlu0 %34
  %vm37 = vcmask 588800
  %v39 = vsel %vm37, %v14, 0
  %v42 = vsel %vm37, %v15, 0
  %44 = vmatprep.subr.mxu0 0.0
  %45 = vmatpush1.msra.mxu0 0.0
  %46 = vmatprep.subr.mxu0 0.0
  %47 = vmatpush1.msra.mxu0 0.0
  %48 = vmatprep.subr.mxu0 0.0
  %49 = vmatpush1.msra.mxu0 0.0
  %50 = vmatprep.subr.mxu0 0.0
  %51 = vmatpush1.msra.mxu0 0.0
  %52 = vmatprep.subr.mxu0 0.0
  %53 = vmatpush1.msra.mxu0 0.0
  %54 = vmatprep.subr.mxu0 0.0
  %55 = vmatpush1.msra.mxu0 0.0
  %56 = vmatprep.subr.mxu0 0.0
  %57 = vmatpush1.msra.mxu0 0.0
  %58 = vmatprep.subr.mxu0 0.0
  %59 = vmatpush1.msra.mxu0 %v24
  %60 = vmatprep.subr.mxu0 0.0
  %61 = vmatpush1.msra.mxu0 %v23
  %62 = vmatprep.subr.mxu0 0.0
  %63 = vmatpush1.msra.mxu0 %v22
  %64 = vmatprep.subr.mxu0 0.0
  %65 = vmatpush1.msra.mxu0 %v21
  %66 = vmatprep.subr.mxu0 0.0
  %67 = vmatpush1.msra.mxu0 %v20
  %68 = vmatprep.subr.mxu0 0.0
  %69 = vmatpush1.msra.mxu0 %v19
  %70 = vmatprep.subr.mxu0 0.0
  %71 = vmatpush1.msra.mxu0 %v18
  %72 = vmatprep.subr.mxu0 0.0
  %73 = vmatpush1.msra.mxu0 %v17
  %74 = vmatprep.subr.mxu0 0.0
  %75 = vmatpush1.msra.mxu0 %v16
  %76 = vmatprep.subr.mxu0 0.0
  %77 = vmatpush2.msra.mxu0 0.0
  %78 = vmatprep.subr.mxu0 0.0
  %79 = vmatpush2.msra.mxu0 0.0
  %80 = vmatprep.subr.mxu0 0.0
  %81 = vmatpush2.msra.mxu0 0.0
  %82 = vmatprep.subr.mxu0 0.0
  %83 = vmatpush2.msra.mxu0 0.0
  %84 = vmatprep.subr.mxu0 0.0
  %85 = vmatpush2.msra.mxu0 0.0
  %86 = vmatprep.subr.mxu0 0.0
  %87 = vmatpush2.msra.mxu0 0.0
  %88 = vmatprep.subr.mxu0 0.0
  %89 = vmatpush2.msra.mxu0 0.0
  %90 = vmatprep.subr.mxu0 0.0
  %91 = vmatpush2.msra.mxu0 0.0
  %92 = vmatprep.subr.mxu0 0.0
  %93 = vmatpush2.msra.mxu0 0.0
  %94 = vmatprep.subr.mxu0 0.0
  %95 = vmatpush2.msra.mxu0 0.0
  %96 = vmatprep.subr.mxu0 0.0
  %97 = vmatpush2.msra.mxu0 0.0
  %98 = vmatprep.subr.mxu0 0.0
  %99 = vmatpush2.msra.mxu0 0.0
  %100 = vmatprep.subr.mxu0 0.0
  %101 = vmatpush2.msra.mxu0 0.0
  %102 = vmatprep.subr.mxu0 0.0
  %103 = vmatpush2.msra.mxu0 0.0
  %104 = vmatprep.subr.mxu0 0.0
  %105 = vmatpush2.msra.mxu0 0.0
  %106 = vmatprep.subr.mxu0 0.0
  %107 = vmatpush2.msra.mxu0 0.0
  %108 = vmatprep.mubr.f32.mxu0 0.0
  %109 = vmatmul.mubr.f32.gmra.mxu0 %v39
  %v110 = vpop.f32.mrf.mxu0
  %v111 = vadd.f32 %v30, %v110
  %v112 = vpop.f32.mrf.mxu0
  %113 = vmatprep.mubr.f32.mxu0 0.0
  %114 = vmatmul.mubr.f32.gmra.mxu0 %v42
  %v115 = vpop.f32.mrf.mxu0
  %v116 = vadd.f32 %v35, %v115
  %v117 = vpop.f32.mrf.mxu0
  %118 = vdwg.mxu0
  %v119 = vmax.f32 %v111, 0.0
  %v120 = vmax.f32 %v116, 0.0
  %vm121 = vcmask 261120
  %v122 = vsel %vm121, %v119, 0.0
  %123 = vadd.xlane.f32.xlu0 %v122
  %v124 = vpop.xlane.xlu0 %123
  %v125 = vsel %vm121, %v120, 0.0
  %126 = vadd.xlane.f32.xlu0 %v125
  %v127 = vpop.xlane.xlu0 %126
  %v128 = vrcp.pop 32.0
  %v129 = vmul.f32 %v124, %v128
  %v130 = vmul.f32 %v127, %v128
  %v131 = vsub.f32 %v119, %v129
  %v132 = vsub.f32 %v120, %v130
  %v133 = vmul.f32 %v131, %v131
  %v134 = vmul.f32 %v132, %v132
  %v135 = vsel %vm121, %v133, 0.0
  %136 = vadd.xlane.f32.xlu0 %v135
  %v137 = vpop.xlane.xlu0 %136
  %v138 = vsel %vm121, %v134, 0.0
  %139 = vadd.xlane.f32.xlu0 %v138
  %v140 = vpop.xlane.xlu0 %139
  %v141 = vmul.f32 %v137, %v128
  %v142 = vmul.f32 %v140, %v128
  %v143 = vadd.f32 %v141, 1e-05
  %v144 = vadd.f32 %v142, 1e-05
  %v145 = vrsqrt.pop %v143
  %v146 = vrsqrt.pop %v144
  %v147 = vmul.f32 %v131, %v145
  %v148 = vmul.f32 %v132, %v146
  %149 = vset.pattern.permute.xlu0 1
  %150 = vperm.xlu0 %149, %v25
  %v151 = vpop.permute.xlu0 %150
  %153 = vset.pattern.permute.xlu0 1
  %154 = vperm.xlu0 %153, %v26
  %v155 = vpop.permute.xlu0 %154
  %v157 = vmul.f32 %v147, %v151
  %v158 = vmul.f32 %v148, %v155
  %159 = vset.pattern.permute.xlu0 2
  %160 = vperm.xlu0 %159, %v25
  %v161 = vpop.permute.xlu0 %160
  %163 = vset.pattern.permute.xlu0 2
  %164 = vperm.xlu0 %163, %v26
  %v165 = vpop.permute.xlu0 %164
  %v167 = vadd.f32 %v157, %v161
  %v168 = vadd.f32 %v158, %v165
  %169 = vst.msk [vmem:[%s3] sm:$0xff] %vm121, %v167
  %170 = vst.msk [vmem:[%s3 + $0x8] sm:$0xff] %vm121, %v168
  // Predicated region
  $region14: #{sfs_cnn_forward.6} parent=0 // pred_check
    _
  $region15: #{sfs_cnn_forward.6} parent=0 // pred_check_branch
    %172 = sbr.rel (0) target = $region17
  $region16: #{sfs_cnn_forward.6} parent=0 // pred_region
    _
  $region17: #{sfs_cnn_forward.6} parent=0 // pred_fallthru
    _
  // Predicated region
  $region18: #{sfs_cnn_forward.6} parent=0 // pred_check
    _
  $region19: #{sfs_cnn_forward.6} parent=0 // pred_check_branch
    %174 = sbr.rel (0) target = $region21
  $region20: #{sfs_cnn_forward.6} parent=0 // pred_region
    _
  $region21: #{sfs_cnn_forward.6} parent=0 // pred_fallthru
    _

// kernel: sfs_cnn_forward.7
$region0: #{sfs_cnn_forward.7}
  #allocation0 [shape = 'u32[]', space=smem, size = 0x4, offset = 0x4, fixed_abs, tag = 'smem constant byte address 0x4 - core index']
  #allocation1 [shape = 'u32[144,128]{1,0:T(1,128)}', space=vmem, size = 0x12000, scoped, tag = 'internal scratch']
  #allocation2 [shape = 'f32[2,1024]{1,0:T(2,128)}', space=vmem, size = 0x2000, scoped, tag = 'scratch operand']
  %s0 = inlined_call_operand.vmem [shape: f32[2,2048], index: 0, kind: input, shape index: {}]
  %s1 = inlined_call_operand.vmem [shape: bf16[2048,1024], index: 1, kind: input, shape index: {}]
  %s2 = inlined_call_operand.vmem [shape: f32[1,1024], index: 2, kind: input, shape index: {}]
  %s3 = inlined_call_operand.vmem [shape: bf16[1024,128], index: 3, kind: input, shape index: {}]
  %s4 = inlined_call_operand.vmem [shape: f32[1,128], index: 4, kind: input, shape index: {}]
  %s5 = inlined_call_operand.hbm [shape: f32[2,128], index: 5, kind: output, shape index: {}]
  %s6 = sld [smem:[#allocation0]]
  $region61: #{sfs_cnn_forward.7} parent=0
    _
  %s8 = ssub.s32 1, %s6
  %s9 = scalar_select 0, %s8, %s6
  $region1: #{sfs_cnn_forward.7} parent=0
    #allocation3 [shape = 'u8[1024]{0}', space=vmem, size = 0x400, scoped, tag = 'output window, operand 0, single buffered']
    #allocation4 [shape = 's32[2]{0}', space=sflag, size = 0x8, scoped, tag = 'scoped memory for sfs_cnn_forward.7']
    %10 = vsyncpa [#allocation4], 0
    loop: start=0, step=1, limit=4
    $region2: #{sfs_cnn_forward.7} parent=1 // loop_pre_header
      _
    $region3: #{sfs_cnn_forward.7} parent=1 // loop_header
      %s12 = sphi 0, %s16
      %p13 = scmp.ge.s32.totalorder %s12, 4
      %s22 = sphi 0, %s24
      %s25 = sphi 0, %s22
      %s26 = sphi 0, %s25
      %s42 = sphi 0, %s26
      %s48 = sphi 0, %s50
      %s51 = sphi 0, %s48
      %s52 = sphi 0, %s51
      %s68 = sphi 0, %s52
      %s72 = sphi 0, %s72
      %s74 = sphi 0, %s72
      %s75 = sphi 0, %s74
      %s89 = sphi 0, %s75
      %s93 = sphi 0, %s93
      %s95 = sphi 0, %s93
      %s96 = sphi 0, %s95
      %s110 = sphi 0, %s96
      %s114 = sphi 0, %s114
      %s116 = sphi 0, %s114
      %s117 = sphi 0, %s116
      %s131 = sphi 0, %s117
      %s135 = sphi 0, %s135
      %s137 = sphi 0, %s135
      %s138 = sphi 0, %s137
      %s152 = sphi 0, %s138
    $region4: #{sfs_cnn_forward.7} parent=1 // loop_header_branch
      %15 = sbr.rel (%p13) target = $region8
    $region5: #{sfs_cnn_forward.7} parent=1 // loop_body
      %s17 = ssub.s32 %s12, 1
      %s18 = ssub.s32 %s12, 2
      %s19 = sadd.s32 %s12, 1
      %s20 = ssub.s32 %s12, %s19
      %p21 = scmp.eq.s32.totalorder %s20, 0
      %s23 = sadd.s32 %s22, 1
      %s24 = scalar_select %p21, %s22, %s23
      %p27 = pneg %p21
      %p28 = scmp.eq.s32.totalorder %s12, 1
      %p29 = por %p27, %p28
      %p30 = scmp.ne.s32.totalorder %s22, %s25
      %p31 = scmp.eq.s32.totalorder %s12, 0
      %p32 = por %p30, %p31
      %p33 = scmp.ne.s32.totalorder %s22, %s25
      %p34 = scmp.eq.s32.totalorder %s17, 1
      %p35 = por %p33, %p34
      %p36 = scmp.ne.s32.totalorder %s25, %s26
      %p37 = scmp.eq.s32.totalorder %s17, 0
      %p38 = por %p36, %p37
      %p39 = scmp.ne.s32.totalorder %s25, %s26
      %p40 = scmp.eq.s32.totalorder %s18, 1
      %p41 = por %p39, %p40
      %p43 = scmp.ne.s32.totalorder %s26, %s42
      %p44 = scmp.eq.s32.totalorder %s18, 0
      %p45 = por %p43, %p44
      %s46 = ssub.s32 %s12, %s19
      %p47 = scmp.eq.s32.totalorder %s46, 0
      %s49 = sadd.s32 %s48, 1
      %s50 = scalar_select %p47, %s48, %s49
      %p53 = pneg %p47
      %p54 = scmp.eq.s32.totalorder %s12, 1
      %p55 = por %p53, %p54
      %p56 = scmp.ne.s32.totalorder %s48, %s51
      %p57 = scmp.eq.s32.totalorder %s12, 0
      %p58 = por %p56, %p57
      %p59 = scmp.ne.s32.totalorder %s48, %s51
      %p60 = scmp.eq.s32.totalorder %s17, 1
      %p61 = por %p59, %p60
      %p62 = scmp.ne.s32.totalorder %s51, %s52
      %p63 = scmp.eq.s32.totalorder %s17, 0
      %p64 = por %p62, %p63
      %p65 = scmp.ne.s32.totalorder %s51, %s52
      %p66 = scmp.eq.s32.totalorder %s18, 1
      %p67 = por %p65, %p66
      %p69 = scmp.ne.s32.totalorder %s52, %s68
      %p70 = scmp.eq.s32.totalorder %s18, 0
      %p71 = por %p69, %p70
      %s73 = sadd.s32 %s72, 1
      %p76 = scmp.eq.s32.totalorder %s12, 1
      %p77 = scmp.ne.s32.totalorder %s72, %s74
      %p78 = scmp.eq.s32.totalorder %s12, 0
      %p79 = por %p77, %p78
      %p80 = scmp.ne.s32.totalorder %s72, %s74
      %p81 = scmp.eq.s32.totalorder %s17, 1
      %p82 = por %p80, %p81
      %p83 = scmp.ne.s32.totalorder %s74, %s75
      %p84 = scmp.eq.s32.totalorder %s17, 0
      %p85 = por %p83, %p84
      %p86 = scmp.ne.s32.totalorder %s74, %s75
      %p87 = scmp.eq.s32.totalorder %s18, 1
      %p88 = por %p86, %p87
      %p90 = scmp.ne.s32.totalorder %s75, %s89
      %p91 = scmp.eq.s32.totalorder %s18, 0
      %p92 = por %p90, %p91
      %s94 = sadd.s32 %s93, 1
      %p97 = scmp.eq.s32.totalorder %s12, 1
      %p98 = scmp.ne.s32.totalorder %s93, %s95
      %p99 = scmp.eq.s32.totalorder %s12, 0
      %p100 = por %p98, %p99
      %p101 = scmp.ne.s32.totalorder %s93, %s95
      %p102 = scmp.eq.s32.totalorder %s17, 1
      %p103 = por %p101, %p102
      %p104 = scmp.ne.s32.totalorder %s95, %s96
      %p105 = scmp.eq.s32.totalorder %s17, 0
      %p106 = por %p104, %p105
      %p107 = scmp.ne.s32.totalorder %s95, %s96
      %p108 = scmp.eq.s32.totalorder %s18, 1
      %p109 = por %p107, %p108
      %p111 = scmp.ne.s32.totalorder %s96, %s110
      %p112 = scmp.eq.s32.totalorder %s18, 0
      %p113 = por %p111, %p112
      %s115 = sadd.s32 %s114, 1
      %p118 = scmp.eq.s32.totalorder %s12, 1
      %p119 = scmp.ne.s32.totalorder %s114, %s116
      %p120 = scmp.eq.s32.totalorder %s12, 0
      %p121 = por %p119, %p120
      %p122 = scmp.ne.s32.totalorder %s114, %s116
      %p123 = scmp.eq.s32.totalorder %s17, 1
      %p124 = por %p122, %p123
      %p125 = scmp.ne.s32.totalorder %s116, %s117
      %p126 = scmp.eq.s32.totalorder %s17, 0
      %p127 = por %p125, %p126
      %p128 = scmp.ne.s32.totalorder %s116, %s117
      %p129 = scmp.eq.s32.totalorder %s18, 1
      %p130 = por %p128, %p129
      %p132 = scmp.ne.s32.totalorder %s117, %s131
      %p133 = scmp.eq.s32.totalorder %s18, 0
      %p134 = por %p132, %p133
      %s136 = sadd.s32 %s135, 1
      %p139 = scmp.eq.s32.totalorder %s12, 1
      %p140 = scmp.ne.s32.totalorder %s135, %s137
      %p141 = scmp.eq.s32.totalorder %s12, 0
      %p142 = por %p140, %p141
      %p143 = scmp.ne.s32.totalorder %s135, %s137
      %p144 = scmp.eq.s32.totalorder %s17, 1
      %p145 = por %p143, %p144
      %p146 = scmp.ne.s32.totalorder %s137, %s138
      %p147 = scmp.eq.s32.totalorder %s17, 0
      %p148 = por %p146, %p147
      %p149 = scmp.ne.s32.totalorder %s137, %s138
      %p150 = scmp.eq.s32.totalorder %s18, 1
      %p151 = por %p149, %p150
      %p153 = scmp.ne.s32.totalorder %s138, %s152
      %p154 = scmp.eq.s32.totalorder %s18, 0
      %p155 = por %p153, %p154
      %p156 = scmp.le.s32.totalorder 1, %s12
      %p157 = scmp.lt.s32.totalorder %s12, 3
      %p158 = pnand %p156, %p157
      %p159 = pneg %p158
      // Predicated region
      $region9: #{sfs_cnn_forward.7} parent=5 // pred_check
        _
      $region10: #{sfs_cnn_forward.7} parent=5 // pred_check_branch
        %161 = sbr.rel (%p158) target = $region12
      $region11: #{sfs_cnn_forward.7} parent=5 // pred_region
        %s162 = ssub.s32 %s12, 1
        // Predicated region
        $region13: #{sfs_cnn_forward.7} parent=11 // pred_check
          %p163 = pneg %p85
        $region14: #{sfs_cnn_forward.7} parent=11 // pred_check_branch
          %165 = sbr.rel (%p163) target = $region16
        $region15: #{sfs_cnn_forward.7} parent=11 // pred_region
          _
        $region16: #{sfs_cnn_forward.7} parent=11 // pred_fallthru
          _
        // Predicated region
        $region17: #{sfs_cnn_forward.7} parent=11 // pred_check
          %p166 = pneg %p106
        $region18: #{sfs_cnn_forward.7} parent=11 // pred_check_branch
          %168 = sbr.rel (%p166) target = $region20
        $region19: #{sfs_cnn_forward.7} parent=11 // pred_region
          _
        $region20: #{sfs_cnn_forward.7} parent=11 // pred_fallthru
          _
        // Predicated region
        $region21: #{sfs_cnn_forward.7} parent=11 // pred_check
          %p169 = pneg %p127
        $region22: #{sfs_cnn_forward.7} parent=11 // pred_check_branch
          %171 = sbr.rel (%p169) target = $region24
        $region23: #{sfs_cnn_forward.7} parent=11 // pred_region
          _
        $region24: #{sfs_cnn_forward.7} parent=11 // pred_fallthru
          _
      $region12: #{sfs_cnn_forward.7} parent=5 // pred_fallthru
        _
      %p172 = scmp.lt.s32.totalorder %s12, 2
      // Predicated region
      $region25: #{sfs_cnn_forward.7} parent=5 // pred_check
        %p173 = pneg %p172
      $region26: #{sfs_cnn_forward.7} parent=5 // pred_check_branch
        %175 = sbr.rel (%p173) target = $region28
      $region27: #{sfs_cnn_forward.7} parent=5 // pred_region
        // Predicated region
        $region29: #{sfs_cnn_forward.7} parent=27 // pred_check
          %p176 = pneg %p32
        $region30: #{sfs_cnn_forward.7} parent=27 // pred_check_branch
          %178 = sbr.rel (%p176) target = $region32
        $region31: #{sfs_cnn_forward.7} parent=27 // pred_region
          %s179 = smul.u32 8, %s12
          %p180 = scmp.lt.s32.totalorder %s179, 15
          %s181 = scalar_select %p180, %s179, 15
          %s182 = smul.addr %s181, 2
          %s183 = scalar_lea.vmem %s0, %s182
          %s184 = smul.u32 8, %s12
        $region32: #{sfs_cnn_forward.7} parent=27 // pred_fallthru
          _
        // Predicated region
        $region33: #{sfs_cnn_forward.7} parent=27 // pred_check
          %p185 = pneg %p58
        $region34: #{sfs_cnn_forward.7} parent=27 // pred_check_branch
          %187 = sbr.rel (%p185) target = $region36
        $region35: #{sfs_cnn_forward.7} parent=27 // pred_region
          %s188 = smul.u32 128, %s12
          %p189 = scmp.lt.s32.totalorder %s188, 255
          %s190 = scalar_select %p189, %s188, 255
          %s191 = smul.addr %s190, 8
          %s192 = smul.addr %s191, 4
          %s193 = scalar_lea.vmem %s1, %s192
          %s194 = smul.u32 128, %s12
        $region36: #{sfs_cnn_forward.7} parent=27 // pred_fallthru
          _
      $region28: #{sfs_cnn_forward.7} parent=5 // pred_fallthru
        _
      %p195 = scmp.le.s32.totalorder 1, %s12
      %p196 = scmp.lt.s32.totalorder %s12, 3
      %p197 = pnand %p195, %p196
      %p198 = pneg %p197
      // Predicated region
      $region37: #{sfs_cnn_forward.7} parent=5 // pred_check
        _
      $region38: #{sfs_cnn_forward.7} parent=5 // pred_check_branch
        %200 = sbr.rel (%p197) target = $region40
      $region39: #{sfs_cnn_forward.7} parent=5 // pred_region
        %s201 = ssub.s32 %s12, 1
        %s202 = smul.u32 8, %s17
        %p203 = scmp.lt.s32.totalorder %s202, 15
        %s204 = scalar_select %p203, %s202, 15
        %s205 = smul.addr %s204, 2
        %s206 = scalar_lea.vmem %s0, %s205
        %p207 = pneg %p38
        %p208 = pneg %p35
        %s209 = smul.u32 128, %s17
        %p210 = scmp.lt.s32.totalorder %s209, 255
        %s211 = scalar_select %p210, %s209, 255
        %s212 = smul.addr %s211, 8
        %s213 = smul.addr %s212, 4
        %s214 = scalar_lea.vmem %s1, %s213
        %p215 = pneg %p64
        %p216 = pneg %p61
        %p217 = pneg %p85
        %p218 = pneg %p82
        %p219 = pneg %p106
        %p220 = pneg %p103
        %p221 = pneg %p127
        %p222 = pneg %p124
        %p223 = pneg %p148
        %p224 = pneg %p145
        %s225 = smul.u32 8, %s17
        %p226 = scmp.lt.s32.totalorder %s225, 15
        %s227 = scalar_select %p226, %s225, 15
        %s228 = smul.addr %s227, 2
        %s229 = scalar_lea.vmem %s0, %s228
        %s230 = smul.u32 8, %s17
        %s231 = smul.u32 128, %s17
        %p232 = scmp.lt.s32.totalorder %s231, 255
        %s233 = scalar_select %p232, %s231, 255
        %s234 = smul.addr %s233, 8
        %s235 = smul.addr %s234, 4
        %s236 = scalar_lea.vmem %s1, %s235
        %s237 = smul.u32 128, %s17
        %p238 = scmp.eq.s32.totalorder %s17, 0
        // Predicated region
        $region41: #{sfs_cnn_forward.7} parent=39 // pred_check
          %p239 = pneg %p238
        $region42: #{sfs_cnn_forward.7} parent=39 // pred_check_branch
          %241 = sbr.rel (%p239) target = $region44
        $region43: #{sfs_cnn_forward.7} parent=39 // pred_region
          %242 = vst [vmem:[#allocation2] sm:$0xff] 0.0
          %243 = vst [vmem:[#allocation2 + $0x8] sm:$0xff] 0.0
        $region44: #{sfs_cnn_forward.7} parent=39 // pred_fallthru
          _
        %v244 = vld [vmem:[#allocation2] sm:$0xff]
        %v245 = vld [vmem:[#allocation2 + $0x8] sm:$0xff]
        %v246 = vld [vmem:[%s229] sm:$0xff]
        %v247 = vld [vmem:[%s229 + $0x8] sm:$0xff]
        %v248 = vld [vmem:[%s236] sm:$0xff]
        %v249 = vld [vmem:[%s236 + $0x8] sm:$0xff]
        %v250 = vld [vmem:[%s236 + $0x10] sm:$0xff]
        %v251 = vld [vmem:[%s236 + $0x18] sm:$0xff]
        %v252 = vld [vmem:[%s236 + $0x20] sm:$0xff]
        %v253 = vld [vmem:[%s236 + $0x28] sm:$0xff]
        %v254 = vld [vmem:[%s236 + $0x30] sm:$0xff]
        %v255 = vld [vmem:[%s236 + $0x38] sm:$0xff]
        %v256 = vld [vmem:[%s236 + $0x40] sm:$0xff]
        %v257 = vld [vmem:[%s236 + $0x48] sm:$0xff]
        %v258 = vld [vmem:[%s236 + $0x50] sm:$0xff]
        %v259 = vld [vmem:[%s236 + $0x58] sm:$0xff]
        %v260 = vld [vmem:[%s236 + $0x60] sm:$0xff]
        %v261 = vld [vmem:[%s236 + $0x68] sm:$0xff]
        %v262 = vld [vmem:[%s236 + $0x70] sm:$0xff]
        %v263 = vld [vmem:[%s236 + $0x78] sm:$0xff]
        %v264 = vld [vmem:[%s236 + $0x80] sm:$0xff]
        %v265 = vld [vmem:[%s236 + $0x88] sm:$0xff]
        %v266 = vld [vmem:[%s236 + $0x90] sm:$0xff]
        %v267 = vld [vmem:[%s236 + $0x98] sm:$0xff]
        %v268 = vld [vmem:[%s236 + $0xa0] sm:$0xff]
        %v269 = vld [vmem:[%s236 + $0xa8] sm:$0xff]
        %v270 = vld [vmem:[%s236 + $0xb0] sm:$0xff]
        %v271 = vld [vmem:[%s236 + $0xb8] sm:$0xff]
        %v272 = vld [vmem:[%s236 + $0xc0] sm:$0xff]
        %v273 = vld [vmem:[%s236 + $0xc8] sm:$0xff]
        %v274 = vld [vmem:[%s236 + $0xd0] sm:$0xff]
        %v275 = vld [vmem:[%s236 + $0xd8] sm:$0xff]
        %v276 = vld [vmem:[%s236 + $0xe0] sm:$0xff]
        %v277 = vld [vmem:[%s236 + $0xe8] sm:$0xff]
        %v278 = vld [vmem:[%s236 + $0xf0] sm:$0xff]
        %v279 = vld [vmem:[%s236 + $0xf8] sm:$0xff]
        %v280 = vld [vmem:[%s236 + $0x100] sm:$0xff]
        %v281 = vld [vmem:[%s236 + $0x108] sm:$0xff]
        %v282 = vld [vmem:[%s236 + $0x110] sm:$0xff]
        %v283 = vld [vmem:[%s236 + $0x118] sm:$0xff]
        %v284 = vld [vmem:[%s236 + $0x120] sm:$0xff]
        %v285 = vld [vmem:[%s236 + $0x128] sm:$0xff]
        %v286 = vld [vmem:[%s236 + $0x130] sm:$0xff]
        %v287 = vld [vmem:[%s236 + $0x138] sm:$0xff]
        %v288 = vld [vmem:[%s236 + $0x140] sm:$0xff]
        %v289 = vld [vmem:[%s236 + $0x148] sm:$0xff]
        %v290 = vld [vmem:[%s236 + $0x150] sm:$0xff]
        %v291 = vld [vmem:[%s236 + $0x158] sm:$0xff]
        %v292 = vld [vmem:[%s236 + $0x160] sm:$0xff]
        %v293 = vld [vmem:[%s236 + $0x168] sm:$0xff]
        %v294 = vld [vmem:[%s236 + $0x170] sm:$0xff]
        %v295 = vld [vmem:[%s236 + $0x178] sm:$0xff]
        %v296 = vld [vmem:[%s236 + $0x180] sm:$0xff]
        %v297 = vld [vmem:[%s236 + $0x188] sm:$0xff]
        %v298 = vld [vmem:[%s236 + $0x190] sm:$0xff]
        %v299 = vld [vmem:[%s236 + $0x198] sm:$0xff]
        %v300 = vld [vmem:[%s236 + $0x1a0] sm:$0xff]
        %v301 = vld [vmem:[%s236 + $0x1a8] sm:$0xff]
        %v302 = vld [vmem:[%s236 + $0x1b0] sm:$0xff]
        %v303 = vld [vmem:[%s236 + $0x1b8] sm:$0xff]
        %v304 = vld [vmem:[%s236 + $0x1c0] sm:$0xff]
        %v305 = vld [vmem:[%s236 + $0x1c8] sm:$0xff]
        %v306 = vld [vmem:[%s236 + $0x1d0] sm:$0xff]
        %v307 = vld [vmem:[%s236 + $0x1d8] sm:$0xff]
        %v308 = vld [vmem:[%s236 + $0x1e0] sm:$0xff]
        %v309 = vld [vmem:[%s236 + $0x1e8] sm:$0xff]
        %v310 = vld [vmem:[%s236 + $0x1f0] sm:$0xff]
        %v311 = vld [vmem:[%s236 + $0x1f8] sm:$0xff]
        %v312 = vld [vmem:[%s236 + $0x200] sm:$0xff]
        %v313 = vld [vmem:[%s236 + $0x208] sm:$0xff]
        %v314 = vld [vmem:[%s236 + $0x210] sm:$0xff]
        %v315 = vld [vmem:[%s236 + $0x218] sm:$0xff]
        %v316 = vld [vmem:[%s236 + $0x220] sm:$0xff]
        %v317 = vld [vmem:[%s236 + $0x228] sm:$0xff]
        %v318 = vld [vmem:[%s236 + $0x230] sm:$0xff]
        %v319 = vld [vmem:[%s236 + $0x238] sm:$0xff]
        %v320 = vld [vmem:[%s236 + $0x240] sm:$0xff]
        %v321 = vld [vmem:[%s236 + $0x248] sm:$0xff]
        %v322 = vld [vmem:[%s236 + $0x250] sm:$0xff]
        %v323 = vld [vmem:[%s236 + $0x258] sm:$0xff]
        %v324 = vld [vmem:[%s236 + $0x260] sm:$0xff]
        %v325 = vld [vmem:[%s236 + $0x268] sm:$0xff]
        %v326 = vld [vmem:[%s236 + $0x270] sm:$0xff]
        %v327 = vld [vmem:[%s236 + $0x278] sm:$0xff]
        %v328 = vld [vmem:[%s236 + $0x280] sm:$0xff]
        %v329 = vld [vmem:[%s236 + $0x288] sm:$0xff]
        %v330 = vld [vmem:[%s236 + $0x290] sm:$0xff]
        %v331 = vld [vmem:[%s236 + $0x298] sm:$0xff]
        %v332 = vld [vmem:[%s236 + $0x2a0] sm:$0xff]
        %v333 = vld [vmem:[%s236 + $0x2a8] sm:$0xff]
        %v334 = vld [vmem:[%s236 + $0x2b0] sm:$0xff]
        %v335 = vld [vmem:[%s236 + $0x2b8] sm:$0xff]
        %v336 = vld [vmem:[%s236 + $0x2c0] sm:$0xff]
        %v337 = vld [vmem:[%s236 + $0x2c8] sm:$0xff]
        %v338 = vld [vmem:[%s236 + $0x2d0] sm:$0xff]
        %v339 = vld [vmem:[%s236 + $0x2d8] sm:$0xff]
        %v340 = vld [vmem:[%s236 + $0x2e0] sm:$0xff]
        %v341 = vld [vmem:[%s236 + $0x2e8] sm:$0xff]
        %v342 = vld [vmem:[%s236 + $0x2f0] sm:$0xff]
        %v343 = vld [vmem:[%s236 + $0x2f8] sm:$0xff]
        %v344 = vld [vmem:[%s236 + $0x300] sm:$0xff]
        %v345 = vld [vmem:[%s236 + $0x308] sm:$0xff]
        %v346 = vld [vmem:[%s236 + $0x310] sm:$0xff]
        %v347 = vld [vmem:[%s236 + $0x318] sm:$0xff]
        %v348 = vld [vmem:[%s236 + $0x320] sm:$0xff]
        %v349 = vld [vmem:[%s236 + $0x328] sm:$0xff]
        %v350 = vld [vmem:[%s236 + $0x330] sm:$0xff]
        %v351 = vld [vmem:[%s236 + $0x338] sm:$0xff]
        %v352 = vld [vmem:[%s236 + $0x340] sm:$0xff]
        %v353 = vld [vmem:[%s236 + $0x348] sm:$0xff]
        %v354 = vld [vmem:[%s236 + $0x350] sm:$0xff]
        %v355 = vld [vmem:[%s236 + $0x358] sm:$0xff]
        %v356 = vld [vmem:[%s236 + $0x360] sm:$0xff]
        %v357 = vld [vmem:[%s236 + $0x368] sm:$0xff]
        %v358 = vld [vmem:[%s236 + $0x370] sm:$0xff]
        %v359 = vld [vmem:[%s236 + $0x378] sm:$0xff]
        %v360 = vld [vmem:[%s236 + $0x380] sm:$0xff]
        %v361 = vld [vmem:[%s236 + $0x388] sm:$0xff]
        %v362 = vld [vmem:[%s236 + $0x390] sm:$0xff]
        %v363 = vld [vmem:[%s236 + $0x398] sm:$0xff]
        %v364 = vld [vmem:[%s236 + $0x3a0] sm:$0xff]
        %v365 = vld [vmem:[%s236 + $0x3a8] sm:$0xff]
        %v366 = vld [vmem:[%s236 + $0x3b0] sm:$0xff]
        %v367 = vld [vmem:[%s236 + $0x3b8] sm:$0xff]
        %v368 = vld [vmem:[%s236 + $0x3c0] sm:$0xff]
        %v369 = vld [vmem:[%s236 + $0x3c8] sm:$0xff]
        %v370 = vld [vmem:[%s236 + $0x3d0] sm:$0xff]
        %v371 = vld [vmem:[%s236 + $0x3d8] sm:$0xff]
        %v372 = vld [vmem:[%s236 + $0x3e0] sm:$0xff]
        %v373 = vld [vmem:[%s236 + $0x3e8] sm:$0xff]
        %v374 = vld [vmem:[%s236 + $0x3f0] sm:$0xff]
        %v375 = vld [vmem:[%s236 + $0x3f8] sm:$0xff]
        %v376 = vld [vmem:[%s236 + $0x400] sm:$0xff]
        %v377 = vld [vmem:[%s236 + $0x408] sm:$0xff]
        %v378 = vld [vmem:[%s236 + $0x410] sm:$0xff]
        %v379 = vld [vmem:[%s236 + $0x418] sm:$0xff]
        %v380 = vld [vmem:[%s236 + $0x420] sm:$0xff]
        %v381 = vld [vmem:[%s236 + $0x428] sm:$0xff]
        %v382 = vld [vmem:[%s236 + $0x430] sm:$0xff]
        %v383 = vld [vmem:[%s236 + $0x438] sm:$0xff]
        %v384 = vld [vmem:[%s236 + $0x440] sm:$0xff]
        %v385 = vld [vmem:[%s236 + $0x448] sm:$0xff]
        %v386 = vld [vmem:[%s236 + $0x450] sm:$0xff]
        %v387 = vld [vmem:[%s236 + $0x458] sm:$0xff]
        %v388 = vld [vmem:[%s236 + $0x460] sm:$0xff]
        %v389 = vld [vmem:[%s236 + $0x468] sm:$0xff]
        %v390 = vld [vmem:[%s236 + $0x470] sm:$0xff]
        %v391 = vld [vmem:[%s236 + $0x478] sm:$0xff]
        %v392 = vld [vmem:[%s236 + $0x480] sm:$0xff]
        %v393 = vld [vmem:[%s236 + $0x488] sm:$0xff]
        %v394 = vld [vmem:[%s236 + $0x490] sm:$0xff]
        %v395 = vld [vmem:[%s236 + $0x498] sm:$0xff]
        %v396 = vld [vmem:[%s236 + $0x4a0] sm:$0xff]
        %v397 = vld [vmem:[%s236 + $0x4a8] sm:$0xff]
        %v398 = vld [vmem:[%s236 + $0x4b0] sm:$0xff]
        %v399 = vld [vmem:[%s236 + $0x4b8] sm:$0xff]
        %v400 = vld [vmem:[%s236 + $0x4c0] sm:$0xff]
        %v401 = vld [vmem:[%s236 + $0x4c8] sm:$0xff]
        %v402 = vld [vmem:[%s236 + $0x4d0] sm:$0xff]
        %v403 = vld [vmem:[%s236 + $0x4d8] sm:$0xff]
        %v404 = vld [vmem:[%s236 + $0x4e0] sm:$0xff]
        %v405 = vld [vmem:[%s236 + $0x4e8] sm:$0xff]
        %v406 = vld [vmem:[%s236 + $0x4f0] sm:$0xff]
        %v407 = vld [vmem:[%s236 + $0x4f8] sm:$0xff]
        %v408 = vld [vmem:[%s236 + $0x500] sm:$0xff]
        %v409 = vld [vmem:[%s236 + $0x508] sm:$0xff]
        %v410 = vld [vmem:[%s236 + $0x510] sm:$0xff]
        %v411 = vld [vmem:[%s236 + $0x518] sm:$0xff]
        %v412 = vld [vmem:[%s236 + $0x520] sm:$0xff]
        %v413 = vld [vmem:[%s236 + $0x528] sm:$0xff]
        %v414 = vld [vmem:[%s236 + $0x530] sm:$0xff]
        %v415 = vld [vmem:[%s236 + $0x538] sm:$0xff]
        %v416 = vld [vmem:[%s236 + $0x540] sm:$0xff]
        %v417 = vld [vmem:[%s236 + $0x548] sm:$0xff]
        %v418 = vld [vmem:[%s236 + $0x550] sm:$0xff]
        %v419 = vld [vmem:[%s236 + $0x558] sm:$0xff]
        %v420 = vld [vmem:[%s236 + $0x560] sm:$0xff]
        %v421 = vld [vmem:[%s236 + $0x568] sm:$0xff]
        %v422 = vld [vmem:[%s236 + $0x570] sm:$0xff]
        %v423 = vld [vmem:[%s236 + $0x578] sm:$0xff]
        %v424 = vld [vmem:[%s236 + $0x580] sm:$0xff]
        %v425 = vld [vmem:[%s236 + $0x588] sm:$0xff]
        %v426 = vld [vmem:[%s236 + $0x590] sm:$0xff]
        %v427 = vld [vmem:[%s236 + $0x598] sm:$0xff]
        %v428 = vld [vmem:[%s236 + $0x5a0] sm:$0xff]
        %v429 = vld [vmem:[%s236 + $0x5a8] sm:$0xff]
        %v430 = vld [vmem:[%s236 + $0x5b0] sm:$0xff]
        %v431 = vld [vmem:[%s236 + $0x5b8] sm:$0xff]
        %v432 = vld [vmem:[%s236 + $0x5c0] sm:$0xff]
        %v433 = vld [vmem:[%s236 + $0x5c8] sm:$0xff]
        %v434 = vld [vmem:[%s236 + $0x5d0] sm:$0xff]
        %v435 = vld [vmem:[%s236 + $0x5d8] sm:$0xff]
        %v436 = vld [vmem:[%s236 + $0x5e0] sm:$0xff]
        %v437 = vld [vmem:[%s236 + $0x5e8] sm:$0xff]
        %v438 = vld [vmem:[%s236 + $0x5f0] sm:$0xff]
        %v439 = vld [vmem:[%s236 + $0x5f8] sm:$0xff]
        %v440 = vld [vmem:[%s236 + $0x600] sm:$0xff]
        %v441 = vld [vmem:[%s236 + $0x608] sm:$0xff]
        %v442 = vld [vmem:[%s236 + $0x610] sm:$0xff]
        %v443 = vld [vmem:[%s236 + $0x618] sm:$0xff]
        %v444 = vld [vmem:[%s236 + $0x620] sm:$0xff]
        %v445 = vld [vmem:[%s236 + $0x628] sm:$0xff]
        %v446 = vld [vmem:[%s236 + $0x630] sm:$0xff]
        %v447 = vld [vmem:[%s236 + $0x638] sm:$0xff]
        %v448 = vld [vmem:[%s236 + $0x640] sm:$0xff]
        %v449 = vld [vmem:[%s236 + $0x648] sm:$0xff]
        %v450 = vld [vmem:[%s236 + $0x650] sm:$0xff]
        %v451 = vld [vmem:[%s236 + $0x658] sm:$0xff]
        %v452 = vld [vmem:[%s236 + $0x660] sm:$0xff]
        %v453 = vld [vmem:[%s236 + $0x668] sm:$0xff]
        %v454 = vld [vmem:[%s236 + $0x670] sm:$0xff]
        %v455 = vld [vmem:[%s236 + $0x678] sm:$0xff]
        %v456 = vld [vmem:[%s236 + $0x680] sm:$0xff]
        %v457 = vld [vmem:[%s236 + $0x688] sm:$0xff]
        %v458 = vld [vmem:[%s236 + $0x690] sm:$0xff]
        %v459 = vld [vmem:[%s236 + $0x698] sm:$0xff]
        %v460 = vld [vmem:[%s236 + $0x6a0] sm:$0xff]
        %v461 = vld [vmem:[%s236 + $0x6a8] sm:$0xff]
        %v462 = vld [vmem:[%s236 + $0x6b0] sm:$0xff]
        %v463 = vld [vmem:[%s236 + $0x6b8] sm:$0xff]
        %v464 = vld [vmem:[%s236 + $0x6c0] sm:$0xff]
        %v465 = vld [vmem:[%s236 + $0x6c8] sm:$0xff]
        %v466 = vld [vmem:[%s236 + $0x6d0] sm:$0xff]
        %v467 = vld [vmem:[%s236 + $0x6d8] sm:$0xff]
        %v468 = vld [vmem:[%s236 + $0x6e0] sm:$0xff]
        %v469 = vld [vmem:[%s236 + $0x6e8] sm:$0xff]
        %v470 = vld [vmem:[%s236 + $0x6f0] sm:$0xff]
        %v471 = vld [vmem:[%s236 + $0x6f8] sm:$0xff]
        %v472 = vld [vmem:[%s236 + $0x700] sm:$0xff]
        %v473 = vld [vmem:[%s236 + $0x708] sm:$0xff]
        %v474 = vld [vmem:[%s236 + $0x710] sm:$0xff]
        %v475 = vld [vmem:[%s236 + $0x718] sm:$0xff]
        %v476 = vld [vmem:[%s236 + $0x720] sm:$0xff]
        %v477 = vld [vmem:[%s236 + $0x728] sm:$0xff]
        %v478 = vld [vmem:[%s236 + $0x730] sm:$0xff]
        %v479 = vld [vmem:[%s236 + $0x738] sm:$0xff]
        %v480 = vld [vmem:[%s236 + $0x740] sm:$0xff]
        %v481 = vld [vmem:[%s236 + $0x748] sm:$0xff]
        %v482 = vld [vmem:[%s236 + $0x750] sm:$0xff]
        %v483 = vld [vmem:[%s236 + $0x758] sm:$0xff]
        %v484 = vld [vmem:[%s236 + $0x760] sm:$0xff]
        %v485 = vld [vmem:[%s236 + $0x768] sm:$0xff]
        %v486 = vld [vmem:[%s236 + $0x770] sm:$0xff]
        %v487 = vld [vmem:[%s236 + $0x778] sm:$0xff]
        %v488 = vld [vmem:[%s236 + $0x780] sm:$0xff]
        %v489 = vld [vmem:[%s236 + $0x788] sm:$0xff]
        %v490 = vld [vmem:[%s236 + $0x790] sm:$0xff]
        %v491 = vld [vmem:[%s236 + $0x798] sm:$0xff]
        %v492 = vld [vmem:[%s236 + $0x7a0] sm:$0xff]
        %v493 = vld [vmem:[%s236 + $0x7a8] sm:$0xff]
        %v494 = vld [vmem:[%s236 + $0x7b0] sm:$0xff]
        %v495 = vld [vmem:[%s236 + $0x7b8] sm:$0xff]
        %v496 = vld [vmem:[%s236 + $0x7c0] sm:$0xff]
        %v497 = vld [vmem:[%s236 + $0x7c8] sm:$0xff]
        %v498 = vld [vmem:[%s236 + $0x7d0] sm:$0xff]
        %v499 = vld [vmem:[%s236 + $0x7d8] sm:$0xff]
        %v500 = vld [vmem:[%s236 + $0x7e0] sm:$0xff]
        %v501 = vld [vmem:[%s236 + $0x7e8] sm:$0xff]
        %v502 = vld [vmem:[%s236 + $0x7f0] sm:$0xff]
        %v503 = vld [vmem:[%s236 + $0x7f8] sm:$0xff]
        %v504 = vld [vmem:[%s236 + $0x800] sm:$0xff]
        %v505 = vld [vmem:[%s236 + $0x808] sm:$0xff]
        %v506 = vld [vmem:[%s236 + $0x810] sm:$0xff]
        %v507 = vld [vmem:[%s236 + $0x818] sm:$0xff]
        %v508 = vld [vmem:[%s236 + $0x820] sm:$0xff]
        %v509 = vld [vmem:[%s236 + $0x828] sm:$0xff]
        %v510 = vld [vmem:[%s236 + $0x830] sm:$0xff]
        %v511 = vld [vmem:[%s236 + $0x838] sm:$0xff]
        %v512 = vld [vmem:[%s236 + $0x840] sm:$0xff]
        %v513 = vld [vmem:[%s236 + $0x848] sm:$0xff]
        %v514 = vld [vmem:[%s236 + $0x850] sm:$0xff]
        %v515 = vld [vmem:[%s236 + $0x858] sm:$0xff]
        %v516 = vld [vmem:[%s236 + $0x860] sm:$0xff]
        %v517 = vld [vmem:[%s236 + $0x868] sm:$0xff]
        %v518 = vld [vmem:[%s236 + $0x870] sm:$0xff]
        %v519 = vld [vmem:[%s236 + $0x878] sm:$0xff]
        %v520 = vld [vmem:[%s236 + $0x880] sm:$0xff]
        %v521 = vld [vmem:[%s236 + $0x888] sm:$0xff]
        %v522 = vld [vmem:[%s236 + $0x890] sm:$0xff]
        %v523 = vld [vmem:[%s236 + $0x898] sm:$0xff]
        %v524 = vld [vmem:[%s236 + $0x8a0] sm:$0xff]
        %v525 = vld [vmem:[%s236 + $0x8a8] sm:$0xff]
        %v526 = vld [vmem:[%s236 + $0x8b0] sm:$0xff]
        %v527 = vld [vmem:[%s236 + $0x8b8] sm:$0xff]
        %v528 = vld [vmem:[%s236 + $0x8c0] sm:$0xff]
        %v529 = vld [vmem:[%s236 + $0x8c8] sm:$0xff]
        %v530 = vld [vmem:[%s236 + $0x8d0] sm:$0xff]
        %v531 = vld [vmem:[%s236 + $0x8d8] sm:$0xff]
        %v532 = vld [vmem:[%s236 + $0x8e0] sm:$0xff]
        %v533 = vld [vmem:[%s236 + $0x8e8] sm:$0xff]
        %v534 = vld [vmem:[%s236 + $0x8f0] sm:$0xff]
        %v535 = vld [vmem:[%s236 + $0x8f8] sm:$0xff]
        %v536 = vld [vmem:[%s236 + $0x900] sm:$0xff]
        %v537 = vld [vmem:[%s236 + $0x908] sm:$0xff]
        %v538 = vld [vmem:[%s236 + $0x910] sm:$0xff]
        %v539 = vld [vmem:[%s236 + $0x918] sm:$0xff]
        %v540 = vld [vmem:[%s236 + $0x920] sm:$0xff]
        %v541 = vld [vmem:[%s236 + $0x928] sm:$0xff]
        %v542 = vld [vmem:[%s236 + $0x930] sm:$0xff]
        %v543 = vld [vmem:[%s236 + $0x938] sm:$0xff]
        %v544 = vld [vmem:[%s236 + $0x940] sm:$0xff]
        %v545 = vld [vmem:[%s236 + $0x948] sm:$0xff]
        %v546 = vld [vmem:[%s236 + $0x950] sm:$0xff]
        %v547 = vld [vmem:[%s236 + $0x958] sm:$0xff]
        %v548 = vld [vmem:[%s236 + $0x960] sm:$0xff]
        %v549 = vld [vmem:[%s236 + $0x968] sm:$0xff]
        %v550 = vld [vmem:[%s236 + $0x970] sm:$0xff]
        %v551 = vld [vmem:[%s236 + $0x978] sm:$0xff]
        %v552 = vld [vmem:[%s236 + $0x980] sm:$0xff]
        %v553 = vld [vmem:[%s236 + $0x988] sm:$0xff]
        %v554 = vld [vmem:[%s236 + $0x990] sm:$0xff]
        %v555 = vld [vmem:[%s236 + $0x998] sm:$0xff]
        %v556 = vld [vmem:[%s236 + $0x9a0] sm:$0xff]
        %v557 = vld [vmem:[%s236 + $0x9a8] sm:$0xff]
        %v558 = vld [vmem:[%s236 + $0x9b0] sm:$0xff]
        %v559 = vld [vmem:[%s236 + $0x9b8] sm:$0xff]
        %v560 = vld [vmem:[%s236 + $0x9c0] sm:$0xff]
        %v561 = vld [vmem:[%s236 + $0x9c8] sm:$0xff]
        %v562 = vld [vmem:[%s236 + $0x9d0] sm:$0xff]
        %v563 = vld [vmem:[%s236 + $0x9d8] sm:$0xff]
        %v564 = vld [vmem:[%s236 + $0x9e0] sm:$0xff]
        %v565 = vld [vmem:[%s236 + $0x9e8] sm:$0xff]
        %v566 = vld [vmem:[%s236 + $0x9f0] sm:$0xff]
        %v567 = vld [vmem:[%s236 + $0x9f8] sm:$0xff]
        %v568 = vld [vmem:[%s236 + $0xa00] sm:$0xff]
        %v569 = vld [vmem:[%s236 + $0xa08] sm:$0xff]
        %v570 = vld [vmem:[%s236 + $0xa10] sm:$0xff]
        %v571 = vld [vmem:[%s236 + $0xa18] sm:$0xff]
        %v572 = vld [vmem:[%s236 + $0xa20] sm:$0xff]
        %v573 = vld [vmem:[%s236 + $0xa28] sm:$0xff]
        %v574 = vld [vmem:[%s236 + $0xa30] sm:$0xff]
        %v575 = vld [vmem:[%s236 + $0xa38] sm:$0xff]
        %v576 = vld [vmem:[%s236 + $0xa40] sm:$0xff]
        %v577 = vld [vmem:[%s236 + $0xa48] sm:$0xff]
        %v578 = vld [vmem:[%s236 + $0xa50] sm:$0xff]
        %v579 = vld [vmem:[%s236 + $0xa58] sm:$0xff]
        %v580 = vld [vmem:[%s236 + $0xa60] sm:$0xff]
        %v581 = vld [vmem:[%s236 + $0xa68] sm:$0xff]
        %v582 = vld [vmem:[%s236 + $0xa70] sm:$0xff]
        %v583 = vld [vmem:[%s236 + $0xa78] sm:$0xff]
        %v584 = vld [vmem:[%s236 + $0xa80] sm:$0xff]
        %v585 = vld [vmem:[%s236 + $0xa88] sm:$0xff]
        %v586 = vld [vmem:[%s236 + $0xa90] sm:$0xff]
        %v587 = vld [vmem:[%s236 + $0xa98] sm:$0xff]
        %v588 = vld [vmem:[%s236 + $0xaa0] sm:$0xff]
        %v589 = vld [vmem:[%s236 + $0xaa8] sm:$0xff]
        %v590 = vld [vmem:[%s236 + $0xab0] sm:$0xff]
        %v591 = vld [vmem:[%s236 + $0xab8] sm:$0xff]
        %v592 = vld [vmem:[%s236 + $0xac0] sm:$0xff]
        %v593 = vld [vmem:[%s236 + $0xac8] sm:$0xff]
        %v594 = vld [vmem:[%s236 + $0xad0] sm:$0xff]
        %v595 = vld [vmem:[%s236 + $0xad8] sm:$0xff]
        %v596 = vld [vmem:[%s236 + $0xae0] sm:$0xff]
        %v597 = vld [vmem:[%s236 + $0xae8] sm:$0xff]
        %v598 = vld [vmem:[%s236 + $0xaf0] sm:$0xff]
        %v599 = vld [vmem:[%s236 + $0xaf8] sm:$0xff]
        %v600 = vld [vmem:[%s236 + $0xb00] sm:$0xff]
        %v601 = vld [vmem:[%s236 + $0xb08] sm:$0xff]
        %v602 = vld [vmem:[%s236 + $0xb10] sm:$0xff]
        %v603 = vld [vmem:[%s236 + $0xb18] sm:$0xff]
        %v604 = vld [vmem:[%s236 + $0xb20] sm:$0xff]
        %v605 = vld [vmem:[%s236 + $0xb28] sm:$0xff]
        %v606 = vld [vmem:[%s236 + $0xb30] sm:$0xff]
        %v607 = vld [vmem:[%s236 + $0xb38] sm:$0xff]
        %v608 = vld [vmem:[%s236 + $0xb40] sm:$0xff]
        %v609 = vld [vmem:[%s236 + $0xb48] sm:$0xff]
        %v610 = vld [vmem:[%s236 + $0xb50] sm:$0xff]
        %v611 = vld [vmem:[%s236 + $0xb58] sm:$0xff]
        %v612 = vld [vmem:[%s236 + $0xb60] sm:$0xff]
        %v613 = vld [vmem:[%s236 + $0xb68] sm:$0xff]
        %v614 = vld [vmem:[%s236 + $0xb70] sm:$0xff]
        %v615 = vld [vmem:[%s236 + $0xb78] sm:$0xff]
        %v616 = vld [vmem:[%s236 + $0xb80] sm:$0xff]
        %v617 = vld [vmem:[%s236 + $0xb88] sm:$0xff]
        %v618 = vld [vmem:[%s236 + $0xb90] sm:$0xff]
        %v619 = vld [vmem:[%s236 + $0xb98] sm:$0xff]
        %v620 = vld [vmem:[%s236 + $0xba0] sm:$0xff]
        %v621 = vld [vmem:[%s236 + $0xba8] sm:$0xff]
        %v622 = vld [vmem:[%s236 + $0xbb0] sm:$0xff]
        %v623 = vld [vmem:[%s236 + $0xbb8] sm:$0xff]
        %v624 = vld [vmem:[%s236 + $0xbc0] sm:$0xff]
        %v625 = vld [vmem:[%s236 + $0xbc8] sm:$0xff]
        %v626 = vld [vmem:[%s236 + $0xbd0] sm:$0xff]
        %v627 = vld [vmem:[%s236 + $0xbd8] sm:$0xff]
        %v628 = vld [vmem:[%s236 + $0xbe0] sm:$0xff]
        %v629 = vld [vmem:[%s236 + $0xbe8] sm:$0xff]
        %v630 = vld [vmem:[%s236 + $0xbf0] sm:$0xff]
        %v631 = vld [vmem:[%s236 + $0xbf8] sm:$0xff]
        %v632 = vld [vmem:[%s236 + $0xc00] sm:$0xff]
        %v633 = vld [vmem:[%s236 + $0xc08] sm:$0xff]
        %v634 = vld [vmem:[%s236 + $0xc10] sm:$0xff]
        %v635 = vld [vmem:[%s236 + $0xc18] sm:$0xff]
        %v636 = vld [vmem:[%s236 + $0xc20] sm:$0xff]
        %v637 = vld [vmem:[%s236 + $0xc28] sm:$0xff]
        %v638 = vld [vmem:[%s236 + $0xc30] sm:$0xff]
        %v639 = vld [vmem:[%s236 + $0xc38] sm:$0xff]
        %v640 = vld [vmem:[%s236 + $0xc40] sm:$0xff]
        %v641 = vld [vmem:[%s236 + $0xc48] sm:$0xff]
        %v642 = vld [vmem:[%s236 + $0xc50] sm:$0xff]
        %v643 = vld [vmem:[%s236 + $0xc58] sm:$0xff]
        %v644 = vld [vmem:[%s236 + $0xc60] sm:$0xff]
        %v645 = vld [vmem:[%s236 + $0xc68] sm:$0xff]
        %v646 = vld [vmem:[%s236 + $0xc70] sm:$0xff]
        %v647 = vld [vmem:[%s236 + $0xc78] sm:$0xff]
        %v648 = vld [vmem:[%s236 + $0xc80] sm:$0xff]
        %v649 = vld [vmem:[%s236 + $0xc88] sm:$0xff]
        %v650 = vld [vmem:[%s236 + $0xc90] sm:$0xff]
        %v651 = vld [vmem:[%s236 + $0xc98] sm:$0xff]
        %v652 = vld [vmem:[%s236 + $0xca0] sm:$0xff]
        %v653 = vld [vmem:[%s236 + $0xca8] sm:$0xff]
        %v654 = vld [vmem:[%s236 + $0xcb0] sm:$0xff]
        %v655 = vld [vmem:[%s236 + $0xcb8] sm:$0xff]
        %v656 = vld [vmem:[%s236 + $0xcc0] sm:$0xff]
        %v657 = vld [vmem:[%s236 + $0xcc8] sm:$0xff]
        %v658 = vld [vmem:[%s236 + $0xcd0] sm:$0xff]
        %v659 = vld [vmem:[%s236 + $0xcd8] sm:$0xff]
        %v660 = vld [vmem:[%s236 + $0xce0] sm:$0xff]
        %v661 = vld [vmem:[%s236 + $0xce8] sm:$0xff]
        %v662 = vld [vmem:[%s236 + $0xcf0] sm:$0xff]
        %v663 = vld [vmem:[%s236 + $0xcf8] sm:$0xff]
        %v664 = vld [vmem:[%s236 + $0xd00] sm:$0xff]
        %v665 = vld [vmem:[%s236 + $0xd08] sm:$0xff]
        %v666 = vld [vmem:[%s236 + $0xd10] sm:$0xff]
        %v667 = vld [vmem:[%s236 + $0xd18] sm:$0xff]
        %v668 = vld [vmem:[%s236 + $0xd20] sm:$0xff]
        %v669 = vld [vmem:[%s236 + $0xd28] sm:$0xff]
        %v670 = vld [vmem:[%s236 + $0xd30] sm:$0xff]
        %v671 = vld [vmem:[%s236 + $0xd38] sm:$0xff]
        %v672 = vld [vmem:[%s236 + $0xd40] sm:$0xff]
        %v673 = vld [vmem:[%s236 + $0xd48] sm:$0xff]
        %v674 = vld [vmem:[%s236 + $0xd50] sm:$0xff]
        %v675 = vld [vmem:[%s236 + $0xd58] sm:$0xff]
        %v676 = vld [vmem:[%s236 + $0xd60] sm:$0xff]
        %v677 = vld [vmem:[%s236 + $0xd68] sm:$0xff]
        %v678 = vld [vmem:[%s236 + $0xd70] sm:$0xff]
        %v679 = vld [vmem:[%s236 + $0xd78] sm:$0xff]
        %v680 = vld [vmem:[%s236 + $0xd80] sm:$0xff]
        %v681 = vld [vmem:[%s236 + $0xd88] sm:$0xff]
        %v682 = vld [vmem:[%s236 + $0xd90] sm:$0xff]
        %v683 = vld [vmem:[%s236 + $0xd98] sm:$0xff]
        %v684 = vld [vmem:[%s236 + $0xda0] sm:$0xff]
        %v685 = vld [vmem:[%s236 + $0xda8] sm:$0xff]
        %v686 = vld [vmem:[%s236 + $0xdb0] sm:$0xff]
        %v687 = vld [vmem:[%s236 + $0xdb8] sm:$0xff]
        %v688 = vld [vmem:[%s236 + $0xdc0] sm:$0xff]
        %v689 = vld [vmem:[%s236 + $0xdc8] sm:$0xff]
        %v690 = vld [vmem:[%s236 + $0xdd0] sm:$0xff]
        %v691 = vld [vmem:[%s236 + $0xdd8] sm:$0xff]
        %v692 = vld [vmem:[%s236 + $0xde0] sm:$0xff]
        %v693 = vld [vmem:[%s236 + $0xde8] sm:$0xff]
        %v694 = vld [vmem:[%s236 + $0xdf0] sm:$0xff]
        %v695 = vld [vmem:[%s236 + $0xdf8] sm:$0xff]
        %v696 = vld [vmem:[%s236 + $0xe00] sm:$0xff]
        %v697 = vld [vmem:[%s236 + $0xe08] sm:$0xff]
        %v698 = vld [vmem:[%s236 + $0xe10] sm:$0xff]
        %v699 = vld [vmem:[%s236 + $0xe18] sm:$0xff]
        %v700 = vld [vmem:[%s236 + $0xe20] sm:$0xff]
        %v701 = vld [vmem:[%s236 + $0xe28] sm:$0xff]
        %v702 = vld [vmem:[%s236 + $0xe30] sm:$0xff]
        %v703 = vld [vmem:[%s236 + $0xe38] sm:$0xff]
        %v704 = vld [vmem:[%s236 + $0xe40] sm:$0xff]
        %v705 = vld [vmem:[%s236 + $0xe48] sm:$0xff]
        %v706 = vld [vmem:[%s236 + $0xe50] sm:$0xff]
        %v707 = vld [vmem:[%s236 + $0xe58] sm:$0xff]
        %v708 = vld [vmem:[%s236 + $0xe60] sm:$0xff]
        %v709 = vld [vmem:[%s236 + $0xe68] sm:$0xff]
        %v710 = vld [vmem:[%s236 + $0xe70] sm:$0xff]
        %v711 = vld [vmem:[%s236 + $0xe78] sm:$0xff]
        %v712 = vld [vmem:[%s236 + $0xe80] sm:$0xff]
        %v713 = vld [vmem:[%s236 + $0xe88] sm:$0xff]
        %v714 = vld [vmem:[%s236 + $0xe90] sm:$0xff]
        %v715 = vld [vmem:[%s236 + $0xe98] sm:$0xff]
        %v716 = vld [vmem:[%s236 + $0xea0] sm:$0xff]
        %v717 = vld [vmem:[%s236 + $0xea8] sm:$0xff]
        %v718 = vld [vmem:[%s236 + $0xeb0] sm:$0xff]
        %v719 = vld [vmem:[%s236 + $0xeb8] sm:$0xff]
        %v720 = vld [vmem:[%s236 + $0xec0] sm:$0xff]
        %v721 = vld [vmem:[%s236 + $0xec8] sm:$0xff]
        %v722 = vld [vmem:[%s236 + $0xed0] sm:$0xff]
        %v723 = vld [vmem:[%s236 + $0xed8] sm:$0xff]
        %v724 = vld [vmem:[%s236 + $0xee0] sm:$0xff]
        %v725 = vld [vmem:[%s236 + $0xee8] sm:$0xff]
        %v726 = vld [vmem:[%s236 + $0xef0] sm:$0xff]
        %v727 = vld [vmem:[%s236 + $0xef8] sm:$0xff]
        %v728 = vld [vmem:[%s236 + $0xf00] sm:$0xff]
        %v729 = vld [vmem:[%s236 + $0xf08] sm:$0xff]
        %v730 = vld [vmem:[%s236 + $0xf10] sm:$0xff]
        %v731 = vld [vmem:[%s236 + $0xf18] sm:$0xff]
        %v732 = vld [vmem:[%s236 + $0xf20] sm:$0xff]
        %v733 = vld [vmem:[%s236 + $0xf28] sm:$0xff]
        %v734 = vld [vmem:[%s236 + $0xf30] sm:$0xff]
        %v735 = vld [vmem:[%s236 + $0xf38] sm:$0xff]
        %v736 = vld [vmem:[%s236 + $0xf40] sm:$0xff]
        %v737 = vld [vmem:[%s236 + $0xf48] sm:$0xff]
        %v738 = vld [vmem:[%s236 + $0xf50] sm:$0xff]
        %v739 = vld [vmem:[%s236 + $0xf58] sm:$0xff]
        %v740 = vld [vmem:[%s236 + $0xf60] sm:$0xff]
        %v741 = vld [vmem:[%s236 + $0xf68] sm:$0xff]
        %v742 = vld [vmem:[%s236 + $0xf70] sm:$0xff]
        %v743 = vld [vmem:[%s236 + $0xf78] sm:$0xff]
        %v744 = vld [vmem:[%s236 + $0xf80] sm:$0xff]
        %v745 = vld [vmem:[%s236 + $0xf88] sm:$0xff]
        %v746 = vld [vmem:[%s236 + $0xf90] sm:$0xff]
        %v747 = vld [vmem:[%s236 + $0xf98] sm:$0xff]
        %v748 = vld [vmem:[%s236 + $0xfa0] sm:$0xff]
        %v749 = vld [vmem:[%s236 + $0xfa8] sm:$0xff]
        %v750 = vld [vmem:[%s236 + $0xfb0] sm:$0xff]
        %v751 = vld [vmem:[%s236 + $0xfb8] sm:$0xff]
        %v752 = vld [vmem:[%s236 + $0xfc0] sm:$0xff]
        %v753 = vld [vmem:[%s236 + $0xfc8] sm:$0xff]
        %v754 = vld [vmem:[%s236 + $0xfd0] sm:$0xff]
        %v755 = vld [vmem:[%s236 + $0xfd8] sm:$0xff]
        %v756 = vld [vmem:[%s236 + $0xfe0] sm:$0xff]
        %v757 = vld [vmem:[%s236 + $0xfe8] sm:$0xff]
        %v758 = vld [vmem:[%s236 + $0xff0] sm:$0xff]
        %v759 = vld [vmem:[%s236 + $0xff8] sm:$0xff]
        %v760 = vunpack.c.l.bf16 %v248
        %v761 = vunpack.c.h.bf16 %v248
        %v762 = vunpack.c.l.bf16 %v249
        %v763 = vunpack.c.h.bf16 %v249
        %v764 = vunpack.c.l.bf16 %v250
        %v765 = vunpack.c.h.bf16 %v250
        %v766 = vunpack.c.l.bf16 %v251
        %v767 = vunpack.c.h.bf16 %v251
        %v768 = vunpack.c.l.bf16 %v252
        %v769 = vunpack.c.h.bf16 %v252
        %v770 = vunpack.c.l.bf16 %v253
        %v771 = vunpack.c.h.bf16 %v253
        %v772 = vunpack.c.l.bf16 %v254
        %v773 = vunpack.c.h.bf16 %v254
        %v774 = vunpack.c.l.bf16 %v255
        %v775 = vunpack.c.h.bf16 %v255
        %v776 = vunpack.c.l.bf16 %v256
        %v777 = vunpack.c.h.bf16 %v256
        %v778 = vunpack.c.l.bf16 %v257
        %v779 = vunpack.c.h.bf16 %v257
        %v780 = vunpack.c.l.bf16 %v258
        %v781 = vunpack.c.h.bf16 %v258
        %v782 = vunpack.c.l.bf16 %v259
        %v783 = vunpack.c.h.bf16 %v259
        %v784 = vunpack.c.l.bf16 %v260
        %v785 = vunpack.c.h.bf16 %v260
        %v786 = vunpack.c.l.bf16 %v261
        %v787 = vunpack.c.h.bf16 %v261
        %v788 = vunpack.c.l.bf16 %v262
        %v789 = vunpack.c.h.bf16 %v262
        %v790 = vunpack.c.l.bf16 %v263
        %v791 = vunpack.c.h.bf16 %v263
        %v792 = vunpack.c.l.bf16 %v264
        %v793 = vunpack.c.h.bf16 %v264
        %v794 = vunpack.c.l.bf16 %v265
        %v795 = vunpack.c.h.bf16 %v265
        %v796 = vunpack.c.l.bf16 %v266
        %v797 = vunpack.c.h.bf16 %v266
        %v798 = vunpack.c.l.bf16 %v267
        %v799 = vunpack.c.h.bf16 %v267
        %v800 = vunpack.c.l.bf16 %v268
        %v801 = vunpack.c.h.bf16 %v268
        %v802 = vunpack.c.l.bf16 %v269
        %v803 = vunpack.c.h.bf16 %v269
        %v804 = vunpack.c.l.bf16 %v270
        %v805 = vunpack.c.h.bf16 %v270
        %v806 = vunpack.c.l.bf16 %v271
        %v807 = vunpack.c.h.bf16 %v271
        %v808 = vunpack.c.l.bf16 %v272
        %v809 = vunpack.c.h.bf16 %v272
        %v810 = vunpack.c.l.bf16 %v273
        %v811 = vunpack.c.h.bf16 %v273
        %v812 = vunpack.c.l.bf16 %v274
        %v813 = vunpack.c.h.bf16 %v274
        %v814 = vunpack.c.l.bf16 %v275
        %v815 = vunpack.c.h.bf16 %v275
        %v816 = vunpack.c.l.bf16 %v276
        %v817 = vunpack.c.h.bf16 %v276
        %v818 = vunpack.c.l.bf16 %v277
        %v819 = vunpack.c.h.bf16 %v277
        %v820 = vunpack.c.l.bf16 %v278
        %v821 = vunpack.c.h.bf16 %v278
        %v822 = vunpack.c.l.bf16 %v279
        %v823 = vunpack.c.h.bf16 %v279
        %v824 = vunpack.c.l.bf16 %v280
        %v825 = vunpack.c.h.bf16 %v280
        %v826 = vunpack.c.l.bf16 %v281
        %v827 = vunpack.c.h.bf16 %v281
        %v828 = vunpack.c.l.bf16 %v282
        %v829 = vunpack.c.h.bf16 %v282
        %v830 = vunpack.c.l.bf16 %v283
        %v831 = vunpack.c.h.bf16 %v283
        %v832 = vunpack.c.l.bf16 %v284
        %v833 = vunpack.c.h.bf16 %v284
        %v834 = vunpack.c.l.bf16 %v285
        %v835 = vunpack.c.h.bf16 %v285
        %v836 = vunpack.c.l.bf16 %v286
        %v837 = vunpack.c.h.bf16 %v286
        %v838 = vunpack.c.l.bf16 %v287
        %v839 = vunpack.c.h.bf16 %v287
        %v840 = vunpack.c.l.bf16 %v288
        %v841 = vunpack.c.h.bf16 %v288
        %v842 = vunpack.c.l.bf16 %v289
        %v843 = vunpack.c.h.bf16 %v289
        %v844 = vunpack.c.l.bf16 %v290
        %v845 = vunpack.c.h.bf16 %v290
        %v846 = vunpack.c.l.bf16 %v291
        %v847 = vunpack.c.h.bf16 %v291
        %v848 = vunpack.c.l.bf16 %v292
        %v849 = vunpack.c.h.bf16 %v292
        %v850 = vunpack.c.l.bf16 %v293
        %v851 = vunpack.c.h.bf16 %v293
        %v852 = vunpack.c.l.bf16 %v294
        %v853 = vunpack.c.h.bf16 %v294
        %v854 = vunpack.c.l.bf16 %v295
        %v855 = vunpack.c.h.bf16 %v295
        %v856 = vunpack.c.l.bf16 %v296
        %v857 = vunpack.c.h.bf16 %v296
        %v858 = vunpack.c.l.bf16 %v297
        %v859 = vunpack.c.h.bf16 %v297
        %v860 = vunpack.c.l.bf16 %v298
        %v861 = vunpack.c.h.bf16 %v298
        %v862 = vunpack.c.l.bf16 %v299
        %v863 = vunpack.c.h.bf16 %v299
        %v864 = vunpack.c.l.bf16 %v300
        %v865 = vunpack.c.h.bf16 %v300
        %v866 = vunpack.c.l.bf16 %v301
        %v867 = vunpack.c.h.bf16 %v301
        %v868 = vunpack.c.l.bf16 %v302
        %v869 = vunpack.c.h.bf16 %v302
        %v870 = vunpack.c.l.bf16 %v303
        %v871 = vunpack.c.h.bf16 %v303
        %v872 = vunpack.c.l.bf16 %v304
        %v873 = vunpack.c.h.bf16 %v304
        %v874 = vunpack.c.l.bf16 %v305
        %v875 = vunpack.c.h.bf16 %v305
        %v876 = vunpack.c.l.bf16 %v306
        %v877 = vunpack.c.h.bf16 %v306
        %v878 = vunpack.c.l.bf16 %v307
        %v879 = vunpack.c.h.bf16 %v307
        %v880 = vunpack.c.l.bf16 %v308
        %v881 = vunpack.c.h.bf16 %v308
        %v882 = vunpack.c.l.bf16 %v309
        %v883 = vunpack.c.h.bf16 %v309
        %v884 = vunpack.c.l.bf16 %v310
        %v885 = vunpack.c.h.bf16 %v310
        %v886 = vunpack.c.l.bf16 %v311
        %v887 = vunpack.c.h.bf16 %v311
        %v888 = vunpack.c.l.bf16 %v312
        %v889 = vunpack.c.h.bf16 %v312
        %v890 = vunpack.c.l.bf16 %v313
        %v891 = vunpack.c.h.bf16 %v313
        %v892 = vunpack.c.l.bf16 %v314
        %v893 = vunpack.c.h.bf16 %v314
        %v894 = vunpack.c.l.bf16 %v315
        %v895 = vunpack.c.h.bf16 %v315
        %v896 = vunpack.c.l.bf16 %v316
        %v897 = vunpack.c.h.bf16 %v316
        %v898 = vunpack.c.l.bf16 %v317
        %v899 = vunpack.c.h.bf16 %v317
        %v900 = vunpack.c.l.bf16 %v318
        %v901 = vunpack.c.h.bf16 %v318
        %v902 = vunpack.c.l.bf16 %v319
        %v903 = vunpack.c.h.bf16 %v319
        %v904 = vunpack.c.l.bf16 %v320
        %v905 = vunpack.c.h.bf16 %v320
        %v906 = vunpack.c.l.bf16 %v321
        %v907 = vunpack.c.h.bf16 %v321
        %v908 = vunpack.c.l.bf16 %v322
        %v909 = vunpack.c.h.bf16 %v322
        %v910 = vunpack.c.l.bf16 %v323
        %v911 = vunpack.c.h.bf16 %v323
        %v912 = vunpack.c.l.bf16 %v324
        %v913 = vunpack.c.h.bf16 %v324
        %v914 = vunpack.c.l.bf16 %v325
        %v915 = vunpack.c.h.bf16 %v325
        %v916 = vunpack.c.l.bf16 %v326
        %v917 = vunpack.c.h.bf16 %v326
        %v918 = vunpack.c.l.bf16 %v327
        %v919 = vunpack.c.h.bf16 %v327
        %v920 = vunpack.c.l.bf16 %v328
        %v921 = vunpack.c.h.bf16 %v328
        %v922 = vunpack.c.l.bf16 %v329
        %v923 = vunpack.c.h.bf16 %v329
        %v924 = vunpack.c.l.bf16 %v330
        %v925 = vunpack.c.h.bf16 %v330
        %v926 = vunpack.c.l.bf16 %v331
        %v927 = vunpack.c.h.bf16 %v331
        %v928 = vunpack.c.l.bf16 %v332
        %v929 = vunpack.c.h.bf16 %v332
        %v930 = vunpack.c.l.bf16 %v333
        %v931 = vunpack.c.h.bf16 %v333
        %v932 = vunpack.c.l.bf16 %v334
        %v933 = vunpack.c.h.bf16 %v334
        %v934 = vunpack.c.l.bf16 %v335
        %v935 = vunpack.c.h.bf16 %v335
        %v936 = vunpack.c.l.bf16 %v336
        %v937 = vunpack.c.h.bf16 %v336
        %v938 = vunpack.c.l.bf16 %v337
        %v939 = vunpack.c.h.bf16 %v337
        %v940 = vunpack.c.l.bf16 %v338
        %v941 = vunpack.c.h.bf16 %v338
        %v942 = vunpack.c.l.bf16 %v339
        %v943 = vunpack.c.h.bf16 %v339
        %v944 = vunpack.c.l.bf16 %v340
        %v945 = vunpack.c.h.bf16 %v340
        %v946 = vunpack.c.l.bf16 %v341
        %v947 = vunpack.c.h.bf16 %v341
        %v948 = vunpack.c.l.bf16 %v342
        %v949 = vunpack.c.h.bf16 %v342
        %v950 = vunpack.c.l.bf16 %v343
        %v951 = vunpack.c.h.bf16 %v343
        %v952 = vunpack.c.l.bf16 %v344
        %v953 = vunpack.c.h.bf16 %v344
        %v954 = vunpack.c.l.bf16 %v345
        %v955 = vunpack.c.h.bf16 %v345
        %v956 = vunpack.c.l.bf16 %v346
        %v957 = vunpack.c.h.bf16 %v346
        %v958 = vunpack.c.l.bf16 %v347
        %v959 = vunpack.c.h.bf16 %v347
        %v960 = vunpack.c.l.bf16 %v348
        %v961 = vunpack.c.h.bf16 %v348
        %v962 = vunpack.c.l.bf16 %v349
        %v963 = vunpack.c.h.bf16 %v349
        %v964 = vunpack.c.l.bf16 %v350
        %v965 = vunpack.c.h.bf16 %v350
        %v966 = vunpack.c.l.bf16 %v351
        %v967 = vunpack.c.h.bf16 %v351
        %v968 = vunpack.c.l.bf16 %v352
        %v969 = vunpack.c.h.bf16 %v352
        %v970 = vunpack.c.l.bf16 %v353
        %v971 = vunpack.c.h.bf16 %v353
        %v972 = vunpack.c.l.bf16 %v354
        %v973 = vunpack.c.h.bf16 %v354
        %v974 = vunpack.c.l.bf16 %v355
        %v975 = vunpack.c.h.bf16 %v355
        %v976 = vunpack.c.l.bf16 %v356
        %v977 = vunpack.c.h.bf16 %v356
        %v978 = vunpack.c.l.bf16 %v357
        %v979 = vunpack.c.h.bf16 %v357
        %v980 = vunpack.c.l.bf16 %v358
        %v981 = vunpack.c.h.bf16 %v358
        %v982 = vunpack.c.l.bf16 %v359
        %v983 = vunpack.c.h.bf16 %v359
        %v984 = vunpack.c.l.bf16 %v360
        %v985 = vunpack.c.h.bf16 %v360
        %v986 = vunpack.c.l.bf16 %v361
        %v987 = vunpack.c.h.bf16 %v361
        %v988 = vunpack.c.l.bf16 %v362
        %v989 = vunpack.c.h.bf16 %v362
        %v990 = vunpack.c.l.bf16 %v363
        %v991 = vunpack.c.h.bf16 %v363
        %v992 = vunpack.c.l.bf16 %v364
        %v993 = vunpack.c.h.bf16 %v364
        %v994 = vunpack.c.l.bf16 %v365
        %v995 = vunpack.c.h.bf16 %v365
        %v996 = vunpack.c.l.bf16 %v366
        %v997 = vunpack.c.h.bf16 %v366
        %v998 = vunpack.c.l.bf16 %v367
        %v999 = vunpack.c.h.bf16 %v367
        %v1000 = vunpack.c.l.bf16 %v368
        %v1001 = vunpack.c.h.bf16 %v368
        %v1002 = vunpack.c.l.bf16 %v369
        %v1003 = vunpack.c.h.bf16 %v369
        %v1004 = vunpack.c.l.bf16 %v370
        %v1005 = vunpack.c.h.bf16 %v370
        %v1006 = vunpack.c.l.bf16 %v371
        %v1007 = vunpack.c.h.bf16 %v371
        %v1008 = vunpack.c.l.bf16 %v372
        %v1009 = vunpack.c.h.bf16 %v372
        %v1010 = vunpack.c.l.bf16 %v373
        %v1011 = vunpack.c.h.bf16 %v373
        %v1012 = vunpack.c.l.bf16 %v374
        %v1013 = vunpack.c.h.bf16 %v374
        %v1014 = vunpack.c.l.bf16 %v375
        %v1015 = vunpack.c.h.bf16 %v375
        %v1016 = vunpack.c.l.bf16 %v376
        %v1017 = vunpack.c.h.bf16 %v376
        %v1018 = vunpack.c.l.bf16 %v377
        %v1019 = vunpack.c.h.bf16 %v377
        %v1020 = vunpack.c.l.bf16 %v378
        %v1021 = vunpack.c.h.bf16 %v378
        %v1022 = vunpack.c.l.bf16 %v379
        %v1023 = vunpack.c.h.bf16 %v379
        %v1024 = vunpack.c.l.bf16 %v380
        %v1025 = vunpack.c.h.bf16 %v380
        %v1026 = vunpack.c.l.bf16 %v381
        %v1027 = vunpack.c.h.bf16 %v381
        %v1028 = vunpack.c.l.bf16 %v382
        %v1029 = vunpack.c.h.bf16 %v382
        %v1030 = vunpack.c.l.bf16 %v383
        %v1031 = vunpack.c.h.bf16 %v383
        %v1032 = vunpack.c.l.bf16 %v384
        %v1033 = vunpack.c.h.bf16 %v384
        %v1034 = vunpack.c.l.bf16 %v385
        %v1035 = vunpack.c.h.bf16 %v385
        %v1036 = vunpack.c.l.bf16 %v386
        %v1037 = vunpack.c.h.bf16 %v386
        %v1038 = vunpack.c.l.bf16 %v387
        %v1039 = vunpack.c.h.bf16 %v387
        %v1040 = vunpack.c.l.bf16 %v388
        %v1041 = vunpack.c.h.bf16 %v388
        %v1042 = vunpack.c.l.bf16 %v389
        %v1043 = vunpack.c.h.bf16 %v389
        %v1044 = vunpack.c.l.bf16 %v390
        %v1045 = vunpack.c.h.bf16 %v390
        %v1046 = vunpack.c.l.bf16 %v391
        %v1047 = vunpack.c.h.bf16 %v391
        %v1048 = vunpack.c.l.bf16 %v392
        %v1049 = vunpack.c.h.bf16 %v392
        %v1050 = vunpack.c.l.bf16 %v393
        %v1051 = vunpack.c.h.bf16 %v393
        %v1052 = vunpack.c.l.bf16 %v394
        %v1053 = vunpack.c.h.bf16 %v394
        %v1054 = vunpack.c.l.bf16 %v395
        %v1055 = vunpack.c.h.bf16 %v395
        %v1056 = vunpack.c.l.bf16 %v396
        %v1057 = vunpack.c.h.bf16 %v396
        %v1058 = vunpack.c.l.bf16 %v397
        %v1059 = vunpack.c.h.bf16 %v397
        %v1060 = vunpack.c.l.bf16 %v398
        %v1061 = vunpack.c.h.bf16 %v398
        %v1062 = vunpack.c.l.bf16 %v399
        %v1063 = vunpack.c.h.bf16 %v399
        %v1064 = vunpack.c.l.bf16 %v400
        %v1065 = vunpack.c.h.bf16 %v400
        %v1066 = vunpack.c.l.bf16 %v401
        %v1067 = vunpack.c.h.bf16 %v401
        %v1068 = vunpack.c.l.bf16 %v402
        %v1069 = vunpack.c.h.bf16 %v402
        %v1070 = vunpack.c.l.bf16 %v403
        %v1071 = vunpack.c.h.bf16 %v403
        %v1072 = vunpack.c.l.bf16 %v404
        %v1073 = vunpack.c.h.bf16 %v404
        %v1074 = vunpack.c.l.bf16 %v405
        %v1075 = vunpack.c.h.bf16 %v405
        %v1076 = vunpack.c.l.bf16 %v406
        %v1077 = vunpack.c.h.bf16 %v406
        %v1078 = vunpack.c.l.bf16 %v407
        %v1079 = vunpack.c.h.bf16 %v407
        %v1080 = vunpack.c.l.bf16 %v408
        %v1081 = vunpack.c.h.bf16 %v408
        %v1082 = vunpack.c.l.bf16 %v409
        %v1083 = vunpack.c.h.bf16 %v409
        %v1084 = vunpack.c.l.bf16 %v410
        %v1085 = vunpack.c.h.bf16 %v410
        %v1086 = vunpack.c.l.bf16 %v411
        %v1087 = vunpack.c.h.bf16 %v411
        %v1088 = vunpack.c.l.bf16 %v412
        %v1089 = vunpack.c.h.bf16 %v412
        %v1090 = vunpack.c.l.bf16 %v413
        %v1091 = vunpack.c.h.bf16 %v413
        %v1092 = vunpack.c.l.bf16 %v414
        %v1093 = vunpack.c.h.bf16 %v414
        %v1094 = vunpack.c.l.bf16 %v415
        %v1095 = vunpack.c.h.bf16 %v415
        %v1096 = vunpack.c.l.bf16 %v416
        %v1097 = vunpack.c.h.bf16 %v416
        %v1098 = vunpack.c.l.bf16 %v417
        %v1099 = vunpack.c.h.bf16 %v417
        %v1100 = vunpack.c.l.bf16 %v418
        %v1101 = vunpack.c.h.bf16 %v418
        %v1102 = vunpack.c.l.bf16 %v419
        %v1103 = vunpack.c.h.bf16 %v419
        %v1104 = vunpack.c.l.bf16 %v420
        %v1105 = vunpack.c.h.bf16 %v420
        %v1106 = vunpack.c.l.bf16 %v421
        %v1107 = vunpack.c.h.bf16 %v421
        %v1108 = vunpack.c.l.bf16 %v422
        %v1109 = vunpack.c.h.bf16 %v422
        %v1110 = vunpack.c.l.bf16 %v423
        %v1111 = vunpack.c.h.bf16 %v423
        %v1112 = vunpack.c.l.bf16 %v424
        %v1113 = vunpack.c.h.bf16 %v424
        %v1114 = vunpack.c.l.bf16 %v425
        %v1115 = vunpack.c.h.bf16 %v425
        %v1116 = vunpack.c.l.bf16 %v426
        %v1117 = vunpack.c.h.bf16 %v426
        %v1118 = vunpack.c.l.bf16 %v427
        %v1119 = vunpack.c.h.bf16 %v427
        %v1120 = vunpack.c.l.bf16 %v428
        %v1121 = vunpack.c.h.bf16 %v428
        %v1122 = vunpack.c.l.bf16 %v429
        %v1123 = vunpack.c.h.bf16 %v429
        %v1124 = vunpack.c.l.bf16 %v430
        %v1125 = vunpack.c.h.bf16 %v430
        %v1126 = vunpack.c.l.bf16 %v431
        %v1127 = vunpack.c.h.bf16 %v431
        %v1128 = vunpack.c.l.bf16 %v432
        %v1129 = vunpack.c.h.bf16 %v432
        %v1130 = vunpack.c.l.bf16 %v433
        %v1131 = vunpack.c.h.bf16 %v433
        %v1132 = vunpack.c.l.bf16 %v434
        %v1133 = vunpack.c.h.bf16 %v434
        %v1134 = vunpack.c.l.bf16 %v435
        %v1135 = vunpack.c.h.bf16 %v435
        %v1136 = vunpack.c.l.bf16 %v436
        %v1137 = vunpack.c.h.bf16 %v436
        %v1138 = vunpack.c.l.bf16 %v437
        %v1139 = vunpack.c.h.bf16 %v437
        %v1140 = vunpack.c.l.bf16 %v438
        %v1141 = vunpack.c.h.bf16 %v438
        %v1142 = vunpack.c.l.bf16 %v439
        %v1143 = vunpack.c.h.bf16 %v439
        %v1144 = vunpack.c.l.bf16 %v440
        %v1145 = vunpack.c.h.bf16 %v440
        %v1146 = vunpack.c.l.bf16 %v441
        %v1147 = vunpack.c.h.bf16 %v441
        %v1148 = vunpack.c.l.bf16 %v442
        %v1149 = vunpack.c.h.bf16 %v442
        %v1150 = vunpack.c.l.bf16 %v443
        %v1151 = vunpack.c.h.bf16 %v443
        %v1152 = vunpack.c.l.bf16 %v444
        %v1153 = vunpack.c.h.bf16 %v444
        %v1154 = vunpack.c.l.bf16 %v445
        %v1155 = vunpack.c.h.bf16 %v445
        %v1156 = vunpack.c.l.bf16 %v446
        %v1157 = vunpack.c.h.bf16 %v446
        %v1158 = vunpack.c.l.bf16 %v447
        %v1159 = vunpack.c.h.bf16 %v447
        %v1160 = vunpack.c.l.bf16 %v448
        %v1161 = vunpack.c.h.bf16 %v448
        %v1162 = vunpack.c.l.bf16 %v449
        %v1163 = vunpack.c.h.bf16 %v449
        %v1164 = vunpack.c.l.bf16 %v450
        %v1165 = vunpack.c.h.bf16 %v450
        %v1166 = vunpack.c.l.bf16 %v451
        %v1167 = vunpack.c.h.bf16 %v451
        %v1168 = vunpack.c.l.bf16 %v452
        %v1169 = vunpack.c.h.bf16 %v452
        %v1170 = vunpack.c.l.bf16 %v453
        %v1171 = vunpack.c.h.bf16 %v453
        %v1172 = vunpack.c.l.bf16 %v454
        %v1173 = vunpack.c.h.bf16 %v454
        %v1174 = vunpack.c.l.bf16 %v455
        %v1175 = vunpack.c.h.bf16 %v455
        %v1176 = vunpack.c.l.bf16 %v456
        %v1177 = vunpack.c.h.bf16 %v456
        %v1178 = vunpack.c.l.bf16 %v457
        %v1179 = vunpack.c.h.bf16 %v457
        %v1180 = vunpack.c.l.bf16 %v458
        %v1181 = vunpack.c.h.bf16 %v458
        %v1182 = vunpack.c.l.bf16 %v459
        %v1183 = vunpack.c.h.bf16 %v459
        %v1184 = vunpack.c.l.bf16 %v460
        %v1185 = vunpack.c.h.bf16 %v460
        %v1186 = vunpack.c.l.bf16 %v461
        %v1187 = vunpack.c.h.bf16 %v461
        %v1188 = vunpack.c.l.bf16 %v462
        %v1189 = vunpack.c.h.bf16 %v462
        %v1190 = vunpack.c.l.bf16 %v463
        %v1191 = vunpack.c.h.bf16 %v463
        %v1192 = vunpack.c.l.bf16 %v464
        %v1193 = vunpack.c.h.bf16 %v464
        %v1194 = vunpack.c.l.bf16 %v465
        %v1195 = vunpack.c.h.bf16 %v465
        %v1196 = vunpack.c.l.bf16 %v466
        %v1197 = vunpack.c.h.bf16 %v466
        %v1198 = vunpack.c.l.bf16 %v467
        %v1199 = vunpack.c.h.bf16 %v467
        %v1200 = vunpack.c.l.bf16 %v468
        %v1201 = vunpack.c.h.bf16 %v468
        %v1202 = vunpack.c.l.bf16 %v469
        %v1203 = vunpack.c.h.bf16 %v469
        %v1204 = vunpack.c.l.bf16 %v470
        %v1205 = vunpack.c.h.bf16 %v470
        %v1206 = vunpack.c.l.bf16 %v471
        %v1207 = vunpack.c.h.bf16 %v471
        %v1208 = vunpack.c.l.bf16 %v472
        %v1209 = vunpack.c.h.bf16 %v472
        %v1210 = vunpack.c.l.bf16 %v473
        %v1211 = vunpack.c.h.bf16 %v473
        %v1212 = vunpack.c.l.bf16 %v474
        %v1213 = vunpack.c.h.bf16 %v474
        %v1214 = vunpack.c.l.bf16 %v475
        %v1215 = vunpack.c.h.bf16 %v475
        %v1216 = vunpack.c.l.bf16 %v476
        %v1217 = vunpack.c.h.bf16 %v476
        %v1218 = vunpack.c.l.bf16 %v477
        %v1219 = vunpack.c.h.bf16 %v477
        %v1220 = vunpack.c.l.bf16 %v478
        %v1221 = vunpack.c.h.bf16 %v478
        %v1222 = vunpack.c.l.bf16 %v479
        %v1223 = vunpack.c.h.bf16 %v479
        %v1224 = vunpack.c.l.bf16 %v480
        %v1225 = vunpack.c.h.bf16 %v480
        %v1226 = vunpack.c.l.bf16 %v481
        %v1227 = vunpack.c.h.bf16 %v481
        %v1228 = vunpack.c.l.bf16 %v482
        %v1229 = vunpack.c.h.bf16 %v482
        %v1230 = vunpack.c.l.bf16 %v483
        %v1231 = vunpack.c.h.bf16 %v483
        %v1232 = vunpack.c.l.bf16 %v484
        %v1233 = vunpack.c.h.bf16 %v484
        %v1234 = vunpack.c.l.bf16 %v485
        %v1235 = vunpack.c.h.bf16 %v485
        %v1236 = vunpack.c.l.bf16 %v486
        %v1237 = vunpack.c.h.bf16 %v486
        %v1238 = vunpack.c.l.bf16 %v487
        %v1239 = vunpack.c.h.bf16 %v487
        %v1240 = vunpack.c.l.bf16 %v488
        %v1241 = vunpack.c.h.bf16 %v488
        %v1242 = vunpack.c.l.bf16 %v489
        %v1243 = vunpack.c.h.bf16 %v489
        %v1244 = vunpack.c.l.bf16 %v490
        %v1245 = vunpack.c.h.bf16 %v490
        %v1246 = vunpack.c.l.bf16 %v491
        %v1247 = vunpack.c.h.bf16 %v491
        %v1248 = vunpack.c.l.bf16 %v492
        %v1249 = vunpack.c.h.bf16 %v492
        %v1250 = vunpack.c.l.bf16 %v493
        %v1251 = vunpack.c.h.bf16 %v493
        %v1252 = vunpack.c.l.bf16 %v494
        %v1253 = vunpack.c.h.bf16 %v494
        %v1254 = vunpack.c.l.bf16 %v495
        %v1255 = vunpack.c.h.bf16 %v495
        %v1256 = vunpack.c.l.bf16 %v496
        %v1257 = vunpack.c.h.bf16 %v496
        %v1258 = vunpack.c.l.bf16 %v497
        %v1259 = vunpack.c.h.bf16 %v497
        %v1260 = vunpack.c.l.bf16 %v498
        %v1261 = vunpack.c.h.bf16 %v498
        %v1262 = vunpack.c.l.bf16 %v499
        %v1263 = vunpack.c.h.bf16 %v499
        %v1264 = vunpack.c.l.bf16 %v500
        %v1265 = vunpack.c.h.bf16 %v500
        %v1266 = vunpack.c.l.bf16 %v501
        %v1267 = vunpack.c.h.bf16 %v501
        %v1268 = vunpack.c.l.bf16 %v502
        %v1269 = vunpack.c.h.bf16 %v502
        %v1270 = vunpack.c.l.bf16 %v503
        %v1271 = vunpack.c.h.bf16 %v503
        %v1272 = vunpack.c.l.bf16 %v504
        %v1273 = vunpack.c.h.bf16 %v504
        %v1274 = vunpack.c.l.bf16 %v505
        %v1275 = vunpack.c.h.bf16 %v505
        %v1276 = vunpack.c.l.bf16 %v506
        %v1277 = vunpack.c.h.bf16 %v506
        %v1278 = vunpack.c.l.bf16 %v507
        %v1279 = vunpack.c.h.bf16 %v507
        %v1280 = vunpack.c.l.bf16 %v508
        %v1281 = vunpack.c.h.bf16 %v508
        %v1282 = vunpack.c.l.bf16 %v509
        %v1283 = vunpack.c.h.bf16 %v509
        %v1284 = vunpack.c.l.bf16 %v510
        %v1285 = vunpack.c.h.bf16 %v510
        %v1286 = vunpack.c.l.bf16 %v511
        %v1287 = vunpack.c.h.bf16 %v511
        %v1288 = vunpack.c.l.bf16 %v512
        %v1289 = vunpack.c.h.bf16 %v512
        %v1290 = vunpack.c.l.bf16 %v513
        %v1291 = vunpack.c.h.bf16 %v513
        %v1292 = vunpack.c.l.bf16 %v514
        %v1293 = vunpack.c.h.bf16 %v514
        %v1294 = vunpack.c.l.bf16 %v515
        %v1295 = vunpack.c.h.bf16 %v515
        %v1296 = vunpack.c.l.bf16 %v516
        %v1297 = vunpack.c.h.bf16 %v516
        %v1298 = vunpack.c.l.bf16 %v517
        %v1299 = vunpack.c.h.bf16 %v517
        %v1300 = vunpack.c.l.bf16 %v518
        %v1301 = vunpack.c.h.bf16 %v518
        %v1302 = vunpack.c.l.bf16 %v519
        %v1303 = vunpack.c.h.bf16 %v519
        %v1304 = vunpack.c.l.bf16 %v520
        %v1305 = vunpack.c.h.bf16 %v520
        %v1306 = vunpack.c.l.bf16 %v521
        %v1307 = vunpack.c.h.bf16 %v521
        %v1308 = vunpack.c.l.bf16 %v522
        %v1309 = vunpack.c.h.bf16 %v522
        %v1310 = vunpack.c.l.bf16 %v523
        %v1311 = vunpack.c.h.bf16 %v523
        %v1312 = vunpack.c.l.bf16 %v524
        %v1313 = vunpack.c.h.bf16 %v524
        %v1314 = vunpack.c.l.bf16 %v525
        %v1315 = vunpack.c.h.bf16 %v525
        %v1316 = vunpack.c.l.bf16 %v526
        %v1317 = vunpack.c.h.bf16 %v526
        %v1318 = vunpack.c.l.bf16 %v527
        %v1319 = vunpack.c.h.bf16 %v527
        %v1320 = vunpack.c.l.bf16 %v528
        %v1321 = vunpack.c.h.bf16 %v528
        %v1322 = vunpack.c.l.bf16 %v529
        %v1323 = vunpack.c.h.bf16 %v529
        %v1324 = vunpack.c.l.bf16 %v530
        %v1325 = vunpack.c.h.bf16 %v530
        %v1326 = vunpack.c.l.bf16 %v531
        %v1327 = vunpack.c.h.bf16 %v531
        %v1328 = vunpack.c.l.bf16 %v532
        %v1329 = vunpack.c.h.bf16 %v532
        %v1330 = vunpack.c.l.bf16 %v533
        %v1331 = vunpack.c.h.bf16 %v533
        %v1332 = vunpack.c.l.bf16 %v534
        %v1333 = vunpack.c.h.bf16 %v534
        %v1334 = vunpack.c.l.bf16 %v535
        %v1335 = vunpack.c.h.bf16 %v535
        %v1336 = vunpack.c.l.bf16 %v536
        %v1337 = vunpack.c.h.bf16 %v536
        %v1338 = vunpack.c.l.bf16 %v537
        %v1339 = vunpack.c.h.bf16 %v537
        %v1340 = vunpack.c.l.bf16 %v538
        %v1341 = vunpack.c.h.bf16 %v538
        %v1342 = vunpack.c.l.bf16 %v539
        %v1343 = vunpack.c.h.bf16 %v539
        %v1344 = vunpack.c.l.bf16 %v540
        %v1345 = vunpack.c.h.bf16 %v540
        %v1346 = vunpack.c.l.bf16 %v541
        %v1347 = vunpack.c.h.bf16 %v541
        %v1348 = vunpack.c.l.bf16 %v542
        %v1349 = vunpack.c.h.bf16 %v542
        %v1350 = vunpack.c.l.bf16 %v543
        %v1351 = vunpack.c.h.bf16 %v543
        %v1352 = vunpack.c.l.bf16 %v544
        %v1353 = vunpack.c.h.bf16 %v544
        %v1354 = vunpack.c.l.bf16 %v545
        %v1355 = vunpack.c.h.bf16 %v545
        %v1356 = vunpack.c.l.bf16 %v546
        %v1357 = vunpack.c.h.bf16 %v546
        %v1358 = vunpack.c.l.bf16 %v547
        %v1359 = vunpack.c.h.bf16 %v547
        %v1360 = vunpack.c.l.bf16 %v548
        %v1361 = vunpack.c.h.bf16 %v548
        %v1362 = vunpack.c.l.bf16 %v549
        %v1363 = vunpack.c.h.bf16 %v549
        %v1364 = vunpack.c.l.bf16 %v550
        %v1365 = vunpack.c.h.bf16 %v550
        %v1366 = vunpack.c.l.bf16 %v551
        %v1367 = vunpack.c.h.bf16 %v551
        %v1368 = vunpack.c.l.bf16 %v552
        %v1369 = vunpack.c.h.bf16 %v552
        %v1370 = vunpack.c.l.bf16 %v553
        %v1371 = vunpack.c.h.bf16 %v553
        %v1372 = vunpack.c.l.bf16 %v554
        %v1373 = vunpack.c.h.bf16 %v554
        %v1374 = vunpack.c.l.bf16 %v555
        %v1375 = vunpack.c.h.bf16 %v555
        %v1376 = vunpack.c.l.bf16 %v556
        %v1377 = vunpack.c.h.bf16 %v556
        %v1378 = vunpack.c.l.bf16 %v557
        %v1379 = vunpack.c.h.bf16 %v557
        %v1380 = vunpack.c.l.bf16 %v558
        %v1381 = vunpack.c.h.bf16 %v558
        %v1382 = vunpack.c.l.bf16 %v559
        %v1383 = vunpack.c.h.bf16 %v559
        %v1384 = vunpack.c.l.bf16 %v560
        %v1385 = vunpack.c.h.bf16 %v560
        %v1386 = vunpack.c.l.bf16 %v561
        %v1387 = vunpack.c.h.bf16 %v561
        %v1388 = vunpack.c.l.bf16 %v562
        %v1389 = vunpack.c.h.bf16 %v562
        %v1390 = vunpack.c.l.bf16 %v563
        %v1391 = vunpack.c.h.bf16 %v563
        %v1392 = vunpack.c.l.bf16 %v564
        %v1393 = vunpack.c.h.bf16 %v564
        %v1394 = vunpack.c.l.bf16 %v565
        %v1395 = vunpack.c.h.bf16 %v565
        %v1396 = vunpack.c.l.bf16 %v566
        %v1397 = vunpack.c.h.bf16 %v566
        %v1398 = vunpack.c.l.bf16 %v567
        %v1399 = vunpack.c.h.bf16 %v567
        %v1400 = vunpack.c.l.bf16 %v568
        %v1401 = vunpack.c.h.bf16 %v568
        %v1402 = vunpack.c.l.bf16 %v569
        %v1403 = vunpack.c.h.bf16 %v569
        %v1404 = vunpack.c.l.bf16 %v570
        %v1405 = vunpack.c.h.bf16 %v570
        %v1406 = vunpack.c.l.bf16 %v571
        %v1407 = vunpack.c.h.bf16 %v571
        %v1408 = vunpack.c.l.bf16 %v572
        %v1409 = vunpack.c.h.bf16 %v572
        %v1410 = vunpack.c.l.bf16 %v573
        %v1411 = vunpack.c.h.bf16 %v573
        %v1412 = vunpack.c.l.bf16 %v574
        %v1413 = vunpack.c.h.bf16 %v574
        %v1414 = vunpack.c.l.bf16 %v575
        %v1415 = vunpack.c.h.bf16 %v575
        %v1416 = vunpack.c.l.bf16 %v576
        %v1417 = vunpack.c.h.bf16 %v576
        %v1418 = vunpack.c.l.bf16 %v577
        %v1419 = vunpack.c.h.bf16 %v577
        %v1420 = vunpack.c.l.bf16 %v578
        %v1421 = vunpack.c.h.bf16 %v578
        %v1422 = vunpack.c.l.bf16 %v579
        %v1423 = vunpack.c.h.bf16 %v579
        %v1424 = vunpack.c.l.bf16 %v580
        %v1425 = vunpack.c.h.bf16 %v580
        %v1426 = vunpack.c.l.bf16 %v581
        %v1427 = vunpack.c.h.bf16 %v581
        %v1428 = vunpack.c.l.bf16 %v582
        %v1429 = vunpack.c.h.bf16 %v582
        %v1430 = vunpack.c.l.bf16 %v583
        %v1431 = vunpack.c.h.bf16 %v583
        %v1432 = vunpack.c.l.bf16 %v584
        %v1433 = vunpack.c.h.bf16 %v584
        %v1434 = vunpack.c.l.bf16 %v585
        %v1435 = vunpack.c.h.bf16 %v585
        %v1436 = vunpack.c.l.bf16 %v586
        %v1437 = vunpack.c.h.bf16 %v586
        %v1438 = vunpack.c.l.bf16 %v587
        %v1439 = vunpack.c.h.bf16 %v587
        %v1440 = vunpack.c.l.bf16 %v588
        %v1441 = vunpack.c.h.bf16 %v588
        %v1442 = vunpack.c.l.bf16 %v589
        %v1443 = vunpack.c.h.bf16 %v589
        %v1444 = vunpack.c.l.bf16 %v590
        %v1445 = vunpack.c.h.bf16 %v590
        %v1446 = vunpack.c.l.bf16 %v591
        %v1447 = vunpack.c.h.bf16 %v591
        %v1448 = vunpack.c.l.bf16 %v592
        %v1449 = vunpack.c.h.bf16 %v592
        %v1450 = vunpack.c.l.bf16 %v593
        %v1451 = vunpack.c.h.bf16 %v593
        %v1452 = vunpack.c.l.bf16 %v594
        %v1453 = vunpack.c.h.bf16 %v594
        %v1454 = vunpack.c.l.bf16 %v595
        %v1455 = vunpack.c.h.bf16 %v595
        %v1456 = vunpack.c.l.bf16 %v596
        %v1457 = vunpack.c.h.bf16 %v596
        %v1458 = vunpack.c.l.bf16 %v597
        %v1459 = vunpack.c.h.bf16 %v597
        %v1460 = vunpack.c.l.bf16 %v598
        %v1461 = vunpack.c.h.bf16 %v598
        %v1462 = vunpack.c.l.bf16 %v599
        %v1463 = vunpack.c.h.bf16 %v599
        %v1464 = vunpack.c.l.bf16 %v600
        %v1465 = vunpack.c.h.bf16 %v600
        %v1466 = vunpack.c.l.bf16 %v601
        %v1467 = vunpack.c.h.bf16 %v601
        %v1468 = vunpack.c.l.bf16 %v602
        %v1469 = vunpack.c.h.bf16 %v602
        %v1470 = vunpack.c.l.bf16 %v603
        %v1471 = vunpack.c.h.bf16 %v603
        %v1472 = vunpack.c.l.bf16 %v604
        %v1473 = vunpack.c.h.bf16 %v604
        %v1474 = vunpack.c.l.bf16 %v605
        %v1475 = vunpack.c.h.bf16 %v605
        %v1476 = vunpack.c.l.bf16 %v606
        %v1477 = vunpack.c.h.bf16 %v606
        %v1478 = vunpack.c.l.bf16 %v607
        %v1479 = vunpack.c.h.bf16 %v607
        %v1480 = vunpack.c.l.bf16 %v608
        %v1481 = vunpack.c.h.bf16 %v608
        %v1482 = vunpack.c.l.bf16 %v609
        %v1483 = vunpack.c.h.bf16 %v609
        %v1484 = vunpack.c.l.bf16 %v610
        %v1485 = vunpack.c.h.bf16 %v610
        %v1486 = vunpack.c.l.bf16 %v611
        %v1487 = vunpack.c.h.bf16 %v611
        %v1488 = vunpack.c.l.bf16 %v612
        %v1489 = vunpack.c.h.bf16 %v612
        %v1490 = vunpack.c.l.bf16 %v613
        %v1491 = vunpack.c.h.bf16 %v613
        %v1492 = vunpack.c.l.bf16 %v614
        %v1493 = vunpack.c.h.bf16 %v614
        %v1494 = vunpack.c.l.bf16 %v615
        %v1495 = vunpack.c.h.bf16 %v615
        %v1496 = vunpack.c.l.bf16 %v616
        %v1497 = vunpack.c.h.bf16 %v616
        %v1498 = vunpack.c.l.bf16 %v617
        %v1499 = vunpack.c.h.bf16 %v617
        %v1500 = vunpack.c.l.bf16 %v618
        %v1501 = vunpack.c.h.bf16 %v618
        %v1502 = vunpack.c.l.bf16 %v619
        %v1503 = vunpack.c.h.bf16 %v619
        %v1504 = vunpack.c.l.bf16 %v620
        %v1505 = vunpack.c.h.bf16 %v620
        %v1506 = vunpack.c.l.bf16 %v621
        %v1507 = vunpack.c.h.bf16 %v621
        %v1508 = vunpack.c.l.bf16 %v622
        %v1509 = vunpack.c.h.bf16 %v622
        %v1510 = vunpack.c.l.bf16 %v623
        %v1511 = vunpack.c.h.bf16 %v623
        %v1512 = vunpack.c.l.bf16 %v624
        %v1513 = vunpack.c.h.bf16 %v624
        %v1514 = vunpack.c.l.bf16 %v625
        %v1515 = vunpack.c.h.bf16 %v625
        %v1516 = vunpack.c.l.bf16 %v626
        %v1517 = vunpack.c.h.bf16 %v626
        %v1518 = vunpack.c.l.bf16 %v627
        %v1519 = vunpack.c.h.bf16 %v627
        %v1520 = vunpack.c.l.bf16 %v628
        %v1521 = vunpack.c.h.bf16 %v628
        %v1522 = vunpack.c.l.bf16 %v629
        %v1523 = vunpack.c.h.bf16 %v629
        %v1524 = vunpack.c.l.bf16 %v630
        %v1525 = vunpack.c.h.bf16 %v630
        %v1526 = vunpack.c.l.bf16 %v631
        %v1527 = vunpack.c.h.bf16 %v631
        %v1528 = vunpack.c.l.bf16 %v632
        %v1529 = vunpack.c.h.bf16 %v632
        %v1530 = vunpack.c.l.bf16 %v633
        %v1531 = vunpack.c.h.bf16 %v633
        %v1532 = vunpack.c.l.bf16 %v634
        %v1533 = vunpack.c.h.bf16 %v634
        %v1534 = vunpack.c.l.bf16 %v635
        %v1535 = vunpack.c.h.bf16 %v635
        %v1536 = vunpack.c.l.bf16 %v636
        %v1537 = vunpack.c.h.bf16 %v636
        %v1538 = vunpack.c.l.bf16 %v637
        %v1539 = vunpack.c.h.bf16 %v637
        %v1540 = vunpack.c.l.bf16 %v638
        %v1541 = vunpack.c.h.bf16 %v638
        %v1542 = vunpack.c.l.bf16 %v639
        %v1543 = vunpack.c.h.bf16 %v639
        %v1544 = vunpack.c.l.bf16 %v640
        %v1545 = vunpack.c.h.bf16 %v640
        %v1546 = vunpack.c.l.bf16 %v641
        %v1547 = vunpack.c.h.bf16 %v641
        %v1548 = vunpack.c.l.bf16 %v642
        %v1549 = vunpack.c.h.bf16 %v642
        %v1550 = vunpack.c.l.bf16 %v643
        %v1551 = vunpack.c.h.bf16 %v643
        %v1552 = vunpack.c.l.bf16 %v644
        %v1553 = vunpack.c.h.bf16 %v644
        %v1554 = vunpack.c.l.bf16 %v645
        %v1555 = vunpack.c.h.bf16 %v645
        %v1556 = vunpack.c.l.bf16 %v646
        %v1557 = vunpack.c.h.bf16 %v646
        %v1558 = vunpack.c.l.bf16 %v647
        %v1559 = vunpack.c.h.bf16 %v647
        %v1560 = vunpack.c.l.bf16 %v648
        %v1561 = vunpack.c.h.bf16 %v648
        %v1562 = vunpack.c.l.bf16 %v649
        %v1563 = vunpack.c.h.bf16 %v649
        %v1564 = vunpack.c.l.bf16 %v650
        %v1565 = vunpack.c.h.bf16 %v650
        %v1566 = vunpack.c.l.bf16 %v651
        %v1567 = vunpack.c.h.bf16 %v651
        %v1568 = vunpack.c.l.bf16 %v652
        %v1569 = vunpack.c.h.bf16 %v652
        %v1570 = vunpack.c.l.bf16 %v653
        %v1571 = vunpack.c.h.bf16 %v653
        %v1572 = vunpack.c.l.bf16 %v654
        %v1573 = vunpack.c.h.bf16 %v654
        %v1574 = vunpack.c.l.bf16 %v655
        %v1575 = vunpack.c.h.bf16 %v655
        %v1576 = vunpack.c.l.bf16 %v656
        %v1577 = vunpack.c.h.bf16 %v656
        %v1578 = vunpack.c.l.bf16 %v657
        %v1579 = vunpack.c.h.bf16 %v657
        %v1580 = vunpack.c.l.bf16 %v658
        %v1581 = vunpack.c.h.bf16 %v658
        %v1582 = vunpack.c.l.bf16 %v659
        %v1583 = vunpack.c.h.bf16 %v659
        %v1584 = vunpack.c.l.bf16 %v660
        %v1585 = vunpack.c.h.bf16 %v660
        %v1586 = vunpack.c.l.bf16 %v661
        %v1587 = vunpack.c.h.bf16 %v661
        %v1588 = vunpack.c.l.bf16 %v662
        %v1589 = vunpack.c.h.bf16 %v662
        %v1590 = vunpack.c.l.bf16 %v663
        %v1591 = vunpack.c.h.bf16 %v663
        %v1592 = vunpack.c.l.bf16 %v664
        %v1593 = vunpack.c.h.bf16 %v664
        %v1594 = vunpack.c.l.bf16 %v665
        %v1595 = vunpack.c.h.bf16 %v665
        %v1596 = vunpack.c.l.bf16 %v666
        %v1597 = vunpack.c.h.bf16 %v666
        %v1598 = vunpack.c.l.bf16 %v667
        %v1599 = vunpack.c.h.bf16 %v667
        %v1600 = vunpack.c.l.bf16 %v668
        %v1601 = vunpack.c.h.bf16 %v668
        %v1602 = vunpack.c.l.bf16 %v669
        %v1603 = vunpack.c.h.bf16 %v669
        %v1604 = vunpack.c.l.bf16 %v670
        %v1605 = vunpack.c.h.bf16 %v670
        %v1606 = vunpack.c.l.bf16 %v671
        %v1607 = vunpack.c.h.bf16 %v671
        %v1608 = vunpack.c.l.bf16 %v672
        %v1609 = vunpack.c.h.bf16 %v672
        %v1610 = vunpack.c.l.bf16 %v673
        %v1611 = vunpack.c.h.bf16 %v673
        %v1612 = vunpack.c.l.bf16 %v674
        %v1613 = vunpack.c.h.bf16 %v674
        %v1614 = vunpack.c.l.bf16 %v675
        %v1615 = vunpack.c.h.bf16 %v675
        %v1616 = vunpack.c.l.bf16 %v676
        %v1617 = vunpack.c.h.bf16 %v676
        %v1618 = vunpack.c.l.bf16 %v677
        %v1619 = vunpack.c.h.bf16 %v677
        %v1620 = vunpack.c.l.bf16 %v678
        %v1621 = vunpack.c.h.bf16 %v678
        %v1622 = vunpack.c.l.bf16 %v679
        %v1623 = vunpack.c.h.bf16 %v679
        %v1624 = vunpack.c.l.bf16 %v680
        %v1625 = vunpack.c.h.bf16 %v680
        %v1626 = vunpack.c.l.bf16 %v681
        %v1627 = vunpack.c.h.bf16 %v681
        %v1628 = vunpack.c.l.bf16 %v682
        %v1629 = vunpack.c.h.bf16 %v682
        %v1630 = vunpack.c.l.bf16 %v683
        %v1631 = vunpack.c.h.bf16 %v683
        %v1632 = vunpack.c.l.bf16 %v684
        %v1633 = vunpack.c.h.bf16 %v684
        %v1634 = vunpack.c.l.bf16 %v685
        %v1635 = vunpack.c.h.bf16 %v685
        %v1636 = vunpack.c.l.bf16 %v686
        %v1637 = vunpack.c.h.bf16 %v686
        %v1638 = vunpack.c.l.bf16 %v687
        %v1639 = vunpack.c.h.bf16 %v687
        %v1640 = vunpack.c.l.bf16 %v688
        %v1641 = vunpack.c.h.bf16 %v688
        %v1642 = vunpack.c.l.bf16 %v689
        %v1643 = vunpack.c.h.bf16 %v689
        %v1644 = vunpack.c.l.bf16 %v690
        %v1645 = vunpack.c.h.bf16 %v690
        %v1646 = vunpack.c.l.bf16 %v691
        %v1647 = vunpack.c.h.bf16 %v691
        %v1648 = vunpack.c.l.bf16 %v692
        %v1649 = vunpack.c.h.bf16 %v692
        %v1650 = vunpack.c.l.bf16 %v693
        %v1651 = vunpack.c.h.bf16 %v693
        %v1652 = vunpack.c.l.bf16 %v694
        %v1653 = vunpack.c.h.bf16 %v694
        %v1654 = vunpack.c.l.bf16 %v695
        %v1655 = vunpack.c.h.bf16 %v695
        %v1656 = vunpack.c.l.bf16 %v696
        %v1657 = vunpack.c.h.bf16 %v696
        %v1658 = vunpack.c.l.bf16 %v697
        %v1659 = vunpack.c.h.bf16 %v697
        %v1660 = vunpack.c.l.bf16 %v698
        %v1661 = vunpack.c.h.bf16 %v698
        %v1662 = vunpack.c.l.bf16 %v699
        %v1663 = vunpack.c.h.bf16 %v699
        %v1664 = vunpack.c.l.bf16 %v700
        %v1665 = vunpack.c.h.bf16 %v700
        %v1666 = vunpack.c.l.bf16 %v701
        %v1667 = vunpack.c.h.bf16 %v701
        %v1668 = vunpack.c.l.bf16 %v702
        %v1669 = vunpack.c.h.bf16 %v702
        %v1670 = vunpack.c.l.bf16 %v703
        %v1671 = vunpack.c.h.bf16 %v703
        %v1672 = vunpack.c.l.bf16 %v704
        %v1673 = vunpack.c.h.bf16 %v704
        %v1674 = vunpack.c.l.bf16 %v705
        %v1675 = vunpack.c.h.bf16 %v705
        %v1676 = vunpack.c.l.bf16 %v706
        %v1677 = vunpack.c.h.bf16 %v706
        %v1678 = vunpack.c.l.bf16 %v707
        %v1679 = vunpack.c.h.bf16 %v707
        %v1680 = vunpack.c.l.bf16 %v708
        %v1681 = vunpack.c.h.bf16 %v708
        %v1682 = vunpack.c.l.bf16 %v709
        %v1683 = vunpack.c.h.bf16 %v709
        %v1684 = vunpack.c.l.bf16 %v710
        %v1685 = vunpack.c.h.bf16 %v710
        %v1686 = vunpack.c.l.bf16 %v711
        %v1687 = vunpack.c.h.bf16 %v711
        %v1688 = vunpack.c.l.bf16 %v712
        %v1689 = vunpack.c.h.bf16 %v712
        %v1690 = vunpack.c.l.bf16 %v713
        %v1691 = vunpack.c.h.bf16 %v713
        %v1692 = vunpack.c.l.bf16 %v714
        %v1693 = vunpack.c.h.bf16 %v714
        %v1694 = vunpack.c.l.bf16 %v715
        %v1695 = vunpack.c.h.bf16 %v715
        %v1696 = vunpack.c.l.bf16 %v716
        %v1697 = vunpack.c.h.bf16 %v716
        %v1698 = vunpack.c.l.bf16 %v717
        %v1699 = vunpack.c.h.bf16 %v717
        %v1700 = vunpack.c.l.bf16 %v718
        %v1701 = vunpack.c.h.bf16 %v718
        %v1702 = vunpack.c.l.bf16 %v719
        %v1703 = vunpack.c.h.bf16 %v719
        %v1704 = vunpack.c.l.bf16 %v720
        %v1705 = vunpack.c.h.bf16 %v720
        %v1706 = vunpack.c.l.bf16 %v721
        %v1707 = vunpack.c.h.bf16 %v721
        %v1708 = vunpack.c.l.bf16 %v722
        %v1709 = vunpack.c.h.bf16 %v722
        %v1710 = vunpack.c.l.bf16 %v723
        %v1711 = vunpack.c.h.bf16 %v723
        %v1712 = vunpack.c.l.bf16 %v724
        %v1713 = vunpack.c.h.bf16 %v724
        %v1714 = vunpack.c.l.bf16 %v725
        %v1715 = vunpack.c.h.bf16 %v725
        %v1716 = vunpack.c.l.bf16 %v726
        %v1717 = vunpack.c.h.bf16 %v726
        %v1718 = vunpack.c.l.bf16 %v727
        %v1719 = vunpack.c.h.bf16 %v727
        %v1720 = vunpack.c.l.bf16 %v728
        %v1721 = vunpack.c.h.bf16 %v728
        %v1722 = vunpack.c.l.bf16 %v729
        %v1723 = vunpack.c.h.bf16 %v729
        %v1724 = vunpack.c.l.bf16 %v730
        %v1725 = vunpack.c.h.bf16 %v730
        %v1726 = vunpack.c.l.bf16 %v731
        %v1727 = vunpack.c.h.bf16 %v731
        %v1728 = vunpack.c.l.bf16 %v732
        %v1729 = vunpack.c.h.bf16 %v732
        %v1730 = vunpack.c.l.bf16 %v733
        %v1731 = vunpack.c.h.bf16 %v733
        %v1732 = vunpack.c.l.bf16 %v734
        %v1733 = vunpack.c.h.bf16 %v734
        %v1734 = vunpack.c.l.bf16 %v735
        %v1735 = vunpack.c.h.bf16 %v735
        %v1736 = vunpack.c.l.bf16 %v736
        %v1737 = vunpack.c.h.bf16 %v736
        %v1738 = vunpack.c.l.bf16 %v737
        %v1739 = vunpack.c.h.bf16 %v737
        %v1740 = vunpack.c.l.bf16 %v738
        %v1741 = vunpack.c.h.bf16 %v738
        %v1742 = vunpack.c.l.bf16 %v739
        %v1743 = vunpack.c.h.bf16 %v739
        %v1744 = vunpack.c.l.bf16 %v740
        %v1745 = vunpack.c.h.bf16 %v740
        %v1746 = vunpack.c.l.bf16 %v741
        %v1747 = vunpack.c.h.bf16 %v741
        %v1748 = vunpack.c.l.bf16 %v742
        %v1749 = vunpack.c.h.bf16 %v742
        %v1750 = vunpack.c.l.bf16 %v743
        %v1751 = vunpack.c.h.bf16 %v743
        %v1752 = vunpack.c.l.bf16 %v744
        %v1753 = vunpack.c.h.bf16 %v744
        %v1754 = vunpack.c.l.bf16 %v745
        %v1755 = vunpack.c.h.bf16 %v745
        %v1756 = vunpack.c.l.bf16 %v746
        %v1757 = vunpack.c.h.bf16 %v746
        %v1758 = vunpack.c.l.bf16 %v747
        %v1759 = vunpack.c.h.bf16 %v747
        %v1760 = vunpack.c.l.bf16 %v748
        %v1761 = vunpack.c.h.bf16 %v748
        %v1762 = vunpack.c.l.bf16 %v749
        %v1763 = vunpack.c.h.bf16 %v749
        %v1764 = vunpack.c.l.bf16 %v750
        %v1765 = vunpack.c.h.bf16 %v750
        %v1766 = vunpack.c.l.bf16 %v751
        %v1767 = vunpack.c.h.bf16 %v751
        %v1768 = vunpack.c.l.bf16 %v752
        %v1769 = vunpack.c.h.bf16 %v752
        %v1770 = vunpack.c.l.bf16 %v753
        %v1771 = vunpack.c.h.bf16 %v753
        %v1772 = vunpack.c.l.bf16 %v754
        %v1773 = vunpack.c.h.bf16 %v754
        %v1774 = vunpack.c.l.bf16 %v755
        %v1775 = vunpack.c.h.bf16 %v755
        %v1776 = vunpack.c.l.bf16 %v756
        %v1777 = vunpack.c.h.bf16 %v756
        %v1778 = vunpack.c.l.bf16 %v757
        %v1779 = vunpack.c.h.bf16 %v757
        %v1780 = vunpack.c.l.bf16 %v758
        %v1781 = vunpack.c.h.bf16 %v758
        %v1782 = vunpack.c.l.bf16 %v759
        %v1783 = vunpack.c.h.bf16 %v759
        %v1786 = vcombine.high %v246, %v246
        %v1788 = vunpack.c.l.s4 1983009808
        %v1789 = vunpack.c.0.s8 %v1788
        %v1790 = vlaneseq
        %v1791 = vshrl.u32 %v1790, 7
        %v1792 = vsub.s32 %v1789, %v1791
        %v1793 = vrot.slane %v246, %v1792
        %v1795 = vunpack.c.l.s4 1983009808
        %v1796 = vunpack.c.0.s8 %v1795
        %v1797 = vlaneseq
        %v1798 = vshrl.u32 %v1797, 7
        %v1799 = vsub.s32 %v1796, %v1798
        %v1800 = vrot.slane %v1786, %v1799
        %v1801 = vcombine.high %v1793, %v1793
        %v1802 = vcombine.high %v1800, %v1800
        %v1803 = vcombine.high %v247, %v247
        %v1805 = vunpack.c.l.s4 1983009808
        %v1806 = vunpack.c.0.s8 %v1805
        %v1807 = vlaneseq
        %v1808 = vshrl.u32 %v1807, 7
        %v1809 = vsub.s32 %v1806, %v1808
        %v1810 = vrot.slane %v247, %v1809
        %v1812 = vunpack.c.l.s4 1983009808
        %v1813 = vunpack.c.0.s8 %v1812
        %v1814 = vlaneseq
        %v1815 = vshrl.u32 %v1814, 7
        %v1816 = vsub.s32 %v1813, %v1815
        %v1817 = vrot.slane %v1803, %v1816
        %v1818 = vcombine.high %v1810, %v1810
        %v1819 = vcombine.high %v1817, %v1817
        %1828 = vmatprep.subr.mxu0 %v881
        %1829 = vmatpush1.msra.mxu0 %v880
        %1830 = vmatprep.subr.mxu0 %v873
        %1831 = vmatpush1.msra.mxu0 %v872
        %1832 = vmatprep.subr.mxu0 %v865
        %1833 = vmatpush1.msra.mxu0 %v864
        %1834 = vmatprep.subr.mxu0 %v857
        %1835 = vmatpush1.msra.mxu0 %v856
        %1836 = vmatprep.subr.mxu0 %v849
        %1837 = vmatpush1.msra.mxu0 %v848
        %1838 = vmatprep.subr.mxu0 %v841
        %1839 = vmatpush1.msra.mxu0 %v840
        %1840 = vmatprep.subr.mxu0 %v833
        %1841 = vmatpush1.msra.mxu0 %v832
        %1842 = vmatprep.subr.mxu0 %v825
        %1843 = vmatpush1.msra.mxu0 %v824
        %1844 = vmatprep.subr.mxu0 %v817
        %1845 = vmatpush1.msra.mxu0 %v816
        %1846 = vmatprep.subr.mxu0 %v809
        %1847 = vmatpush1.msra.mxu0 %v808
        %1848 = vmatprep.subr.mxu0 %v801
        %1849 = vmatpush1.msra.mxu0 %v800
        %1850 = vmatprep.subr.mxu0 %v793
        %1851 = vmatpush1.msra.mxu0 %v792
        %1852 = vmatprep.subr.mxu0 %v785
        %1853 = vmatpush1.msra.mxu0 %v784
        %1854 = vmatprep.subr.mxu0 %v777
        %1855 = vmatpush1.msra.mxu0 %v776
        %1856 = vmatprep.subr.mxu0 %v769
        %1857 = vmatpush1.msra.mxu0 %v768
        %1858 = vmatprep.subr.mxu0 %v761
        %1859 = vmatpush1.msra.mxu0 %v760
        %1860 = vmatprep.subr.mxu0 %v1009
        %1861 = vmatpush2.msra.mxu0 %v1008
        %1862 = vmatprep.subr.mxu0 %v1001
        %1863 = vmatpush2.msra.mxu0 %v1000
        %1864 = vmatprep.subr.mxu0 %v993
        %1865 = vmatpush2.msra.mxu0 %v992
        %1866 = vmatprep.subr.mxu0 %v985
        %1867 = vmatpush2.msra.mxu0 %v984
        %1868 = vmatprep.subr.mxu0 %v977
        %1869 = vmatpush2.msra.mxu0 %v976
        %1870 = vmatprep.subr.mxu0 %v969
        %1871 = vmatpush2.msra.mxu0 %v968
        %1872 = vmatprep.subr.mxu0 %v961
        %1873 = vmatpush2.msra.mxu0 %v960
        %1874 = vmatprep.subr.mxu0 %v953
        %1875 = vmatpush2.msra.mxu0 %v952
        %1876 = vmatprep.subr.mxu0 %v945
        %1877 = vmatpush2.msra.mxu0 %v944
        %1878 = vmatprep.subr.mxu0 %v937
        %1879 = vmatpush2.msra.mxu0 %v936
        %1880 = vmatprep.subr.mxu0 %v929
        %1881 = vmatpush2.msra.mxu0 %v928
        %1882 = vmatprep.subr.mxu0 %v921
        %1883 = vmatpush2.msra.mxu0 %v920
        %1884 = vmatprep.subr.mxu0 %v913
        %1885 = vmatpush2.msra.mxu0 %v912
        %1886 = vmatprep.subr.mxu0 %v905
        %1887 = vmatpush2.msra.mxu0 %v904
        %1888 = vmatprep.subr.mxu0 %v897
        %1889 = vmatpush2.msra.mxu0 %v896
        %1890 = vmatprep.subr.mxu0 %v889
        %1891 = vmatpush2.msra.mxu0 %v888
        %1892 = vmatprep.mubr.f32.mxu0 %v1801
        %1893 = vmatmul.mubr.f32.gmra.mxu0 %v1793
        %v1894 = vpop.f32.mrf.mxu0
        %v1895 = vadd.f32 0.0, %v1894
        %v1896 = vpop.f32.mrf.mxu0
        %v1897 = vadd.f32 0.0, %v1896
        %1898 = vdwg.mxu0
        %1899 = vmatprep.subr.mxu0 %v1137
        %1900 = vmatpush1.msra.mxu0 %v1136
        %1901 = vmatprep.subr.mxu0 %v1129
        %1902 = vmatpush1.msra.mxu0 %v1128
        %1903 = vmatprep.subr.mxu0 %v1121
        %1904 = vmatpush1.msra.mxu0 %v1120
        %1905 = vmatprep.subr.mxu0 %v1113
        %1906 = vmatpush1.msra.mxu0 %v1112
        %1907 = vmatprep.subr.mxu0 %v1105
        %1908 = vmatpush1.msra.mxu0 %v1104
        %1909 = vmatprep.subr.mxu0 %v1097
        %1910 = vmatpush1.msra.mxu0 %v1096
        %1911 = vmatprep.subr.mxu0 %v1089
        %1912 = vmatpush1.msra.mxu0 %v1088
        %1913 = vmatprep.subr.mxu0 %v1081
        %1914 = vmatpush1.msra.mxu0 %v1080
        %1915 = vmatprep.subr.mxu0 %v1073
        %1916 = vmatpush1.msra.mxu0 %v1072
        %1917 = vmatprep.subr.mxu0 %v1065
        %1918 = vmatpush1.msra.mxu0 %v1064
        %1919 = vmatprep.subr.mxu0 %v1057
        %1920 = vmatpush1.msra.mxu0 %v1056
        %1921 = vmatprep.subr.mxu0 %v1049
        %1922 = vmatpush1.msra.mxu0 %v1048
        %1923 = vmatprep.subr.mxu0 %v1041
        %1924 = vmatpush1.msra.mxu0 %v1040
        %1925 = vmatprep.subr.mxu0 %v1033
        %1926 = vmatpush1.msra.mxu0 %v1032
        %1927 = vmatprep.subr.mxu0 %v1025
        %1928 = vmatpush1.msra.mxu0 %v1024
        %1929 = vmatprep.subr.mxu0 %v1017
        %1930 = vmatpush1.msra.mxu0 %v1016
        %1931 = vmatprep.subr.mxu0 %v1265
        %1932 = vmatpush2.msra.mxu0 %v1264
        %1933 = vmatprep.subr.mxu0 %v1257
        %1934 = vmatpush2.msra.mxu0 %v1256
        %1935 = vmatprep.subr.mxu0 %v1249
        %1936 = vmatpush2.msra.mxu0 %v1248
        %1937 = vmatprep.subr.mxu0 %v1241
        %1938 = vmatpush2.msra.mxu0 %v1240
        %1939 = vmatprep.subr.mxu0 %v1233
        %1940 = vmatpush2.msra.mxu0 %v1232
        %1941 = vmatprep.subr.mxu0 %v1225
        %1942 = vmatpush2.msra.mxu0 %v1224
        %1943 = vmatprep.subr.mxu0 %v1217
        %1944 = vmatpush2.msra.mxu0 %v1216
        %1945 = vmatprep.subr.mxu0 %v1209
        %1946 = vmatpush2.msra.mxu0 %v1208
        %1947 = vmatprep.subr.mxu0 %v1201
        %1948 = vmatpush2.msra.mxu0 %v1200
        %1949 = vmatprep.subr.mxu0 %v1193
        %1950 = vmatpush2.msra.mxu0 %v1192
        %1951 = vmatprep.subr.mxu0 %v1185
        %1952 = vmatpush2.msra.mxu0 %v1184
        %1953 = vmatprep.subr.mxu0 %v1177
        %1954 = vmatpush2.msra.mxu0 %v1176
        %1955 = vmatprep.subr.mxu0 %v1169
        %1956 = vmatpush2.msra.mxu0 %v1168
        %1957 = vmatprep.subr.mxu0 %v1161
        %1958 = vmatpush2.msra.mxu0 %v1160
        %1959 = vmatprep.subr.mxu0 %v1153
        %1960 = vmatpush2.msra.mxu0 %v1152
        %1961 = vmatprep.subr.mxu0 %v1145
        %1962 = vmatpush2.msra.mxu0 %v1144
        %1963 = vmatprep.mubr.f32.mxu0 %v1802
        %1964 = vmatmul.mubr.f32.gmra.mxu0 %v1800
        %v1965 = vpop.f32.mrf.mxu0
        %v1966 = vadd.f32 %v1895, %v1965
        %v1967 = vpop.f32.mrf.mxu0
        %v1968 = vadd.f32 %v1897, %v1967
        %1969 = vdwg.mxu0
        %1970 = vmatprep.subr.mxu0 %v1393
        %1971 = vmatpush1.msra.mxu0 %v1392
        %1972 = vmatprep.subr.mxu0 %v1385
        %1973 = vmatpush1.msra.mxu0 %v1384
        %1974 = vmatprep.subr.mxu0 %v1377
        %1975 = vmatpush1.msra.mxu0 %v1376
        %1976 = vmatprep.subr.mxu0 %v1369
        %1977 = vmatpush1.msra.mxu0 %v1368
        %1978 = vmatprep.subr.mxu0 %v1361
        %1979 = vmatpush1.msra.mxu0 %v1360
        %1980 = vmatprep.subr.mxu0 %v1353
        %1981 = vmatpush1.msra.mxu0 %v1352
        %1982 = vmatprep.subr.mxu0 %v1345
        %1983 = vmatpush1.msra.mxu0 %v1344
        %1984 = vmatprep.subr.mxu0 %v1337
        %1985 = vmatpush1.msra.mxu0 %v1336
        %1986 = vmatprep.subr.mxu0 %v1329
        %1987 = vmatpush1.msra.mxu0 %v1328
        %1988 = vmatprep.subr.mxu0 %v1321
        %1989 = vmatpush1.msra.mxu0 %v1320
        %1990 = vmatprep.subr.mxu0 %v1313
        %1991 = vmatpush1.msra.mxu0 %v1312
        %1992 = vmatprep.subr.mxu0 %v1305
        %1993 = vmatpush1.msra.mxu0 %v1304
        %1994 = vmatprep.subr.mxu0 %v1297
        %1995 = vmatpush1.msra.mxu0 %v1296
        %1996 = vmatprep.subr.mxu0 %v1289
        %1997 = vmatpush1.msra.mxu0 %v1288
        %1998 = vmatprep.subr.mxu0 %v1281
        %1999 = vmatpush1.msra.mxu0 %v1280
        %2000 = vmatprep.subr.mxu0 %v1273
        %2001 = vmatpush1.msra.mxu0 %v1272
        %2002 = vmatprep.subr.mxu0 %v1521
        %2003 = vmatpush2.msra.mxu0 %v1520
        %2004 = vmatprep.subr.mxu0 %v1513
        %2005 = vmatpush2.msra.mxu0 %v1512
        %2006 = vmatprep.subr.mxu0 %v1505
        %2007 = vmatpush2.msra.mxu0 %v1504
        %2008 = vmatprep.subr.mxu0 %v1497
        %2009 = vmatpush2.msra.mxu0 %v1496
        %2010 = vmatprep.subr.mxu0 %v1489
        %2011 = vmatpush2.msra.mxu0 %v1488
        %2012 = vmatprep.subr.mxu0 %v1481
        %2013 = vmatpush2.msra.mxu0 %v1480
        %2014 = vmatprep.subr.mxu0 %v1473
        %2015 = vmatpush2.msra.mxu0 %v1472
        %2016 = vmatprep.subr.mxu0 %v1465
        %2017 = vmatpush2.msra.mxu0 %v1464
        %2018 = vmatprep.subr.mxu0 %v1457
        %2019 = vmatpush2.msra.mxu0 %v1456
        %2020 = vmatprep.subr.mxu0 %v1449
        %2021 = vmatpush2.msra.mxu0 %v1448
        %2022 = vmatprep.subr.mxu0 %v1441
        %2023 = vmatpush2.msra.mxu0 %v1440
        %2024 = vmatprep.subr.mxu0 %v1433
        %2025 = vmatpush2.msra.mxu0 %v1432
        %2026 = vmatprep.subr.mxu0 %v1425
        %2027 = vmatpush2.msra.mxu0 %v1424
        %2028 = vmatprep.subr.mxu0 %v1417
        %2029 = vmatpush2.msra.mxu0 %v1416
        %2030 = vmatprep.subr.mxu0 %v1409
        %2031 = vmatpush2.msra.mxu0 %v1408
        %2032 = vmatprep.subr.mxu0 %v1401
        %2033 = vmatpush2.msra.mxu0 %v1400
        %2034 = vmatprep.mubr.f32.mxu0 %v1818
        %2035 = vmatmul.mubr.f32.gmra.mxu0 %v1810
        %v2036 = vpop.f32.mrf.mxu0
        %v2037 = vadd.f32 %v1966, %v2036
        %v2038 = vpop.f32.mrf.mxu0
        %v2039 = vadd.f32 %v1968, %v2038
        %2040 = vdwg.mxu0
        %2041 = vmatprep.subr.mxu0 %v1649
        %2042 = vmatpush1.msra.mxu0 %v1648
        %2043 = vmatprep.subr.mxu0 %v1641
        %2044 = vmatpush1.msra.mxu0 %v1640
        %2045 = vmatprep.subr.mxu0 %v1633
        %2046 = vmatpush1.msra.mxu0 %v1632
        %2047 = vmatprep.subr.mxu0 %v1625
        %2048 = vmatpush1.msra.mxu0 %v1624
        %2049 = vmatprep.subr.mxu0 %v1617
        %2050 = vmatpush1.msra.mxu0 %v1616
        %2051 = vmatprep.subr.mxu0 %v1609
        %2052 = vmatpush1.msra.mxu0 %v1608
        %2053 = vmatprep.subr.mxu0 %v1601
        %2054 = vmatpush1.msra.mxu0 %v1600
        %2055 = vmatprep.subr.mxu0 %v1593
        %2056 = vmatpush1.msra.mxu0 %v1592
        %2057 = vmatprep.subr.mxu0 %v1585
        %2058 = vmatpush1.msra.mxu0 %v1584
        %2059 = vmatprep.subr.mxu0 %v1577
        %2060 = vmatpush1.msra.mxu0 %v1576
        %2061 = vmatprep.subr.mxu0 %v1569
        %2062 = vmatpush1.msra.mxu0 %v1568
        %2063 = vmatprep.subr.mxu0 %v1561
        %2064 = vmatpush1.msra.mxu0 %v1560
        %2065 = vmatprep.subr.mxu0 %v1553
        %2066 = vmatpush1.msra.mxu0 %v1552
        %2067 = vmatprep.subr.mxu0 %v1545
        %2068 = vmatpush1.msra.mxu0 %v1544
        %2069 = vmatprep.subr.mxu0 %v1537
        %2070 = vmatpush1.msra.mxu0 %v1536
        %2071 = vmatprep.subr.mxu0 %v1529
        %2072 = vmatpush1.msra.mxu0 %v1528
        %2073 = vmatprep.subr.mxu0 %v1777
        %2074 = vmatpush2.msra.mxu0 %v1776
        %2075 = vmatprep.subr.mxu0 %v1769
        %2076 = vmatpush2.msra.mxu0 %v1768
        %2077 = vmatprep.subr.mxu0 %v1761
        %2078 = vmatpush2.msra.mxu0 %v1760
        %2079 = vmatprep.subr.mxu0 %v1753
        %2080 = vmatpush2.msra.mxu0 %v1752
        %2081 = vmatprep.subr.mxu0 %v1745
        %2082 = vmatpush2.msra.mxu0 %v1744
        %2083 = vmatprep.subr.mxu0 %v1737
        %2084 = vmatpush2.msra.mxu0 %v1736
        %2085 = vmatprep.subr.mxu0 %v1729
        %2086 = vmatpush2.msra.mxu0 %v1728
        %2087 = vmatprep.subr.mxu0 %v1721
        %2088 = vmatpush2.msra.mxu0 %v1720
        %2089 = vmatprep.subr.mxu0 %v1713
        %2090 = vmatpush2.msra.mxu0 %v1712
        %2091 = vmatprep.subr.mxu0 %v1705
        %2092 = vmatpush2.msra.mxu0 %v1704
        %2093 = vmatprep.subr.mxu0 %v1697
        %2094 = vmatpush2.msra.mxu0 %v1696
        %2095 = vmatprep.subr.mxu0 %v1689
        %2096 = vmatpush2.msra.mxu0 %v1688
        %2097 = vmatprep.subr.mxu0 %v1681
        %2098 = vmatpush2.msra.mxu0 %v1680
        %2099 = vmatprep.subr.mxu0 %v1673
        %2100 = vmatpush2.msra.mxu0 %v1672
        %2101 = vmatprep.subr.mxu0 %v1665
        %2102 = vmatpush2.msra.mxu0 %v1664
        %2103 = vmatprep.subr.mxu0 %v1657
        %2104 = vmatpush2.msra.mxu0 %v1656
        %2105 = vmatprep.mubr.f32.mxu0 %v1819
        %2106 = vmatmul.mubr.f32.gmra.mxu0 %v1817
        %v2107 = vpop.f32.mrf.mxu0
        %v2108 = vadd.f32 %v2037, %v2107
        %v2109 = vpop.f32.mrf.mxu0
        %v2110 = vadd.f32 %v2039, %v2109
        %2111 = vdwg.mxu0
        %2112 = vmatprep.subr.mxu0 %v883
        %2113 = vmatpush1.msra.mxu0 %v882
        %2114 = vmatprep.subr.mxu0 %v875
        %2115 = vmatpush1.msra.mxu0 %v874
        %2116 = vmatprep.subr.mxu0 %v867
        %2117 = vmatpush1.msra.mxu0 %v866
        %2118 = vmatprep.subr.mxu0 %v859
        %2119 = vmatpush1.msra.mxu0 %v858
        %2120 = vmatprep.subr.mxu0 %v851
        %2121 = vmatpush1.msra.mxu0 %v850
        %2122 = vmatprep.subr.mxu0 %v843
        %2123 = vmatpush1.msra.mxu0 %v842
        %2124 = vmatprep.subr.mxu0 %v835
        %2125 = vmatpush1.msra.mxu0 %v834
        %2126 = vmatprep.subr.mxu0 %v827
        %2127 = vmatpush1.msra.mxu0 %v826
        %2128 = vmatprep.subr.mxu0 %v819
        %2129 = vmatpush1.msra.mxu0 %v818
        %2130 = vmatprep.subr.mxu0 %v811
        %2131 = vmatpush1.msra.mxu0 %v810
        %2132 = vmatprep.subr.mxu0 %v803
        %2133 = vmatpush1.msra.mxu0 %v802
        %2134 = vmatprep.subr.mxu0 %v795
        %2135 = vmatpush1.msra.mxu0 %v794
        %2136 = vmatprep.subr.mxu0 %v787
        %2137 = vmatpush1.msra.mxu0 %v786
        %2138 = vmatprep.subr.mxu0 %v779
        %2139 = vmatpush1.msra.mxu0 %v778
        %2140 = vmatprep.subr.mxu0 %v771
        %2141 = vmatpush1.msra.mxu0 %v770
        %2142 = vmatprep.subr.mxu0 %v763
        %2143 = vmatpush1.msra.mxu0 %v762
        %2144 = vmatprep.subr.mxu0 %v1011
        %2145 = vmatpush2.msra.mxu0 %v1010
        %2146 = vmatprep.subr.mxu0 %v1003
        %2147 = vmatpush2.msra.mxu0 %v1002
        %2148 = vmatprep.subr.mxu0 %v995
        %2149 = vmatpush2.msra.mxu0 %v994
        %2150 = vmatprep.subr.mxu0 %v987
        %2151 = vmatpush2.msra.mxu0 %v986
        %2152 = vmatprep.subr.mxu0 %v979
        %2153 = vmatpush2.msra.mxu0 %v978
        %2154 = vmatprep.subr.mxu0 %v971
        %2155 = vmatpush2.msra.mxu0 %v970
        %2156 = vmatprep.subr.mxu0 %v963
        %2157 = vmatpush2.msra.mxu0 %v962
        %2158 = vmatprep.subr.mxu0 %v955
        %2159 = vmatpush2.msra.mxu0 %v954
        %2160 = vmatprep.subr.mxu0 %v947
        %2161 = vmatpush2.msra.mxu0 %v946
        %2162 = vmatprep.subr.mxu0 %v939
        %2163 = vmatpush2.msra.mxu0 %v938
        %2164 = vmatprep.subr.mxu0 %v931
        %2165 = vmatpush2.msra.mxu0 %v930
        %2166 = vmatprep.subr.mxu0 %v923
        %2167 = vmatpush2.msra.mxu0 %v922
        %2168 = vmatprep.subr.mxu0 %v915
        %2169 = vmatpush2.msra.mxu0 %v914
        %2170 = vmatprep.subr.mxu0 %v907
        %2171 = vmatpush2.msra.mxu0 %v906
        %2172 = vmatprep.subr.mxu0 %v899
        %2173 = vmatpush2.msra.mxu0 %v898
        %2174 = vmatprep.subr.mxu0 %v891
        %2175 = vmatpush2.msra.mxu0 %v890
        %2176 = vmatprep.mubr.f32.mxu0 %v1801
        %2177 = vmatmul.mubr.f32.gmra.mxu0 %v1793
        %v2178 = vpop.f32.mrf.mxu0
        %v2179 = vadd.f32 0.0, %v2178
        %v2180 = vpop.f32.mrf.mxu0
        %v2181 = vadd.f32 0.0, %v2180
        %2182 = vdwg.mxu0
        %2183 = vmatprep.subr.mxu0 %v1139
        %2184 = vmatpush1.msra.mxu0 %v1138
        %2185 = vmatprep.subr.mxu0 %v1131
        %2186 = vmatpush1.msra.mxu0 %v1130
        %2187 = vmatprep.subr.mxu0 %v1123
        %2188 = vmatpush1.msra.mxu0 %v1122
        %2189 = vmatprep.subr.mxu0 %v1115
        %2190 = vmatpush1.msra.mxu0 %v1114
        %2191 = vmatprep.subr.mxu0 %v1107
        %2192 = vmatpush1.msra.mxu0 %v1106
        %2193 = vmatprep.subr.mxu0 %v1099
        %2194 = vmatpush1.msra.mxu0 %v1098
        %2195 = vmatprep.subr.mxu0 %v1091
        %2196 = vmatpush1.msra.mxu0 %v1090
        %2197 = vmatprep.subr.mxu0 %v1083
        %2198 = vmatpush1.msra.mxu0 %v1082
        %2199 = vmatprep.subr.mxu0 %v1075
        %2200 = vmatpush1.msra.mxu0 %v1074
        %2201 = vmatprep.subr.mxu0 %v1067
        %2202 = vmatpush1.msra.mxu0 %v1066
        %2203 = vmatprep.subr.mxu0 %v1059
        %2204 = vmatpush1.msra.mxu0 %v1058
        %2205 = vmatprep.subr.mxu0 %v1051
        %2206 = vmatpush1.msra.mxu0 %v1050
        %2207 = vmatprep.subr.mxu0 %v1043
        %2208 = vmatpush1.msra.mxu0 %v1042
        %2209 = vmatprep.subr.mxu0 %v1035
        %2210 = vmatpush1.msra.mxu0 %v1034
        %2211 = vmatprep.subr.mxu0 %v1027
        %2212 = vmatpush1.msra.mxu0 %v1026
        %2213 = vmatprep.subr.mxu0 %v1019
        %2214 = vmatpush1.msra.mxu0 %v1018
        %2215 = vmatprep.subr.mxu0 %v1267
        %2216 = vmatpush2.msra.mxu0 %v1266
        %2217 = vmatprep.subr.mxu0 %v1259
        %2218 = vmatpush2.msra.mxu0 %v1258
        %2219 = vmatprep.subr.mxu0 %v1251
        %2220 = vmatpush2.msra.mxu0 %v1250
        %2221 = vmatprep.subr.mxu0 %v1243
        %2222 = vmatpush2.msra.mxu0 %v1242
        %2223 = vmatprep.subr.mxu0 %v1235
        %2224 = vmatpush2.msra.mxu0 %v1234
        %2225 = vmatprep.subr.mxu0 %v1227
        %2226 = vmatpush2.msra.mxu0 %v1226
        %2227 = vmatprep.subr.mxu0 %v1219
        %2228 = vmatpush2.msra.mxu0 %v1218
        %2229 = vmatprep.subr.mxu0 %v1211
        %2230 = vmatpush2.msra.mxu0 %v1210
        %2231 = vmatprep.subr.mxu0 %v1203
        %2232 = vmatpush2.msra.mxu0 %v1202
        %2233 = vmatprep.subr.mxu0 %v1195
        %2234 = vmatpush2.msra.mxu0 %v1194
        %2235 = vmatprep.subr.mxu0 %v1187
        %2236 = vmatpush2.msra.mxu0 %v1186
        %2237 = vmatprep.subr.mxu0 %v1179
        %2238 = vmatpush2.msra.mxu0 %v1178
        %2239 = vmatprep.subr.mxu0 %v1171
        %2240 = vmatpush2.msra.mxu0 %v1170
        %2241 = vmatprep.subr.mxu0 %v1163
        %2242 = vmatpush2.msra.mxu0 %v1162
        %2243 = vmatprep.subr.mxu0 %v1155
        %2244 = vmatpush2.msra.mxu0 %v1154
        %2245 = vmatprep.subr.mxu0 %v1147
        %2246 = vmatpush2.msra.mxu0 %v1146
        %2247 = vmatprep.mubr.f32.mxu0 %v1802
        %2248 = vmatmul.mubr.f32.gmra.mxu0 %v1800
        %v2249 = vpop.f32.mrf.mxu0
        %v2250 = vadd.f32 %v2179, %v2249
        %v2251 = vpop.f32.mrf.mxu0
        %v2252 = vadd.f32 %v2181, %v2251
        %2253 = vdwg.mxu0
        %2254 = vmatprep.subr.mxu0 %v1395
        %2255 = vmatpush1.msra.mxu0 %v1394
        %2256 = vmatprep.subr.mxu0 %v1387
        %2257 = vmatpush1.msra.mxu0 %v1386
        %2258 = vmatprep.subr.mxu0 %v1379
        %2259 = vmatpush1.msra.mxu0 %v1378
        %2260 = vmatprep.subr.mxu0 %v1371
        %2261 = vmatpush1.msra.mxu0 %v1370
        %2262 = vmatprep.subr.mxu0 %v1363
        %2263 = vmatpush1.msra.mxu0 %v1362
        %2264 = vmatprep.subr.mxu0 %v1355
        %2265 = vmatpush1.msra.mxu0 %v1354
        %2266 = vmatprep.subr.mxu0 %v1347
        %2267 = vmatpush1.msra.mxu0 %v1346
        %2268 = vmatprep.subr.mxu0 %v1339
        %2269 = vmatpush1.msra.mxu0 %v1338
        %2270 = vmatprep.subr.mxu0 %v1331
        %2271 = vmatpush1.msra.mxu0 %v1330
        %2272 = vmatprep.subr.mxu0 %v1323
        %2273 = vmatpush1.msra.mxu0 %v1322
        %2274 = vmatprep.subr.mxu0 %v1315
        %2275 = vmatpush1.msra.mxu0 %v1314
        %2276 = vmatprep.subr.mxu0 %v1307
        %2277 = vmatpush1.msra.mxu0 %v1306
        %2278 = vmatprep.subr.mxu0 %v1299
        %2279 = vmatpush1.msra.mxu0 %v1298
        %2280 = vmatprep.subr.mxu0 %v1291
        %2281 = vmatpush1.msra.mxu0 %v1290
        %2282 = vmatprep.subr.mxu0 %v1283
        %2283 = vmatpush1.msra.mxu0 %v1282
        %2284 = vmatprep.subr.mxu0 %v1275
        %2285 = vmatpush1.msra.mxu0 %v1274
        %2286 = vmatprep.subr.mxu0 %v1523
        %2287 = vmatpush2.msra.mxu0 %v1522
        %2288 = vmatprep.subr.mxu0 %v1515
        %2289 = vmatpush2.msra.mxu0 %v1514
        %2290 = vmatprep.subr.mxu0 %v1507
        %2291 = vmatpush2.msra.mxu0 %v1506
        %2292 = vmatprep.subr.mxu0 %v1499
        %2293 = vmatpush2.msra.mxu0 %v1498
        %2294 = vmatprep.subr.mxu0 %v1491
        %2295 = vmatpush2.msra.mxu0 %v1490
        %2296 = vmatprep.subr.mxu0 %v1483
        %2297 = vmatpush2.msra.mxu0 %v1482
        %2298 = vmatprep.subr.mxu0 %v1475
        %2299 = vmatpush2.msra.mxu0 %v1474
        %2300 = vmatprep.subr.mxu0 %v1467
        %2301 = vmatpush2.msra.mxu0 %v1466
        %2302 = vmatprep.subr.mxu0 %v1459
        %2303 = vmatpush2.msra.mxu0 %v1458
        %2304 = vmatprep.subr.mxu0 %v1451
        %2305 = vmatpush2.msra.mxu0 %v1450
        %2306 = vmatprep.subr.mxu0 %v1443
        %2307 = vmatpush2.msra.mxu0 %v1442
        %2308 = vmatprep.subr.mxu0 %v1435
        %2309 = vmatpush2.msra.mxu0 %v1434
        %2310 = vmatprep.subr.mxu0 %v1427
        %2311 = vmatpush2.msra.mxu0 %v1426
        %2312 = vmatprep.subr.mxu0 %v1419
        %2313 = vmatpush2.msra.mxu0 %v1418
        %2314 = vmatprep.subr.mxu0 %v1411
        %2315 = vmatpush2.msra.mxu0 %v1410
        %2316 = vmatprep.subr.mxu0 %v1403
        %2317 = vmatpush2.msra.mxu0 %v1402
        %2318 = vmatprep.mubr.f32.mxu0 %v1818
        %2319 = vmatmul.mubr.f32.gmra.mxu0 %v1810
        %v2320 = vpop.f32.mrf.mxu0
        %v2321 = vadd.f32 %v2250, %v2320
        %v2322 = vpop.f32.mrf.mxu0
        %v2323 = vadd.f32 %v2252, %v2322
        %2324 = vdwg.mxu0
        %2325 = vmatprep.subr.mxu0 %v1651
        %2326 = vmatpush1.msra.mxu0 %v1650
        %2327 = vmatprep.subr.mxu0 %v1643
        %2328 = vmatpush1.msra.mxu0 %v1642
        %2329 = vmatprep.subr.mxu0 %v1635
        %2330 = vmatpush1.msra.mxu0 %v1634
        %2331 = vmatprep.subr.mxu0 %v1627
        %2332 = vmatpush1.msra.mxu0 %v1626
        %2333 = vmatprep.subr.mxu0 %v1619
        %2334 = vmatpush1.msra.mxu0 %v1618
        %2335 = vmatprep.subr.mxu0 %v1611
        %2336 = vmatpush1.msra.mxu0 %v1610
        %2337 = vmatprep.subr.mxu0 %v1603
        %2338 = vmatpush1.msra.mxu0 %v1602
        %2339 = vmatprep.subr.mxu0 %v1595
        %2340 = vmatpush1.msra.mxu0 %v1594
        %2341 = vmatprep.subr.mxu0 %v1587
        %2342 = vmatpush1.msra.mxu0 %v1586
        %2343 = vmatprep.subr.mxu0 %v1579
        %2344 = vmatpush1.msra.mxu0 %v1578
        %2345 = vmatprep.subr.mxu0 %v1571
        %2346 = vmatpush1.msra.mxu0 %v1570
        %2347 = vmatprep.subr.mxu0 %v1563
        %2348 = vmatpush1.msra.mxu0 %v1562
        %2349 = vmatprep.subr.mxu0 %v1555
        %2350 = vmatpush1.msra.mxu0 %v1554
        %2351 = vmatprep.subr.mxu0 %v1547
        %2352 = vmatpush1.msra.mxu0 %v1546
        %2353 = vmatprep.subr.mxu0 %v1539
        %2354 = vmatpush1.msra.mxu0 %v1538
        %2355 = vmatprep.subr.mxu0 %v1531
        %2356 = vmatpush1.msra.mxu0 %v1530
        %2357 = vmatprep.subr.mxu0 %v1779
        %2358 = vmatpush2.msra.mxu0 %v1778
        %2359 = vmatprep.subr.mxu0 %v1771
        %2360 = vmatpush2.msra.mxu0 %v1770
        %2361 = vmatprep.subr.mxu0 %v1763
        %2362 = vmatpush2.msra.mxu0 %v1762
        %2363 = vmatprep.subr.mxu0 %v1755
        %2364 = vmatpush2.msra.mxu0 %v1754
        %2365 = vmatprep.subr.mxu0 %v1747
        %2366 = vmatpush2.msra.mxu0 %v1746
        %2367 = vmatprep.subr.mxu0 %v1739
        %2368 = vmatpush2.msra.mxu0 %v1738
        %2369 = vmatprep.subr.mxu0 %v1731
        %2370 = vmatpush2.msra.mxu0 %v1730
        %2371 = vmatprep.subr.mxu0 %v1723
        %2372 = vmatpush2.msra.mxu0 %v1722
        %2373 = vmatprep.subr.mxu0 %v1715
        %2374 = vmatpush2.msra.mxu0 %v1714
        %2375 = vmatprep.subr.mxu0 %v1707
        %2376 = vmatpush2.msra.mxu0 %v1706
        %2377 = vmatprep.subr.mxu0 %v1699
        %2378 = vmatpush2.msra.mxu0 %v1698
        %2379 = vmatprep.subr.mxu0 %v1691
        %2380 = vmatpush2.msra.mxu0 %v1690
        %2381 = vmatprep.subr.mxu0 %v1683
        %2382 = vmatpush2.msra.mxu0 %v1682
        %2383 = vmatprep.subr.mxu0 %v1675
        %2384 = vmatpush2.msra.mxu0 %v1674
        %2385 = vmatprep.subr.mxu0 %v1667
        %2386 = vmatpush2.msra.mxu0 %v1666
        %2387 = vmatprep.subr.mxu0 %v1659
        %2388 = vmatpush2.msra.mxu0 %v1658
        %2389 = vmatprep.mubr.f32.mxu0 %v1819
        %2390 = vmatmul.mubr.f32.gmra.mxu0 %v1817
        %v2391 = vpop.f32.mrf.mxu0
        %v2392 = vadd.f32 %v2321, %v2391
        %v2393 = vpop.f32.mrf.mxu0
        %v2394 = vadd.f32 %v2323, %v2393
        %2395 = vdwg.mxu0
        %2396 = vmatprep.subr.mxu0 %v885
        %2397 = vmatpush1.msra.mxu0 %v884
        %2398 = vmatprep.subr.mxu0 %v877
        %2399 = vmatpush1.msra.mxu0 %v876
        %2400 = vmatprep.subr.mxu0 %v869
        %2401 = vmatpush1.msra.mxu0 %v868
        %2402 = vmatprep.subr.mxu0 %v861
        %2403 = vmatpush1.msra.mxu0 %v860
        %2404 = vmatprep.subr.mxu0 %v853
        %2405 = vmatpush1.msra.mxu0 %v852
        %2406 = vmatprep.subr.mxu0 %v845
        %2407 = vmatpush1.msra.mxu0 %v844
        %2408 = vmatprep.subr.mxu0 %v837
        %2409 = vmatpush1.msra.mxu0 %v836
        %2410 = vmatprep.subr.mxu0 %v829
        %2411 = vmatpush1.msra.mxu0 %v828
        %2412 = vmatprep.subr.mxu0 %v821
        %2413 = vmatpush1.msra.mxu0 %v820
        %2414 = vmatprep.subr.mxu0 %v813
        %2415 = vmatpush1.msra.mxu0 %v812
        %2416 = vmatprep.subr.mxu0 %v805
        %2417 = vmatpush1.msra.mxu0 %v804
        %2418 = vmatprep.subr.mxu0 %v797
        %2419 = vmatpush1.msra.mxu0 %v796
        %2420 = vmatprep.subr.mxu0 %v789
        %2421 = vmatpush1.msra.mxu0 %v788
        %2422 = vmatprep.subr.mxu0 %v781
        %2423 = vmatpush1.msra.mxu0 %v780
        %2424 = vmatprep.subr.mxu0 %v773
        %2425 = vmatpush1.msra.mxu0 %v772
        %2426 = vmatprep.subr.mxu0 %v765
        %2427 = vmatpush1.msra.mxu0 %v764
        %2428 = vmatprep.subr.mxu0 %v1013
        %2429 = vmatpush2.msra.mxu0 %v1012
        %2430 = vmatprep.subr.mxu0 %v1005
        %2431 = vmatpush2.msra.mxu0 %v1004
        %2432 = vmatprep.subr.mxu0 %v997
        %2433 = vmatpush2.msra.mxu0 %v996
        %2434 = vmatprep.subr.mxu0 %v989
        %2435 = vmatpush2.msra.mxu0 %v988
        %2436 = vmatprep.subr.mxu0 %v981
        %2437 = vmatpush2.msra.mxu0 %v980
        %2438 = vmatprep.subr.mxu0 %v973
        %2439 = vmatpush2.msra.mxu0 %v972
        %2440 = vmatprep.subr.mxu0 %v965
        %2441 = vmatpush2.msra.mxu0 %v964
        %2442 = vmatprep.subr.mxu0 %v957
        %2443 = vmatpush2.msra.mxu0 %v956
        %2444 = vmatprep.subr.mxu0 %v949
        %2445 = vmatpush2.msra.mxu0 %v948
        %2446 = vmatprep.subr.mxu0 %v941
        %2447 = vmatpush2.msra.mxu0 %v940
        %2448 = vmatprep.subr.mxu0 %v933
        %2449 = vmatpush2.msra.mxu0 %v932
        %2450 = vmatprep.subr.mxu0 %v925
        %2451 = vmatpush2.msra.mxu0 %v924
        %2452 = vmatprep.subr.mxu0 %v917
        %2453 = vmatpush2.msra.mxu0 %v916
        %2454 = vmatprep.subr.mxu0 %v909
        %2455 = vmatpush2.msra.mxu0 %v908
        %2456 = vmatprep.subr.mxu0 %v901
        %2457 = vmatpush2.msra.mxu0 %v900
        %2458 = vmatprep.subr.mxu0 %v893
        %2459 = vmatpush2.msra.mxu0 %v892
        %2460 = vmatprep.mubr.f32.mxu0 %v1801
        %2461 = vmatmul.mubr.f32.gmra.mxu0 %v1793
        %v2462 = vpop.f32.mrf.mxu0
        %v2463 = vadd.f32 0.0, %v2462
        %v2464 = vpop.f32.mrf.mxu0
        %v2465 = vadd.f32 0.0, %v2464
        %2466 = vdwg.mxu0
        %2467 = vmatprep.subr.mxu0 %v1141
        %2468 = vmatpush1.msra.mxu0 %v1140
        %2469 = vmatprep.subr.mxu0 %v1133
        %2470 = vmatpush1.msra.mxu0 %v1132
        %2471 = vmatprep.subr.mxu0 %v1125
        %2472 = vmatpush1.msra.mxu0 %v1124
        %2473 = vmatprep.subr.mxu0 %v1117
        %2474 = vmatpush1.msra.mxu0 %v1116
        %2475 = vmatprep.subr.mxu0 %v1109
        %2476 = vmatpush1.msra.mxu0 %v1108
        %2477 = vmatprep.subr.mxu0 %v1101
        %2478 = vmatpush1.msra.mxu0 %v1100
        %2479 = vmatprep.subr.mxu0 %v1093
        %2480 = vmatpush1.msra.mxu0 %v1092
        %2481 = vmatprep.subr.mxu0 %v1085
        %2482 = vmatpush1.msra.mxu0 %v1084
        %2483 = vmatprep.subr.mxu0 %v1077
        %2484 = vmatpush1.msra.mxu0 %v1076
        %2485 = vmatprep.subr.mxu0 %v1069
        %2486 = vmatpush1.msra.mxu0 %v1068
        %2487 = vmatprep.subr.mxu0 %v1061
        %2488 = vmatpush1.msra.mxu0 %v1060
        %2489 = vmatprep.subr.mxu0 %v1053
        %2490 = vmatpush1.msra.mxu0 %v1052
        %2491 = vmatprep.subr.mxu0 %v1045
        %2492 = vmatpush1.msra.mxu0 %v1044
        %2493 = vmatprep.subr.mxu0 %v1037
        %2494 = vmatpush1.msra.mxu0 %v1036
        %2495 = vmatprep.subr.mxu0 %v1029
        %2496 = vmatpush1.msra.mxu0 %v1028
        %2497 = vmatprep.subr.mxu0 %v1021
        %2498 = vmatpush1.msra.mxu0 %v1020
        %2499 = vmatprep.subr.mxu0 %v1269
        %2500 = vmatpush2.msra.mxu0 %v1268
        %2501 = vmatprep.subr.mxu0 %v1261
        %2502 = vmatpush2.msra.mxu0 %v1260
        %2503 = vmatprep.subr.mxu0 %v1253
        %2504 = vmatpush2.msra.mxu0 %v1252
        %2505 = vmatprep.subr.mxu0 %v1245
        %2506 = vmatpush2.msra.mxu0 %v1244
        %2507 = vmatprep.subr.mxu0 %v1237
        %2508 = vmatpush2.msra.mxu0 %v1236
        %2509 = vmatprep.subr.mxu0 %v1229
        %2510 = vmatpush2.msra.mxu0 %v1228
        %2511 = vmatprep.subr.mxu0 %v1221
        %2512 = vmatpush2.msra.mxu0 %v1220
        %2513 = vmatprep.subr.mxu0 %v1213
        %2514 = vmatpush2.msra.mxu0 %v1212
        %2515 = vmatprep.subr.mxu0 %v1205
        %2516 = vmatpush2.msra.mxu0 %v1204
        %2517 = vmatprep.subr.mxu0 %v1197
        %2518 = vmatpush2.msra.mxu0 %v1196
        %2519 = vmatprep.subr.mxu0 %v1189
        %2520 = vmatpush2.msra.mxu0 %v1188
        %2521 = vmatprep.subr.mxu0 %v1181
        %2522 = vmatpush2.msra.mxu0 %v1180
        %2523 = vmatprep.subr.mxu0 %v1173
        %2524 = vmatpush2.msra.mxu0 %v1172
        %2525 = vmatprep.subr.mxu0 %v1165
        %2526 = vmatpush2.msra.mxu0 %v1164
        %2527 = vmatprep.subr.mxu0 %v1157
        %2528 = vmatpush2.msra.mxu0 %v1156
        %2529 = vmatprep.subr.mxu0 %v1149
        %2530 = vmatpush2.msra.mxu0 %v1148
        %2531 = vmatprep.mubr.f32.mxu0 %v1802
        %2532 = vmatmul.mubr.f32.gmra.mxu0 %v1800
        %v2533 = vpop.f32.mrf.mxu0
        %v2534 = vadd.f32 %v2463, %v2533
        %v2535 = vpop.f32.mrf.mxu0
        %v2536 = vadd.f32 %v2465, %v2535
        %2537 = vdwg.mxu0
        %2538 = vmatprep.subr.mxu0 %v1397
        %2539 = vmatpush1.msra.mxu0 %v1396
        %2540 = vmatprep.subr.mxu0 %v1389
        %2541 = vmatpush1.msra.mxu0 %v1388
        %2542 = vmatprep.subr.mxu0 %v1381
        %2543 = vmatpush1.msra.mxu0 %v1380
        %2544 = vmatprep.subr.mxu0 %v1373
        %2545 = vmatpush1.msra.mxu0 %v1372
        %2546 = vmatprep.subr.mxu0 %v1365
        %2547 = vmatpush1.msra.mxu0 %v1364
        %2548 = vmatprep.subr.mxu0 %v1357
        %2549 = vmatpush1.msra.mxu0 %v1356
        %2550 = vmatprep.subr.mxu0 %v1349
        %2551 = vmatpush1.msra.mxu0 %v1348
        %2552 = vmatprep.subr.mxu0 %v1341
        %2553 = vmatpush1.msra.mxu0 %v1340
        %2554 = vmatprep.subr.mxu0 %v1333
        %2555 = vmatpush1.msra.mxu0 %v1332
        %2556 = vmatprep.subr.mxu0 %v1325
        %2557 = vmatpush1.msra.mxu0 %v1324
        %2558 = vmatprep.subr.mxu0 %v1317
        %2559 = vmatpush1.msra.mxu0 %v1316
        %2560 = vmatprep.subr.mxu0 %v1309
        %2561 = vmatpush1.msra.mxu0 %v1308
        %2562 = vmatprep.subr.mxu0 %v1301
        %2563 = vmatpush1.msra.mxu0 %v1300
        %2564 = vmatprep.subr.mxu0 %v1293
        %2565 = vmatpush1.msra.mxu0 %v1292
        %2566 = vmatprep.subr.mxu0 %v1285
        %2567 = vmatpush1.msra.mxu0 %v1284
        %2568 = vmatprep.subr.mxu0 %v1277
        %2569 = vmatpush1.msra.mxu0 %v1276
        %2570 = vmatprep.subr.mxu0 %v1525
        %2571 = vmatpush2.msra.mxu0 %v1524
        %2572 = vmatprep.subr.mxu0 %v1517
        %2573 = vmatpush2.msra.mxu0 %v1516
        %2574 = vmatprep.subr.mxu0 %v1509
        %2575 = vmatpush2.msra.mxu0 %v1508
        %2576 = vmatprep.subr.mxu0 %v1501
        %2577 = vmatpush2.msra.mxu0 %v1500
        %2578 = vmatprep.subr.mxu0 %v1493
        %2579 = vmatpush2.msra.mxu0 %v1492
        %2580 = vmatprep.subr.mxu0 %v1485
        %2581 = vmatpush2.msra.mxu0 %v1484
        %2582 = vmatprep.subr.mxu0 %v1477
        %2583 = vmatpush2.msra.mxu0 %v1476
        %2584 = vmatprep.subr.mxu0 %v1469
        %2585 = vmatpush2.msra.mxu0 %v1468
        %2586 = vmatprep.subr.mxu0 %v1461
        %2587 = vmatpush2.msra.mxu0 %v1460
        %2588 = vmatprep.subr.mxu0 %v1453
        %2589 = vmatpush2.msra.mxu0 %v1452
        %2590 = vmatprep.subr.mxu0 %v1445
        %2591 = vmatpush2.msra.mxu0 %v1444
        %2592 = vmatprep.subr.mxu0 %v1437
        %2593 = vmatpush2.msra.mxu0 %v1436
        %2594 = vmatprep.subr.mxu0 %v1429
        %2595 = vmatpush2.msra.mxu0 %v1428
        %2596 = vmatprep.subr.mxu0 %v1421
        %2597 = vmatpush2.msra.mxu0 %v1420
        %2598 = vmatprep.subr.mxu0 %v1413
        %2599 = vmatpush2.msra.mxu0 %v1412
        %2600 = vmatprep.subr.mxu0 %v1405
        %2601 = vmatpush2.msra.mxu0 %v1404
        %2602 = vmatprep.mubr.f32.mxu0 %v1818
        %2603 = vmatmul.mubr.f32.gmra.mxu0 %v1810
        %v2604 = vpop.f32.mrf.mxu0
        %v2605 = vadd.f32 %v2534, %v2604
        %v2606 = vpop.f32.mrf.mxu0
        %v2607 = vadd.f32 %v2536, %v2606
        %2608 = vdwg.mxu0
        %2609 = vmatprep.subr.mxu0 %v1653
        %2610 = vmatpush1.msra.mxu0 %v1652
        %2611 = vmatprep.subr.mxu0 %v1645
        %2612 = vmatpush1.msra.mxu0 %v1644
        %2613 = vmatprep.subr.mxu0 %v1637
        %2614 = vmatpush1.msra.mxu0 %v1636
        %2615 = vmatprep.subr.mxu0 %v1629
        %2616 = vmatpush1.msra.mxu0 %v1628
        %2617 = vmatprep.subr.mxu0 %v1621
        %2618 = vmatpush1.msra.mxu0 %v1620
        %2619 = vmatprep.subr.mxu0 %v1613
        %2620 = vmatpush1.msra.mxu0 %v1612
        %2621 = vmatprep.subr.mxu0 %v1605
        %2622 = vmatpush1.msra.mxu0 %v1604
        %2623 = vmatprep.subr.mxu0 %v1597
        %2624 = vmatpush1.msra.mxu0 %v1596
        %2625 = vmatprep.subr.mxu0 %v1589
        %2626 = vmatpush1.msra.mxu0 %v1588
        %2627 = vmatprep.subr.mxu0 %v1581
        %2628 = vmatpush1.msra.mxu0 %v1580
        %2629 = vmatprep.subr.mxu0 %v1573
        %2630 = vmatpush1.msra.mxu0 %v1572
        %2631 = vmatprep.subr.mxu0 %v1565
        %2632 = vmatpush1.msra.mxu0 %v1564
        %2633 = vmatprep.subr.mxu0 %v1557
        %2634 = vmatpush1.msra.mxu0 %v1556
        %2635 = vmatprep.subr.mxu0 %v1549
        %2636 = vmatpush1.msra.mxu0 %v1548
        %2637 = vmatprep.subr.mxu0 %v1541
        %2638 = vmatpush1.msra.mxu0 %v1540
        %2639 = vmatprep.subr.mxu0 %v1533
        %2640 = vmatpush1.msra.mxu0 %v1532
        %2641 = vmatprep.subr.mxu0 %v1781
        %2642 = vmatpush2.msra.mxu0 %v1780
        %2643 = vmatprep.subr.mxu0 %v1773
        %2644 = vmatpush2.msra.mxu0 %v1772
        %2645 = vmatprep.subr.mxu0 %v1765
        %2646 = vmatpush2.msra.mxu0 %v1764
        %2647 = vmatprep.subr.mxu0 %v1757
        %2648 = vmatpush2.msra.mxu0 %v1756
        %2649 = vmatprep.subr.mxu0 %v1749
        %2650 = vmatpush2.msra.mxu0 %v1748
        %2651 = vmatprep.subr.mxu0 %v1741
        %2652 = vmatpush2.msra.mxu0 %v1740
        %2653 = vmatprep.subr.mxu0 %v1733
        %2654 = vmatpush2.msra.mxu0 %v1732
        %2655 = vmatprep.subr.mxu0 %v1725
        %2656 = vmatpush2.msra.mxu0 %v1724
        %2657 = vmatprep.subr.mxu0 %v1717
        %2658 = vmatpush2.msra.mxu0 %v1716
        %2659 = vmatprep.subr.mxu0 %v1709
        %2660 = vmatpush2.msra.mxu0 %v1708
        %2661 = vmatprep.subr.mxu0 %v1701
        %2662 = vmatpush2.msra.mxu0 %v1700
        %2663 = vmatprep.subr.mxu0 %v1693
        %2664 = vmatpush2.msra.mxu0 %v1692
        %2665 = vmatprep.subr.mxu0 %v1685
        %2666 = vmatpush2.msra.mxu0 %v1684
        %2667 = vmatprep.subr.mxu0 %v1677
        %2668 = vmatpush2.msra.mxu0 %v1676
        %2669 = vmatprep.subr.mxu0 %v1669
        %2670 = vmatpush2.msra.mxu0 %v1668
        %2671 = vmatprep.subr.mxu0 %v1661
        %2672 = vmatpush2.msra.mxu0 %v1660
        %2673 = vmatprep.mubr.f32.mxu0 %v1819
        %2674 = vmatmul.mubr.f32.gmra.mxu0 %v1817
        %v2675 = vpop.f32.mrf.mxu0
        %v2676 = vadd.f32 %v2605, %v2675
        %v2677 = vpop.f32.mrf.mxu0
        %v2678 = vadd.f32 %v2607, %v2677
        %2679 = vdwg.mxu0
        %2680 = vmatprep.subr.mxu0 %v887
        %2681 = vmatpush1.msra.mxu0 %v886
        %2682 = vmatprep.subr.mxu0 %v879
        %2683 = vmatpush1.msra.mxu0 %v878
        %2684 = vmatprep.subr.mxu0 %v871
        %2685 = vmatpush1.msra.mxu0 %v870
        %2686 = vmatprep.subr.mxu0 %v863
        %2687 = vmatpush1.msra.mxu0 %v862
        %2688 = vmatprep.subr.mxu0 %v855
        %2689 = vmatpush1.msra.mxu0 %v854
        %2690 = vmatprep.subr.mxu0 %v847
        %2691 = vmatpush1.msra.mxu0 %v846
        %2692 = vmatprep.subr.mxu0 %v839
        %2693 = vmatpush1.msra.mxu0 %v838
        %2694 = vmatprep.subr.mxu0 %v831
        %2695 = vmatpush1.msra.mxu0 %v830
        %2696 = vmatprep.subr.mxu0 %v823
        %2697 = vmatpush1.msra.mxu0 %v822
        %2698 = vmatprep.subr.mxu0 %v815
        %2699 = vmatpush1.msra.mxu0 %v814
        %2700 = vmatprep.subr.mxu0 %v807
        %2701 = vmatpush1.msra.mxu0 %v806
        %2702 = vmatprep.subr.mxu0 %v799
        %2703 = vmatpush1.msra.mxu0 %v798
        %2704 = vmatprep.subr.mxu0 %v791
        %2705 = vmatpush1.msra.mxu0 %v790
        %2706 = vmatprep.subr.mxu0 %v783
        %2707 = vmatpush1.msra.mxu0 %v782
        %2708 = vmatprep.subr.mxu0 %v775
        %2709 = vmatpush1.msra.mxu0 %v774
        %2710 = vmatprep.subr.mxu0 %v767
        %2711 = vmatpush1.msra.mxu0 %v766
        %2712 = vmatprep.subr.mxu0 %v1015
        %2713 = vmatpush2.msra.mxu0 %v1014
        %2714 = vmatprep.subr.mxu0 %v1007
        %2715 = vmatpush2.msra.mxu0 %v1006
        %2716 = vmatprep.subr.mxu0 %v999
        %2717 = vmatpush2.msra.mxu0 %v998
        %2718 = vmatprep.subr.mxu0 %v991
        %2719 = vmatpush2.msra.mxu0 %v990
        %2720 = vmatprep.subr.mxu0 %v983
        %2721 = vmatpush2.msra.mxu0 %v982
        %2722 = vmatprep.subr.mxu0 %v975
        %2723 = vmatpush2.msra.mxu0 %v974
        %2724 = vmatprep.subr.mxu0 %v967
        %2725 = vmatpush2.msra.mxu0 %v966
        %2726 = vmatprep.subr.mxu0 %v959
        %2727 = vmatpush2.msra.mxu0 %v958
        %2728 = vmatprep.subr.mxu0 %v951
        %2729 = vmatpush2.msra.mxu0 %v950
        %2730 = vmatprep.subr.mxu0 %v943
        %2731 = vmatpush2.msra.mxu0 %v942
        %2732 = vmatprep.subr.mxu0 %v935
        %2733 = vmatpush2.msra.mxu0 %v934
        %2734 = vmatprep.subr.mxu0 %v927
        %2735 = vmatpush2.msra.mxu0 %v926
        %2736 = vmatprep.subr.mxu0 %v919
        %2737 = vmatpush2.msra.mxu0 %v918
        %2738 = vmatprep.subr.mxu0 %v911
        %2739 = vmatpush2.msra.mxu0 %v910
        %2740 = vmatprep.subr.mxu0 %v903
        %2741 = vmatpush2.msra.mxu0 %v902
        %2742 = vmatprep.subr.mxu0 %v895
        %2743 = vmatpush2.msra.mxu0 %v894
        %2744 = vmatprep.mubr.f32.mxu0 %v1801
        %2745 = vmatmul.mubr.f32.gmra.mxu0 %v1793
        %v2746 = vpop.f32.mrf.mxu0
        %v2747 = vadd.f32 0.0, %v2746
        %v2748 = vpop.f32.mrf.mxu0
        %v2749 = vadd.f32 0.0, %v2748
        %2750 = vdwg.mxu0
        %2751 = vmatprep.subr.mxu0 %v1143
        %2752 = vmatpush1.msra.mxu0 %v1142
        %2753 = vmatprep.subr.mxu0 %v1135
        %2754 = vmatpush1.msra.mxu0 %v1134
        %2755 = vmatprep.subr.mxu0 %v1127
        %2756 = vmatpush1.msra.mxu0 %v1126
        %2757 = vmatprep.subr.mxu0 %v1119
        %2758 = vmatpush1.msra.mxu0 %v1118
        %2759 = vmatprep.subr.mxu0 %v1111
        %2760 = vmatpush1.msra.mxu0 %v1110
        %2761 = vmatprep.subr.mxu0 %v1103
        %2762 = vmatpush1.msra.mxu0 %v1102
        %2763 = vmatprep.subr.mxu0 %v1095
        %2764 = vmatpush1.msra.mxu0 %v1094
        %2765 = vmatprep.subr.mxu0 %v1087
        %2766 = vmatpush1.msra.mxu0 %v1086
        %2767 = vmatprep.subr.mxu0 %v1079
        %2768 = vmatpush1.msra.mxu0 %v1078
        %2769 = vmatprep.subr.mxu0 %v1071
        %2770 = vmatpush1.msra.mxu0 %v1070
        %2771 = vmatprep.subr.mxu0 %v1063
        %2772 = vmatpush1.msra.mxu0 %v1062
        %2773 = vmatprep.subr.mxu0 %v1055
        %2774 = vmatpush1.msra.mxu0 %v1054
        %2775 = vmatprep.subr.mxu0 %v1047
        %2776 = vmatpush1.msra.mxu0 %v1046
        %2777 = vmatprep.subr.mxu0 %v1039
        %2778 = vmatpush1.msra.mxu0 %v1038
        %2779 = vmatprep.subr.mxu0 %v1031
        %2780 = vmatpush1.msra.mxu0 %v1030
        %2781 = vmatprep.subr.mxu0 %v1023
        %2782 = vmatpush1.msra.mxu0 %v1022
        %2783 = vmatprep.subr.mxu0 %v1271
        %2784 = vmatpush2.msra.mxu0 %v1270
        %2785 = vmatprep.subr.mxu0 %v1263
        %2786 = vmatpush2.msra.mxu0 %v1262
        %2787 = vmatprep.subr.mxu0 %v1255
        %2788 = vmatpush2.msra.mxu0 %v1254
        %2789 = vmatprep.subr.mxu0 %v1247
        %2790 = vmatpush2.msra.mxu0 %v1246
        %2791 = vmatprep.subr.mxu0 %v1239
        %2792 = vmatpush2.msra.mxu0 %v1238
        %2793 = vmatprep.subr.mxu0 %v1231
        %2794 = vmatpush2.msra.mxu0 %v1230
        %2795 = vmatprep.subr.mxu0 %v1223
        %2796 = vmatpush2.msra.mxu0 %v1222
        %2797 = vmatprep.subr.mxu0 %v1215
        %2798 = vmatpush2.msra.mxu0 %v1214
        %2799 = vmatprep.subr.mxu0 %v1207
        %2800 = vmatpush2.msra.mxu0 %v1206
        %2801 = vmatprep.subr.mxu0 %v1199
        %2802 = vmatpush2.msra.mxu0 %v1198
        %2803 = vmatprep.subr.mxu0 %v1191
        %2804 = vmatpush2.msra.mxu0 %v1190
        %2805 = vmatprep.subr.mxu0 %v1183
        %2806 = vmatpush2.msra.mxu0 %v1182
        %2807 = vmatprep.subr.mxu0 %v1175
        %2808 = vmatpush2.msra.mxu0 %v1174
        %2809 = vmatprep.subr.mxu0 %v1167
        %2810 = vmatpush2.msra.mxu0 %v1166
        %2811 = vmatprep.subr.mxu0 %v1159
        %2812 = vmatpush2.msra.mxu0 %v1158
        %2813 = vmatprep.subr.mxu0 %v1151
        %2814 = vmatpush2.msra.mxu0 %v1150
        %2815 = vmatprep.mubr.f32.mxu0 %v1802
        %2816 = vmatmul.mubr.f32.gmra.mxu0 %v1800
        %v2817 = vpop.f32.mrf.mxu0
        %v2818 = vadd.f32 %v2747, %v2817
        %v2819 = vpop.f32.mrf.mxu0
        %v2820 = vadd.f32 %v2749, %v2819
        %2821 = vdwg.mxu0
        %2822 = vmatprep.subr.mxu0 %v1399
        %2823 = vmatpush1.msra.mxu0 %v1398
        %2824 = vmatprep.subr.mxu0 %v1391
        %2825 = vmatpush1.msra.mxu0 %v1390
        %2826 = vmatprep.subr.mxu0 %v1383
        %2827 = vmatpush1.msra.mxu0 %v1382
        %2828 = vmatprep.subr.mxu0 %v1375
        %2829 = vmatpush1.msra.mxu0 %v1374
        %2830 = vmatprep.subr.mxu0 %v1367
        %2831 = vmatpush1.msra.mxu0 %v1366
        %2832 = vmatprep.subr.mxu0 %v1359
        %2833 = vmatpush1.msra.mxu0 %v1358
        %2834 = vmatprep.subr.mxu0 %v1351
        %2835 = vmatpush1.msra.mxu0 %v1350
        %2836 = vmatprep.subr.mxu0 %v1343
        %2837 = vmatpush1.msra.mxu0 %v1342
        %2838 = vmatprep.subr.mxu0 %v1335
        %2839 = vmatpush1.msra.mxu0 %v1334
        %2840 = vmatprep.subr.mxu0 %v1327
        %2841 = vmatpush1.msra.mxu0 %v1326
        %2842 = vmatprep.subr.mxu0 %v1319
        %2843 = vmatpush1.msra.mxu0 %v1318
        %2844 = vmatprep.subr.mxu0 %v1311
        %2845 = vmatpush1.msra.mxu0 %v1310
        %2846 = vmatprep.subr.mxu0 %v1303
        %2847 = vmatpush1.msra.mxu0 %v1302
        %2848 = vmatprep.subr.mxu0 %v1295
        %2849 = vmatpush1.msra.mxu0 %v1294
        %2850 = vmatprep.subr.mxu0 %v1287
        %2851 = vmatpush1.msra.mxu0 %v1286
        %2852 = vmatprep.subr.mxu0 %v1279
        %2853 = vmatpush1.msra.mxu0 %v1278
        %2854 = vmatprep.subr.mxu0 %v1527
        %2855 = vmatpush2.msra.mxu0 %v1526
        %2856 = vmatprep.subr.mxu0 %v1519
        %2857 = vmatpush2.msra.mxu0 %v1518
        %2858 = vmatprep.subr.mxu0 %v1511
        %2859 = vmatpush2.msra.mxu0 %v1510
        %2860 = vmatprep.subr.mxu0 %v1503
        %2861 = vmatpush2.msra.mxu0 %v1502
        %2862 = vmatprep.subr.mxu0 %v1495
        %2863 = vmatpush2.msra.mxu0 %v1494
        %2864 = vmatprep.subr.mxu0 %v1487
        %2865 = vmatpush2.msra.mxu0 %v1486
        %2866 = vmatprep.subr.mxu0 %v1479
        %2867 = vmatpush2.msra.mxu0 %v1478
        %2868 = vmatprep.subr.mxu0 %v1471
        %2869 = vmatpush2.msra.mxu0 %v1470
        %2870 = vmatprep.subr.mxu0 %v1463
        %2871 = vmatpush2.msra.mxu0 %v1462
        %2872 = vmatprep.subr.mxu0 %v1455
        %2873 = vmatpush2.msra.mxu0 %v1454
        %2874 = vmatprep.subr.mxu0 %v1447
        %2875 = vmatpush2.msra.mxu0 %v1446
        %2876 = vmatprep.subr.mxu0 %v1439
        %2877 = vmatpush2.msra.mxu0 %v1438
        %2878 = vmatprep.subr.mxu0 %v1431
        %2879 = vmatpush2.msra.mxu0 %v1430
        %2880 = vmatprep.subr.mxu0 %v1423
        %2881 = vmatpush2.msra.mxu0 %v1422
        %2882 = vmatprep.subr.mxu0 %v1415
        %2883 = vmatpush2.msra.mxu0 %v1414
        %2884 = vmatprep.subr.mxu0 %v1407
        %2885 = vmatpush2.msra.mxu0 %v1406
        %2886 = vmatprep.mubr.f32.mxu0 %v1818
        %2887 = vmatmul.mubr.f32.gmra.mxu0 %v1810
        %v2888 = vpop.f32.mrf.mxu0
        %v2889 = vadd.f32 %v2818, %v2888
        %v2890 = vpop.f32.mrf.mxu0
        %v2891 = vadd.f32 %v2820, %v2890
        %2892 = vdwg.mxu0
        %2893 = vmatprep.subr.mxu0 %v1655
        %2894 = vmatpush1.msra.mxu0 %v1654
        %2895 = vmatprep.subr.mxu0 %v1647
        %2896 = vmatpush1.msra.mxu0 %v1646
        %2897 = vmatprep.subr.mxu0 %v1639
        %2898 = vmatpush1.msra.mxu0 %v1638
        %2899 = vmatprep.subr.mxu0 %v1631
        %2900 = vmatpush1.msra.mxu0 %v1630
        %2901 = vmatprep.subr.mxu0 %v1623
        %2902 = vmatpush1.msra.mxu0 %v1622
        %2903 = vmatprep.subr.mxu0 %v1615
        %2904 = vmatpush1.msra.mxu0 %v1614
        %2905 = vmatprep.subr.mxu0 %v1607
        %2906 = vmatpush1.msra.mxu0 %v1606
        %2907 = vmatprep.subr.mxu0 %v1599
        %2908 = vmatpush1.msra.mxu0 %v1598
        %2909 = vmatprep.subr.mxu0 %v1591
        %2910 = vmatpush1.msra.mxu0 %v1590
        %2911 = vmatprep.subr.mxu0 %v1583
        %2912 = vmatpush1.msra.mxu0 %v1582
        %2913 = vmatprep.subr.mxu0 %v1575
        %2914 = vmatpush1.msra.mxu0 %v1574
        %2915 = vmatprep.subr.mxu0 %v1567
        %2916 = vmatpush1.msra.mxu0 %v1566
        %2917 = vmatprep.subr.mxu0 %v1559
        %2918 = vmatpush1.msra.mxu0 %v1558
        %2919 = vmatprep.subr.mxu0 %v1551
        %2920 = vmatpush1.msra.mxu0 %v1550
        %2921 = vmatprep.subr.mxu0 %v1543
        %2922 = vmatpush1.msra.mxu0 %v1542
        %2923 = vmatprep.subr.mxu0 %v1535
        %2924 = vmatpush1.msra.mxu0 %v1534
        %2925 = vmatprep.subr.mxu0 %v1783
        %2926 = vmatpush2.msra.mxu0 %v1782
        %2927 = vmatprep.subr.mxu0 %v1775
        %2928 = vmatpush2.msra.mxu0 %v1774
        %2929 = vmatprep.subr.mxu0 %v1767
        %2930 = vmatpush2.msra.mxu0 %v1766
        %2931 = vmatprep.subr.mxu0 %v1759
        %2932 = vmatpush2.msra.mxu0 %v1758
        %2933 = vmatprep.subr.mxu0 %v1751
        %2934 = vmatpush2.msra.mxu0 %v1750
        %2935 = vmatprep.subr.mxu0 %v1743
        %2936 = vmatpush2.msra.mxu0 %v1742
        %2937 = vmatprep.subr.mxu0 %v1735
        %2938 = vmatpush2.msra.mxu0 %v1734
        %2939 = vmatprep.subr.mxu0 %v1727
        %2940 = vmatpush2.msra.mxu0 %v1726
        %2941 = vmatprep.subr.mxu0 %v1719
        %2942 = vmatpush2.msra.mxu0 %v1718
        %2943 = vmatprep.subr.mxu0 %v1711
        %2944 = vmatpush2.msra.mxu0 %v1710
        %2945 = vmatprep.subr.mxu0 %v1703
        %2946 = vmatpush2.msra.mxu0 %v1702
        %2947 = vmatprep.subr.mxu0 %v1695
        %2948 = vmatpush2.msra.mxu0 %v1694
        %2949 = vmatprep.subr.mxu0 %v1687
        %2950 = vmatpush2.msra.mxu0 %v1686
        %2951 = vmatprep.subr.mxu0 %v1679
        %2952 = vmatpush2.msra.mxu0 %v1678
        %2953 = vmatprep.subr.mxu0 %v1671
        %2954 = vmatpush2.msra.mxu0 %v1670
        %2955 = vmatprep.subr.mxu0 %v1663
        %2956 = vmatpush2.msra.mxu0 %v1662
        %2957 = vmatprep.mubr.f32.mxu0 %v1819
        %2958 = vmatmul.mubr.f32.gmra.mxu0 %v1817
        %v2959 = vpop.f32.mrf.mxu0
        %v2960 = vadd.f32 %v2889, %v2959
        %v2961 = vpop.f32.mrf.mxu0
        %v2962 = vadd.f32 %v2891, %v2961
        %2963 = vdwg.mxu0
        %v2972 = vcombine.low %v2108, %v2110
        %v2973 = vcombine.low %v2392, %v2394
        %v2975 = vunpack.c.l.s4 1983009808
        %v2976 = vunpack.c.0.s8 %v2975
        %v2977 = vlaneseq
        %v2978 = vshrl.u32 %v2977, 7
        %v2979 = vsub.s32 %v2976, %v2978
        %v2980 = vrot.slane %v2972, %v2979
        %v2982 = vunpack.c.l.s4 1983009808
        %v2983 = vunpack.c.0.s8 %v2982
        %v2984 = vlaneseq
        %v2985 = vshrl.u32 %v2984, 7
        %v2986 = vsub.s32 %v2983, %v2985
        %v2987 = vrot.slane %v2973, %v2986
        %v2988 = vcombine.low %v2980, %v2987
        %v2989 = vcombine.low %v2676, %v2678
        %v2990 = vcombine.low %v2960, %v2962
        %v2992 = vunpack.c.l.s4 1983009808
        %v2993 = vunpack.c.0.s8 %v2992
        %v2994 = vlaneseq
        %v2995 = vshrl.u32 %v2994, 7
        %v2996 = vsub.s32 %v2993, %v2995
        %v2997 = vrot.slane %v2989, %v2996
        %v2999 = vunpack.c.l.s4 1983009808
        %v3000 = vunpack.c.0.s8 %v2999
        %v3001 = vlaneseq
        %v3002 = vshrl.u32 %v3001, 7
        %v3003 = vsub.s32 %v3000, %v3002
        %v3004 = vrot.slane %v2990, %v3003
        %v3005 = vcombine.low %v2997, %v3004
        %v3008 = vadd.f32 %v244, %v2988
        %v3009 = vadd.f32 %v245, %v3005
        %3010 = vst [vmem:[#allocation2] sm:$0xff] %v3008
        %3011 = vst [vmem:[#allocation2 + $0x8] sm:$0xff] %v3009
        %p3012 = scmp.eq.s32.totalorder %s17, 1
        // Predicated region
        $region45: #{sfs_cnn_forward.7} parent=39 // pred_check
          %p3013 = pneg %p3012
        $region46: #{sfs_cnn_forward.7} parent=39 // pred_check_branch
          %3015 = sbr.rel (%p3013) target = $region48
        $region47: #{sfs_cnn_forward.7} parent=39 // pred_region
          %v3016 = vld [vmem:[#allocation2] sm:$0xff]
          %v3017 = vld [vmem:[#allocation2 + $0x8] sm:$0xff]
          %v3018 = vld [vmem:[%s2] sm:$0xff]
          %v3020 = vlaneseq
          %v3021 = vshrl.u32 %v3020, 7
          %v3022 = vsub.s32 0, %v3021
          %v3023 = vrot.slane %v3018, %v3022
          %v3024 = vlaneseq
          %v3025 = vshrl.u32 %v3024, 7
          %v3026 = vsub.s32 1, %v3025
          %v3027 = vrot.slane %v3018, %v3026
          %v3028 = vlaneseq
          %v3029 = vshrl.u32 %v3028, 7
          %v3030 = vsub.s32 2, %v3029
          %v3031 = vrot.slane %v3018, %v3030
          %v3032 = vlaneseq
          %v3033 = vshrl.u32 %v3032, 7
          %v3034 = vsub.s32 3, %v3033
          %v3035 = vrot.slane %v3018, %v3034
          %v3036 = vlaneseq
          %v3037 = vshrl.u32 %v3036, 7
          %v3038 = vsub.s32 4, %v3037
          %v3039 = vrot.slane %v3018, %v3038
          %v3040 = vlaneseq
          %v3041 = vshrl.u32 %v3040, 7
          %v3042 = vsub.s32 5, %v3041
          %v3043 = vrot.slane %v3018, %v3042
          %v3044 = vlaneseq
          %v3045 = vshrl.u32 %v3044, 7
          %v3046 = vsub.s32 6, %v3045
          %v3047 = vrot.slane %v3018, %v3046
          %v3048 = vlaneseq
          %v3049 = vshrl.u32 %v3048, 7
          %v3050 = vsub.s32 7, %v3049
          %v3051 = vrot.slane %v3018, %v3050
          %v3052 = vcombine.low %v3023, %v3027
          %v3053 = vcombine.low %v3031, %v3035
          %v3055 = vunpack.c.l.s4 1983009808
          %v3056 = vunpack.c.0.s8 %v3055
          %v3057 = vlaneseq
          %v3058 = vshrl.u32 %v3057, 7
          %v3059 = vsub.s32 %v3056, %v3058
          %v3060 = vrot.slane %v3052, %v3059
          %v3062 = vunpack.c.l.s4 1983009808
          %v3063 = vunpack.c.0.s8 %v3062
          %v3064 = vlaneseq
          %v3065 = vshrl.u32 %v3064, 7
          %v3066 = vsub.s32 %v3063, %v3065
          %v3067 = vrot.slane %v3053, %v3066
          %v3068 = vcombine.low %v3060, %v3067
          %v3069 = vcombine.low %v3039, %v3043
          %v3070 = vcombine.low %v3047, %v3051
          %v3072 = vunpack.c.l.s4 1983009808
          %v3073 = vunpack.c.0.s8 %v3072
          %v3074 = vlaneseq
          %v3075 = vshrl.u32 %v3074, 7
          %v3076 = vsub.s32 %v3073, %v3075
          %v3077 = vrot.slane %v3069, %v3076
          %v3079 = vunpack.c.l.s4 1983009808
          %v3080 = vunpack.c.0.s8 %v3079
          %v3081 = vlaneseq
          %v3082 = vshrl.u32 %v3081, 7
          %v3083 = vsub.s32 %v3080, %v3082
          %v3084 = vrot.slane %v3070, %v3083
          %v3085 = vcombine.low %v3077, %v3084
          %v3088 = vadd.f32 %v3016, %v3068
          %v3089 = vadd.f32 %v3017, %v3085
          %v3090 = vld [vmem:[%s3] sm:$0xf]
          %v3091 = vld [vmem:[%s3 + $0x4] sm:$0xf]
          %v3092 = vld [vmem:[%s3 + $0x8] sm:$0xf]
          %v3093 = vld [vmem:[%s3 + $0xc] sm:$0xf]
          %v3094 = vld [vmem:[%s3 + $0x10] sm:$0xf]
          %v3095 = vld [vmem:[%s3 + $0x14] sm:$0xf]
          %v3096 = vld [vmem:[%s3 + $0x18] sm:$0xf]
          %v3097 = vld [vmem:[%s3 + $0x1c] sm:$0xf]
          %v3098 = vld [vmem:[%s3 + $0x20] sm:$0xf]
          %v3099 = vld [vmem:[%s3 + $0x24] sm:$0xf]
          %v3100 = vld [vmem:[%s3 + $0x28] sm:$0xf]
          %v3101 = vld [vmem:[%s3 + $0x2c] sm:$0xf]
          %v3102 = vld [vmem:[%s3 + $0x30] sm:$0xf]
          %v3103 = vld [vmem:[%s3 + $0x34] sm:$0xf]
          %v3104 = vld [vmem:[%s3 + $0x38] sm:$0xf]
          %v3105 = vld [vmem:[%s3 + $0x3c] sm:$0xf]
          %v3106 = vld [vmem:[%s3 + $0x40] sm:$0xf]
          %v3107 = vld [vmem:[%s3 + $0x44] sm:$0xf]
          %v3108 = vld [vmem:[%s3 + $0x48] sm:$0xf]
          %v3109 = vld [vmem:[%s3 + $0x4c] sm:$0xf]
          %v3110 = vld [vmem:[%s3 + $0x50] sm:$0xf]
          %v3111 = vld [vmem:[%s3 + $0x54] sm:$0xf]
          %v3112 = vld [vmem:[%s3 + $0x58] sm:$0xf]
          %v3113 = vld [vmem:[%s3 + $0x5c] sm:$0xf]
          %v3114 = vld [vmem:[%s3 + $0x60] sm:$0xf]
          %v3115 = vld [vmem:[%s3 + $0x64] sm:$0xf]
          %v3116 = vld [vmem:[%s3 + $0x68] sm:$0xf]
          %v3117 = vld [vmem:[%s3 + $0x6c] sm:$0xf]
          %v3118 = vld [vmem:[%s3 + $0x70] sm:$0xf]
          %v3119 = vld [vmem:[%s3 + $0x74] sm:$0xf]
          %v3120 = vld [vmem:[%s3 + $0x78] sm:$0xf]
          %v3121 = vld [vmem:[%s3 + $0x7c] sm:$0xf]
          %v3122 = vld [vmem:[%s3 + $0x80] sm:$0xf]
          %v3123 = vld [vmem:[%s3 + $0x84] sm:$0xf]
          %v3124 = vld [vmem:[%s3 + $0x88] sm:$0xf]
          %v3125 = vld [vmem:[%s3 + $0x8c] sm:$0xf]
          %v3126 = vld [vmem:[%s3 + $0x90] sm:$0xf]
          %v3127 = vld [vmem:[%s3 + $0x94] sm:$0xf]
          %v3128 = vld [vmem:[%s3 + $0x98] sm:$0xf]
          %v3129 = vld [vmem:[%s3 + $0x9c] sm:$0xf]
          %v3130 = vld [vmem:[%s3 + $0xa0] sm:$0xf]
          %v3131 = vld [vmem:[%s3 + $0xa4] sm:$0xf]
          %v3132 = vld [vmem:[%s3 + $0xa8] sm:$0xf]
          %v3133 = vld [vmem:[%s3 + $0xac] sm:$0xf]
          %v3134 = vld [vmem:[%s3 + $0xb0] sm:$0xf]
          %v3135 = vld [vmem:[%s3 + $0xb4] sm:$0xf]
          %v3136 = vld [vmem:[%s3 + $0xb8] sm:$0xf]
          %v3137 = vld [vmem:[%s3 + $0xbc] sm:$0xf]
          %v3138 = vld [vmem:[%s3 + $0xc0] sm:$0xf]
          %v3139 = vld [vmem:[%s3 + $0xc4] sm:$0xf]
          %v3140 = vld [vmem:[%s3 + $0xc8] sm:$0xf]
          %v3141 = vld [vmem:[%s3 + $0xcc] sm:$0xf]
          %v3142 = vld [vmem:[%s3 + $0xd0] sm:$0xf]
          %v3143 = vld [vmem:[%s3 + $0xd4] sm:$0xf]
          %v3144 = vld [vmem:[%s3 + $0xd8] sm:$0xf]
          %v3145 = vld [vmem:[%s3 + $0xdc] sm:$0xf]
          %v3146 = vld [vmem:[%s3 + $0xe0] sm:$0xf]
          %v3147 = vld [vmem:[%s3 + $0xe4] sm:$0xf]
          %v3148 = vld [vmem:[%s3 + $0xe8] sm:$0xf]
          %v3149 = vld [vmem:[%s3 + $0xec] sm:$0xf]
          %v3150 = vld [vmem:[%s3 + $0xf0] sm:$0xf]
          %v3151 = vld [vmem:[%s3 + $0xf4] sm:$0xf]
          %v3152 = vld [vmem:[%s3 + $0xf8] sm:$0xf]
          %v3153 = vld [vmem:[%s3 + $0xfc] sm:$0xf]
          %v3154 = vld [vmem:[%s3 + $0x100] sm:$0xf]
          %v3155 = vld [vmem:[%s3 + $0x104] sm:$0xf]
          %v3156 = vld [vmem:[%s3 + $0x108] sm:$0xf]
          %v3157 = vld [vmem:[%s3 + $0x10c] sm:$0xf]
          %v3158 = vld [vmem:[%s3 + $0x110] sm:$0xf]
          %v3159 = vld [vmem:[%s3 + $0x114] sm:$0xf]
          %v3160 = vld [vmem:[%s3 + $0x118] sm:$0xf]
          %v3161 = vld [vmem:[%s3 + $0x11c] sm:$0xf]
          %v3162 = vld [vmem:[%s3 + $0x120] sm:$0xf]
          %v3163 = vld [vmem:[%s3 + $0x124] sm:$0xf]
          %v3164 = vld [vmem:[%s3 + $0x128] sm:$0xf]
          %v3165 = vld [vmem:[%s3 + $0x12c] sm:$0xf]
          %v3166 = vld [vmem:[%s3 + $0x130] sm:$0xf]
          %v3167 = vld [vmem:[%s3 + $0x134] sm:$0xf]
          %v3168 = vld [vmem:[%s3 + $0x138] sm:$0xf]
          %v3169 = vld [vmem:[%s3 + $0x13c] sm:$0xf]
          %v3170 = vld [vmem:[%s3 + $0x140] sm:$0xf]
          %v3171 = vld [vmem:[%s3 + $0x144] sm:$0xf]
          %v3172 = vld [vmem:[%s3 + $0x148] sm:$0xf]
          %v3173 = vld [vmem:[%s3 + $0x14c] sm:$0xf]
          %v3174 = vld [vmem:[%s3 + $0x150] sm:$0xf]
          %v3175 = vld [vmem:[%s3 + $0x154] sm:$0xf]
          %v3176 = vld [vmem:[%s3 + $0x158] sm:$0xf]
          %v3177 = vld [vmem:[%s3 + $0x15c] sm:$0xf]
          %v3178 = vld [vmem:[%s3 + $0x160] sm:$0xf]
          %v3179 = vld [vmem:[%s3 + $0x164] sm:$0xf]
          %v3180 = vld [vmem:[%s3 + $0x168] sm:$0xf]
          %v3181 = vld [vmem:[%s3 + $0x16c] sm:$0xf]
          %v3182 = vld [vmem:[%s3 + $0x170] sm:$0xf]
          %v3183 = vld [vmem:[%s3 + $0x174] sm:$0xf]
          %v3184 = vld [vmem:[%s3 + $0x178] sm:$0xf]
          %v3185 = vld [vmem:[%s3 + $0x17c] sm:$0xf]
          %v3186 = vld [vmem:[%s3 + $0x180] sm:$0xf]
          %v3187 = vld [vmem:[%s3 + $0x184] sm:$0xf]
          %v3188 = vld [vmem:[%s3 + $0x188] sm:$0xf]
          %v3189 = vld [vmem:[%s3 + $0x18c] sm:$0xf]
          %v3190 = vld [vmem:[%s3 + $0x190] sm:$0xf]
          %v3191 = vld [vmem:[%s3 + $0x194] sm:$0xf]
          %v3192 = vld [vmem:[%s3 + $0x198] sm:$0xf]
          %v3193 = vld [vmem:[%s3 + $0x19c] sm:$0xf]
          %v3194 = vld [vmem:[%s3 + $0x1a0] sm:$0xf]
          %v3195 = vld [vmem:[%s3 + $0x1a4] sm:$0xf]
          %v3196 = vld [vmem:[%s3 + $0x1a8] sm:$0xf]
          %v3197 = vld [vmem:[%s3 + $0x1ac] sm:$0xf]
          %v3198 = vld [vmem:[%s3 + $0x1b0] sm:$0xf]
          %v3199 = vld [vmem:[%s3 + $0x1b4] sm:$0xf]
          %v3200 = vld [vmem:[%s3 + $0x1b8] sm:$0xf]
          %v3201 = vld [vmem:[%s3 + $0x1bc] sm:$0xf]
          %v3202 = vld [vmem:[%s3 + $0x1c0] sm:$0xf]
          %v3203 = vld [vmem:[%s3 + $0x1c4] sm:$0xf]
          %v3204 = vld [vmem:[%s3 + $0x1c8] sm:$0xf]
          %v3205 = vld [vmem:[%s3 + $0x1cc] sm:$0xf]
          %v3206 = vld [vmem:[%s3 + $0x1d0] sm:$0xf]
          %v3207 = vld [vmem:[%s3 + $0x1d4] sm:$0xf]
          %v3208 = vld [vmem:[%s3 + $0x1d8] sm:$0xf]
          %v3209 = vld [vmem:[%s3 + $0x1dc] sm:$0xf]
          %v3210 = vld [vmem:[%s3 + $0x1e0] sm:$0xf]
          %v3211 = vld [vmem:[%s3 + $0x1e4] sm:$0xf]
          %v3212 = vld [vmem:[%s3 + $0x1e8] sm:$0xf]
          %v3213 = vld [vmem:[%s3 + $0x1ec] sm:$0xf]
          %v3214 = vld [vmem:[%s3 + $0x1f0] sm:$0xf]
          %v3215 = vld [vmem:[%s3 + $0x1f4] sm:$0xf]
          %v3216 = vld [vmem:[%s3 + $0x1f8] sm:$0xf]
          %v3217 = vld [vmem:[%s3 + $0x1fc] sm:$0xf]
          %v3218 = vunpack.c.l.bf16 %v3090
          %v3219 = vunpack.c.l.bf16 %v3091
          %v3220 = vunpack.c.l.bf16 %v3092
          %v3221 = vunpack.c.l.bf16 %v3093
          %v3222 = vunpack.c.l.bf16 %v3094
          %v3223 = vunpack.c.l.bf16 %v3095
          %v3224 = vunpack.c.l.bf16 %v3096
          %v3225 = vunpack.c.l.bf16 %v3097
          %v3226 = vunpack.c.l.bf16 %v3098
          %v3227 = vunpack.c.l.bf16 %v3099
          %v3228 = vunpack.c.l.bf16 %v3100
          %v3229 = vunpack.c.l.bf16 %v3101
          %v3230 = vunpack.c.l.bf16 %v3102
          %v3231 = vunpack.c.l.bf16 %v3103
          %v3232 = vunpack.c.l.bf16 %v3104
          %v3233 = vunpack.c.l.bf16 %v3105
          %v3234 = vunpack.c.l.bf16 %v3106
          %v3235 = vunpack.c.l.bf16 %v3107
          %v3236 = vunpack.c.l.bf16 %v3108
          %v3237 = vunpack.c.l.bf16 %v3109
          %v3238 = vunpack.c.l.bf16 %v3110
          %v3239 = vunpack.c.l.bf16 %v3111
          %v3240 = vunpack.c.l.bf16 %v3112
          %v3241 = vunpack.c.l.bf16 %v3113
          %v3242 = vunpack.c.l.bf16 %v3114
          %v3243 = vunpack.c.l.bf16 %v3115
          %v3244 = vunpack.c.l.bf16 %v3116
          %v3245 = vunpack.c.l.bf16 %v3117
          %v3246 = vunpack.c.l.bf16 %v3118
          %v3247 = vunpack.c.l.bf16 %v3119
          %v3248 = vunpack.c.l.bf16 %v3120
          %v3249 = vunpack.c.l.bf16 %v3121
          %v3250 = vunpack.c.l.bf16 %v3122
          %v3251 = vunpack.c.l.bf16 %v3123
          %v3252 = vunpack.c.l.bf16 %v3124
          %v3253 = vunpack.c.l.bf16 %v3125
          %v3254 = vunpack.c.l.bf16 %v3126
          %v3255 = vunpack.c.l.bf16 %v3127
          %v3256 = vunpack.c.l.bf16 %v3128
          %v3257 = vunpack.c.l.bf16 %v3129
          %v3258 = vunpack.c.l.bf16 %v3130
          %v3259 = vunpack.c.l.bf16 %v3131
          %v3260 = vunpack.c.l.bf16 %v3132
          %v3261 = vunpack.c.l.bf16 %v3133
          %v3262 = vunpack.c.l.bf16 %v3134
          %v3263 = vunpack.c.l.bf16 %v3135
          %v3264 = vunpack.c.l.bf16 %v3136
          %v3265 = vunpack.c.l.bf16 %v3137
          %v3266 = vunpack.c.l.bf16 %v3138
          %v3267 = vunpack.c.l.bf16 %v3139
          %v3268 = vunpack.c.l.bf16 %v3140
          %v3269 = vunpack.c.l.bf16 %v3141
          %v3270 = vunpack.c.l.bf16 %v3142
          %v3271 = vunpack.c.l.bf16 %v3143
          %v3272 = vunpack.c.l.bf16 %v3144
          %v3273 = vunpack.c.l.bf16 %v3145
          %v3274 = vunpack.c.l.bf16 %v3146
          %v3275 = vunpack.c.l.bf16 %v3147
          %v3276 = vunpack.c.l.bf16 %v3148
          %v3277 = vunpack.c.l.bf16 %v3149
          %v3278 = vunpack.c.l.bf16 %v3150
          %v3279 = vunpack.c.l.bf16 %v3151
          %v3280 = vunpack.c.l.bf16 %v3152
          %v3281 = vunpack.c.l.bf16 %v3153
          %v3282 = vunpack.c.l.bf16 %v3154
          %v3283 = vunpack.c.l.bf16 %v3155
          %v3284 = vunpack.c.l.bf16 %v3156
          %v3285 = vunpack.c.l.bf16 %v3157
          %v3286 = vunpack.c.l.bf16 %v3158
          %v3287 = vunpack.c.l.bf16 %v3159
          %v3288 = vunpack.c.l.bf16 %v3160
          %v3289 = vunpack.c.l.bf16 %v3161
          %v3290 = vunpack.c.l.bf16 %v3162
          %v3291 = vunpack.c.l.bf16 %v3163
          %v3292 = vunpack.c.l.bf16 %v3164
          %v3293 = vunpack.c.l.bf16 %v3165
          %v3294 = vunpack.c.l.bf16 %v3166
          %v3295 = vunpack.c.l.bf16 %v3167
          %v3296 = vunpack.c.l.bf16 %v3168
          %v3297 = vunpack.c.l.bf16 %v3169
          %v3298 = vunpack.c.l.bf16 %v3170
          %v3299 = vunpack.c.l.bf16 %v3171
          %v3300 = vunpack.c.l.bf16 %v3172
          %v3301 = vunpack.c.l.bf16 %v3173
          %v3302 = vunpack.c.l.bf16 %v3174
          %v3303 = vunpack.c.l.bf16 %v3175
          %v3304 = vunpack.c.l.bf16 %v3176
          %v3305 = vunpack.c.l.bf16 %v3177
          %v3306 = vunpack.c.l.bf16 %v3178
          %v3307 = vunpack.c.l.bf16 %v3179
          %v3308 = vunpack.c.l.bf16 %v3180
          %v3309 = vunpack.c.l.bf16 %v3181
          %v3310 = vunpack.c.l.bf16 %v3182
          %v3311 = vunpack.c.l.bf16 %v3183
          %v3312 = vunpack.c.l.bf16 %v3184
          %v3313 = vunpack.c.l.bf16 %v3185
          %v3314 = vunpack.c.l.bf16 %v3186
          %v3315 = vunpack.c.l.bf16 %v3187
          %v3316 = vunpack.c.l.bf16 %v3188
          %v3317 = vunpack.c.l.bf16 %v3189
          %v3318 = vunpack.c.l.bf16 %v3190
          %v3319 = vunpack.c.l.bf16 %v3191
          %v3320 = vunpack.c.l.bf16 %v3192
          %v3321 = vunpack.c.l.bf16 %v3193
          %v3322 = vunpack.c.l.bf16 %v3194
          %v3323 = vunpack.c.l.bf16 %v3195
          %v3324 = vunpack.c.l.bf16 %v3196
          %v3325 = vunpack.c.l.bf16 %v3197
          %v3326 = vunpack.c.l.bf16 %v3198
          %v3327 = vunpack.c.l.bf16 %v3199
          %v3328 = vunpack.c.l.bf16 %v3200
          %v3329 = vunpack.c.l.bf16 %v3201
          %v3330 = vunpack.c.l.bf16 %v3202
          %v3331 = vunpack.c.l.bf16 %v3203
          %v3332 = vunpack.c.l.bf16 %v3204
          %v3333 = vunpack.c.l.bf16 %v3205
          %v3334 = vunpack.c.l.bf16 %v3206
          %v3335 = vunpack.c.l.bf16 %v3207
          %v3336 = vunpack.c.l.bf16 %v3208
          %v3337 = vunpack.c.l.bf16 %v3209
          %v3338 = vunpack.c.l.bf16 %v3210
          %v3339 = vunpack.c.l.bf16 %v3211
          %v3340 = vunpack.c.l.bf16 %v3212
          %v3341 = vunpack.c.l.bf16 %v3213
          %v3342 = vunpack.c.l.bf16 %v3214
          %v3343 = vunpack.c.l.bf16 %v3215
          %v3344 = vunpack.c.l.bf16 %v3216
          %v3345 = vunpack.c.l.bf16 %v3217
          %v3346 = vld [vmem:[%s4] sm:$0x1]
          %v3348 = vlaneseq
          %v3349 = vshrl.u32 %v3348, 7
          %v3350 = vsub.s32 0, %v3349
          %v3351 = vrot.slane %v3346, %v3350
          %v3355 = vcombine.high %v3088, %v3088
          %v3357 = vunpack.c.l.s4 1983009808
          %v3358 = vunpack.c.0.s8 %v3357
          %v3359 = vlaneseq
          %v3360 = vshrl.u32 %v3359, 7
          %v3361 = vsub.s32 %v3358, %v3360
          %v3362 = vrot.slane %v3088, %v3361
          %v3364 = vunpack.c.l.s4 1983009808
          %v3365 = vunpack.c.0.s8 %v3364
          %v3366 = vlaneseq
          %v3367 = vshrl.u32 %v3366, 7
          %v3368 = vsub.s32 %v3365, %v3367
          %v3369 = vrot.slane %v3355, %v3368
          %v3370 = vcombine.high %v3362, %v3362
          %v3371 = vcombine.high %v3369, %v3369
          %v3372 = vcombine.high %v3089, %v3089
          %v3374 = vunpack.c.l.s4 1983009808
          %v3375 = vunpack.c.0.s8 %v3374
          %v3376 = vlaneseq
          %v3377 = vshrl.u32 %v3376, 7
          %v3378 = vsub.s32 %v3375, %v3377
          %v3379 = vrot.slane %v3089, %v3378
          %v3381 = vunpack.c.l.s4 1983009808
          %v3382 = vunpack.c.0.s8 %v3381
          %v3383 = vlaneseq
          %v3384 = vshrl.u32 %v3383, 7
          %v3385 = vsub.s32 %v3382, %v3384
          %v3386 = vrot.slane %v3372, %v3385
          %v3387 = vcombine.high %v3379, %v3379
          %v3388 = vcombine.high %v3386, %v3386
          %3397 = vmatprep.subr.mxu0 0.0
          %3398 = vmatpush1.msra.mxu0 %v3233
          %3399 = vmatprep.subr.mxu0 0.0
          %3400 = vmatpush1.msra.mxu0 %v3232
          %3401 = vmatprep.subr.mxu0 0.0
          %3402 = vmatpush1.msra.mxu0 %v3231
          %3403 = vmatprep.subr.mxu0 0.0
          %3404 = vmatpush1.msra.mxu0 %v3230
          %3405 = vmatprep.subr.mxu0 0.0
          %3406 = vmatpush1.msra.mxu0 %v3229
          %3407 = vmatprep.subr.mxu0 0.0
          %3408 = vmatpush1.msra.mxu0 %v3228
          %3409 = vmatprep.subr.mxu0 0.0
          %3410 = vmatpush1.msra.mxu0 %v3227
          %3411 = vmatprep.subr.mxu0 0.0
          %3412 = vmatpush1.msra.mxu0 %v3226
          %3413 = vmatprep.subr.mxu0 0.0
          %3414 = vmatpush1.msra.mxu0 %v3225
          %3415 = vmatprep.subr.mxu0 0.0
          %3416 = vmatpush1.msra.mxu0 %v3224
          %3417 = vmatprep.subr.mxu0 0.0
          %3418 = vmatpush1.msra.mxu0 %v3223
          %3419 = vmatprep.subr.mxu0 0.0
          %3420 = vmatpush1.msra.mxu0 %v3222
          %3421 = vmatprep.subr.mxu0 0.0
          %3422 = vmatpush1.msra.mxu0 %v3221
          %3423 = vmatprep.subr.mxu0 0.0
          %3424 = vmatpush1.msra.mxu0 %v3220
          %3425 = vmatprep.subr.mxu0 0.0
          %3426 = vmatpush1.msra.mxu0 %v3219
          %3427 = vmatprep.subr.mxu0 0.0
          %3428 = vmatpush1.msra.mxu0 %v3218
          %3429 = vmatprep.subr.mxu0 0.0
          %3430 = vmatpush2.msra.mxu0 %v3249
          %3431 = vmatprep.subr.mxu0 0.0
          %3432 = vmatpush2.msra.mxu0 %v3248
          %3433 = vmatprep.subr.mxu0 0.0
          %3434 = vmatpush2.msra.mxu0 %v3247
          %3435 = vmatprep.subr.mxu0 0.0
          %3436 = vmatpush2.msra.mxu0 %v3246
          %3437 = vmatprep.subr.mxu0 0.0
          %3438 = vmatpush2.msra.mxu0 %v3245
          %3439 = vmatprep.subr.mxu0 0.0
          %3440 = vmatpush2.msra.mxu0 %v3244
          %3441 = vmatprep.subr.mxu0 0.0
          %3442 = vmatpush2.msra.mxu0 %v3243
          %3443 = vmatprep.subr.mxu0 0.0
          %3444 = vmatpush2.msra.mxu0 %v3242
          %3445 = vmatprep.subr.mxu0 0.0
          %3446 = vmatpush2.msra.mxu0 %v3241
          %3447 = vmatprep.subr.mxu0 0.0
          %3448 = vmatpush2.msra.mxu0 %v3240
          %3449 = vmatprep.subr.mxu0 0.0
          %3450 = vmatpush2.msra.mxu0 %v3239
          %3451 = vmatprep.subr.mxu0 0.0
          %3452 = vmatpush2.msra.mxu0 %v3238
          %3453 = vmatprep.subr.mxu0 0.0
          %3454 = vmatpush2.msra.mxu0 %v3237
          %3455 = vmatprep.subr.mxu0 0.0
          %3456 = vmatpush2.msra.mxu0 %v3236
          %3457 = vmatprep.subr.mxu0 0.0
          %3458 = vmatpush2.msra.mxu0 %v3235
          %3459 = vmatprep.subr.mxu0 0.0
          %3460 = vmatpush2.msra.mxu0 %v3234
          %3461 = vmatprep.mubr.f32.mxu0 %v3370
          %3462 = vmatmul.mubr.f32.gmra.mxu0 %v3362
          %v3463 = vpop.f32.mrf.mxu0
          %v3464 = vadd.f32 %v3351, %v3463
          %v3465 = vpop.f32.mrf.mxu0
          %3466 = vdwg.mxu0
          %3467 = vmatprep.subr.mxu0 0.0
          %3468 = vmatpush1.msra.mxu0 %v3265
          %3469 = vmatprep.subr.mxu0 0.0
          %3470 = vmatpush1.msra.mxu0 %v3264
          %3471 = vmatprep.subr.mxu0 0.0
          %3472 = vmatpush1.msra.mxu0 %v3263
          %3473 = vmatprep.subr.mxu0 0.0
          %3474 = vmatpush1.msra.mxu0 %v3262
          %3475 = vmatprep.subr.mxu0 0.0
          %3476 = vmatpush1.msra.mxu0 %v3261
          %3477 = vmatprep.subr.mxu0 0.0
          %3478 = vmatpush1.msra.mxu0 %v3260
          %3479 = vmatprep.subr.mxu0 0.0
          %3480 = vmatpush1.msra.mxu0 %v3259
          %3481 = vmatprep.subr.mxu0 0.0
          %3482 = vmatpush1.msra.mxu0 %v3258
          %3483 = vmatprep.subr.mxu0 0.0
          %3484 = vmatpush1.msra.mxu0 %v3257
          %3485 = vmatprep.subr.mxu0 0.0
          %3486 = vmatpush1.msra.mxu0 %v3256
          %3487 = vmatprep.subr.mxu0 0.0
          %3488 = vmatpush1.msra.mxu0 %v3255
          %3489 = vmatprep.subr.mxu0 0.0
          %3490 = vmatpush1.msra.mxu0 %v3254
          %3491 = vmatprep.subr.mxu0 0.0
          %3492 = vmatpush1.msra.mxu0 %v3253
          %3493 = vmatprep.subr.mxu0 0.0
          %3494 = vmatpush1.msra.mxu0 %v3252
          %3495 = vmatprep.subr.mxu0 0.0
          %3496 = vmatpush1.msra.mxu0 %v3251
          %3497 = vmatprep.subr.mxu0 0.0
          %3498 = vmatpush1.msra.mxu0 %v3250
          %3499 = vmatprep.subr.mxu0 0.0
          %3500 = vmatpush2.msra.mxu0 %v3281
          %3501 = vmatprep.subr.mxu0 0.0
          %3502 = vmatpush2.msra.mxu0 %v3280
          %3503 = vmatprep.subr.mxu0 0.0
          %3504 = vmatpush2.msra.mxu0 %v3279
          %3505 = vmatprep.subr.mxu0 0.0
          %3506 = vmatpush2.msra.mxu0 %v3278
          %3507 = vmatprep.subr.mxu0 0.0
          %3508 = vmatpush2.msra.mxu0 %v3277
          %3509 = vmatprep.subr.mxu0 0.0
          %3510 = vmatpush2.msra.mxu0 %v3276
          %3511 = vmatprep.subr.mxu0 0.0
          %3512 = vmatpush2.msra.mxu0 %v3275
          %3513 = vmatprep.subr.mxu0 0.0
          %3514 = vmatpush2.msra.mxu0 %v3274
          %3515 = vmatprep.subr.mxu0 0.0
          %3516 = vmatpush2.msra.mxu0 %v3273
          %3517 = vmatprep.subr.mxu0 0.0
          %3518 = vmatpush2.msra.mxu0 %v3272
          %3519 = vmatprep.subr.mxu0 0.0
          %3520 = vmatpush2.msra.mxu0 %v3271
          %3521 = vmatprep.subr.mxu0 0.0
          %3522 = vmatpush2.msra.mxu0 %v3270
          %3523 = vmatprep.subr.mxu0 0.0
          %3524 = vmatpush2.msra.mxu0 %v3269
          %3525 = vmatprep.subr.mxu0 0.0
          %3526 = vmatpush2.msra.mxu0 %v3268
          %3527 = vmatprep.subr.mxu0 0.0
          %3528 = vmatpush2.msra.mxu0 %v3267
          %3529 = vmatprep.subr.mxu0 0.0
          %3530 = vmatpush2.msra.mxu0 %v3266
          %3531 = vmatprep.mubr.f32.mxu0 %v3371
          %3532 = vmatmul.mubr.f32.gmra.mxu0 %v3369
          %v3533 = vpop.f32.mrf.mxu0
          %v3534 = vadd.f32 %v3464, %v3533
          %v3535 = vpop.f32.mrf.mxu0
          %3536 = vdwg.mxu0
          %3537 = vmatprep.subr.mxu0 0.0
          %3538 = vmatpush1.msra.mxu0 %v3297
          %3539 = vmatprep.subr.mxu0 0.0
          %3540 = vmatpush1.msra.mxu0 %v3296
          %3541 = vmatprep.subr.mxu0 0.0
          %3542 = vmatpush1.msra.mxu0 %v3295
          %3543 = vmatprep.subr.mxu0 0.0
          %3544 = vmatpush1.msra.mxu0 %v3294
          %3545 = vmatprep.subr.mxu0 0.0
          %3546 = vmatpush1.msra.mxu0 %v3293
          %3547 = vmatprep.subr.mxu0 0.0
          %3548 = vmatpush1.msra.mxu0 %v3292
          %3549 = vmatprep.subr.mxu0 0.0
          %3550 = vmatpush1.msra.mxu0 %v3291
          %3551 = vmatprep.subr.mxu0 0.0
          %3552 = vmatpush1.msra.mxu0 %v3290
          %3553 = vmatprep.subr.mxu0 0.0
          %3554 = vmatpush1.msra.mxu0 %v3289
          %3555 = vmatprep.subr.mxu0 0.0
          %3556 = vmatpush1.msra.mxu0 %v3288
          %3557 = vmatprep.subr.mxu0 0.0
          %3558 = vmatpush1.msra.mxu0 %v3287
          %3559 = vmatprep.subr.mxu0 0.0
          %3560 = vmatpush1.msra.mxu0 %v3286
          %3561 = vmatprep.subr.mxu0 0.0
          %3562 = vmatpush1.msra.mxu0 %v3285
          %3563 = vmatprep.subr.mxu0 0.0
          %3564 = vmatpush1.msra.mxu0 %v3284
          %3565 = vmatprep.subr.mxu0 0.0
          %3566 = vmatpush1.msra.mxu0 %v3283
          %3567 = vmatprep.subr.mxu0 0.0
          %3568 = vmatpush1.msra.mxu0 %v3282
          %3569 = vmatprep.subr.mxu0 0.0
          %3570 = vmatpush2.msra.mxu0 %v3313
          %3571 = vmatprep.subr.mxu0 0.0
          %3572 = vmatpush2.msra.mxu0 %v3312
          %3573 = vmatprep.subr.mxu0 0.0
          %3574 = vmatpush2.msra.mxu0 %v3311
          %3575 = vmatprep.subr.mxu0 0.0
          %3576 = vmatpush2.msra.mxu0 %v3310
          %3577 = vmatprep.subr.mxu0 0.0
          %3578 = vmatpush2.msra.mxu0 %v3309
          %3579 = vmatprep.subr.mxu0 0.0
          %3580 = vmatpush2.msra.mxu0 %v3308
          %3581 = vmatprep.subr.mxu0 0.0
          %3582 = vmatpush2.msra.mxu0 %v3307
          %3583 = vmatprep.subr.mxu0 0.0
          %3584 = vmatpush2.msra.mxu0 %v3306
          %3585 = vmatprep.subr.mxu0 0.0
          %3586 = vmatpush2.msra.mxu0 %v3305
          %3587 = vmatprep.subr.mxu0 0.0
          %3588 = vmatpush2.msra.mxu0 %v3304
          %3589 = vmatprep.subr.mxu0 0.0
          %3590 = vmatpush2.msra.mxu0 %v3303
          %3591 = vmatprep.subr.mxu0 0.0
          %3592 = vmatpush2.msra.mxu0 %v3302
          %3593 = vmatprep.subr.mxu0 0.0
          %3594 = vmatpush2.msra.mxu0 %v3301
          %3595 = vmatprep.subr.mxu0 0.0
          %3596 = vmatpush2.msra.mxu0 %v3300
          %3597 = vmatprep.subr.mxu0 0.0
          %3598 = vmatpush2.msra.mxu0 %v3299
          %3599 = vmatprep.subr.mxu0 0.0
          %3600 = vmatpush2.msra.mxu0 %v3298
          %3601 = vmatprep.mubr.f32.mxu0 %v3387
          %3602 = vmatmul.mubr.f32.gmra.mxu0 %v3379
          %v3603 = vpop.f32.mrf.mxu0
          %v3604 = vadd.f32 %v3534, %v3603
          %v3605 = vpop.f32.mrf.mxu0
          %3606 = vdwg.mxu0
          %3607 = vmatprep.subr.mxu0 0.0
          %3608 = vmatpush1.msra.mxu0 %v3329
          %3609 = vmatprep.subr.mxu0 0.0
          %3610 = vmatpush1.msra.mxu0 %v3328
          %3611 = vmatprep.subr.mxu0 0.0
          %3612 = vmatpush1.msra.mxu0 %v3327
          %3613 = vmatprep.subr.mxu0 0.0
          %3614 = vmatpush1.msra.mxu0 %v3326
          %3615 = vmatprep.subr.mxu0 0.0
          %3616 = vmatpush1.msra.mxu0 %v3325
          %3617 = vmatprep.subr.mxu0 0.0
          %3618 = vmatpush1.msra.mxu0 %v3324
          %3619 = vmatprep.subr.mxu0 0.0
          %3620 = vmatpush1.msra.mxu0 %v3323
          %3621 = vmatprep.subr.mxu0 0.0
          %3622 = vmatpush1.msra.mxu0 %v3322
          %3623 = vmatprep.subr.mxu0 0.0
          %3624 = vmatpush1.msra.mxu0 %v3321
          %3625 = vmatprep.subr.mxu0 0.0
          %3626 = vmatpush1.msra.mxu0 %v3320
          %3627 = vmatprep.subr.mxu0 0.0
          %3628 = vmatpush1.msra.mxu0 %v3319
          %3629 = vmatprep.subr.mxu0 0.0
          %3630 = vmatpush1.msra.mxu0 %v3318
          %3631 = vmatprep.subr.mxu0 0.0
          %3632 = vmatpush1.msra.mxu0 %v3317
          %3633 = vmatprep.subr.mxu0 0.0
          %3634 = vmatpush1.msra.mxu0 %v3316
          %3635 = vmatprep.subr.mxu0 0.0
          %3636 = vmatpush1.msra.mxu0 %v3315
          %3637 = vmatprep.subr.mxu0 0.0
          %3638 = vmatpush1.msra.mxu0 %v3314
          %3639 = vmatprep.subr.mxu0 0.0
          %3640 = vmatpush2.msra.mxu0 %v3345
          %3641 = vmatprep.subr.mxu0 0.0
          %3642 = vmatpush2.msra.mxu0 %v3344
          %3643 = vmatprep.subr.mxu0 0.0
          %3644 = vmatpush2.msra.mxu0 %v3343
          %3645 = vmatprep.subr.mxu0 0.0
          %3646 = vmatpush2.msra.mxu0 %v3342
          %3647 = vmatprep.subr.mxu0 0.0
          %3648 = vmatpush2.msra.mxu0 %v3341
          %3649 = vmatprep.subr.mxu0 0.0
          %3650 = vmatpush2.msra.mxu0 %v3340
          %3651 = vmatprep.subr.mxu0 0.0
          %3652 = vmatpush2.msra.mxu0 %v3339
          %3653 = vmatprep.subr.mxu0 0.0
          %3654 = vmatpush2.msra.mxu0 %v3338
          %3655 = vmatprep.subr.mxu0 0.0
          %3656 = vmatpush2.msra.mxu0 %v3337
          %3657 = vmatprep.subr.mxu0 0.0
          %3658 = vmatpush2.msra.mxu0 %v3336
          %3659 = vmatprep.subr.mxu0 0.0
          %3660 = vmatpush2.msra.mxu0 %v3335
          %3661 = vmatprep.subr.mxu0 0.0
          %3662 = vmatpush2.msra.mxu0 %v3334
          %3663 = vmatprep.subr.mxu0 0.0
          %3664 = vmatpush2.msra.mxu0 %v3333
          %3665 = vmatprep.subr.mxu0 0.0
          %3666 = vmatpush2.msra.mxu0 %v3332
          %3667 = vmatprep.subr.mxu0 0.0
          %3668 = vmatpush2.msra.mxu0 %v3331
          %3669 = vmatprep.subr.mxu0 0.0
          %3670 = vmatpush2.msra.mxu0 %v3330
          %3671 = vmatprep.mubr.f32.mxu0 %v3388
          %3672 = vmatmul.mubr.f32.gmra.mxu0 %v3386
          %v3673 = vpop.f32.mrf.mxu0
          %v3674 = vadd.f32 %v3604, %v3673
          %v3675 = vpop.f32.mrf.mxu0
          %3676 = vdwg.mxu0
          %3677 = vst [vmem:[#allocation3] sm:$0x3] %v3674
        $region48: #{sfs_cnn_forward.7} parent=39 // pred_fallthru
          _
        // Predicated region
        $region49: #{sfs_cnn_forward.7} parent=39 // pred_check
          %p3678 = pneg %p145
        $region50: #{sfs_cnn_forward.7} parent=39 // pred_check_branch
          %3680 = sbr.rel (%p3678) target = $region52
        $region51: #{sfs_cnn_forward.7} parent=39 // pred_region
          %s3682 = ssub.s32 32, 32
          %3683 = vsyncadd [#allocation4], %s3682
          %s3685 = sshll.u32 [#allocation3], 4
          %s3686 = int_to_ptr.vmem [resolvable:$true] %s3685
          %3688 = dma.vmem_to_hbm [thread:$0]  %s3686, 32, %s5, [#allocation4]
        $region52: #{sfs_cnn_forward.7} parent=39 // pred_fallthru
          _
        // Predicated region
        $region53: #{sfs_cnn_forward.7} parent=39 // pred_check
          %p3689 = pneg %p145
        $region54: #{sfs_cnn_forward.7} parent=39 // pred_check_branch
          %3691 = sbr.rel (%p3689) target = $region56
        $region55: #{sfs_cnn_forward.7} parent=39 // pred_region
          %3692 = dma.done [#allocation4], 32
        $region56: #{sfs_cnn_forward.7} parent=39 // pred_fallthru
          _
      $region40: #{sfs_cnn_forward.7} parent=5 // pred_fallthru
        _
      %p3693 = scmp.le.s32.totalorder 2, %s12
      // Predicated region
      $region57: #{sfs_cnn_forward.7} parent=5 // pred_check
        %p3694 = pneg %p3693
      $region58: #{sfs_cnn_forward.7} parent=5 // pred_check_branch
        %3696 = sbr.rel (%p3694) target = $region60
      $region59: #{sfs_cnn_forward.7} parent=5 // pred_region
        %s3697 = ssub.s32 %s12, 2
      $region60: #{sfs_cnn_forward.7} parent=5 // pred_fallthru
        _
    $region6: #{sfs_cnn_forward.7} parent=1 // loop_footer
      %s16 = sadd.s32 1, %s12
    $region7: #{sfs_cnn_forward.7} parent=1 // loop_footer_branch
      %11 = sbr.rel target = $region3
    $region8: #{sfs_cnn_forward.7} parent=1 // loop_exit
      _
    %3698 = vsyncpa [#allocation4], 1
    %s3699 = scalar_lea.sflag [#allocation4], 1
    %3700 = vsyncpa %s3699, 1

</llo_original>
